<compile_context>
chip_gen: v7x
topology: tpu7x:2x2x1
jax: 0.10.0
libtpu: 0.0.40
codegen_flags: <defaults>
</compile_context>

<pallas_src>
import functools
import math

import jax
import jax.numpy as jnp
import numpy as np
from jax import lax
from jax.experimental import pallas as pl
from jax.experimental.pallas import tpu as pltpu


# ---------------------------------------------------------------------------
# Host-side constant builders (trace-time numpy; become HLO constants)
# ---------------------------------------------------------------------------
def _round_up(x, m):
    return -(-x // m) * m


def _pool_patch_matrix(N, Hin, Win):
    """Matrix PP such that  z @ PP  (z: (C, N*Hin*Win) = previous conv block's
    activations, columns ordered (n, i, j)) directly yields the next conv's
    im2col patches: AvgPool2d(2) + 1-pixel zero border + 3x3 tap extraction
    are all folded in.  Columns are nine lane-aligned blocks of width
    bs = round_up(N*(Hin//2)*(Win//2), 128); tap-t block column (n, io, jo)
    holds the tap value for conv-output pixel (n, io, jo)."""
    ho, wo = Hin // 2, Win // 2
    nout = N * ho * wo
    bs = _round_up(nout, 128)
    P = np.zeros((N * Hin * Win, 9 * bs), np.float32)
    for dy in range(3):
        for dx in range(3):
            t = dy * 3 + dx
            for n in range(N):
                for io in range(ho):
                    ip = io + dy - 1
                    if not (0 <= ip < ho):
                        continue
                    for jo in range(wo):
                        jp = jo + dx - 1
                        if not (0 <= jp < wo):
                            continue
                        col = t * bs + (n * ho + io) * wo + jo
                        for dh in range(2):
                            for dw in range(2):
                                row = (n * Hin + 2 * ip + dh) * Win + (2 * jp + dw)
                                P[row, col] = 0.25
    return P


def _final_pool_stack(N, Hin, Win):
    """S = (Hin//2)*(Win//2) stacked per-spatial matrices: block s (shape
    (N*Hin*Win, N)) maps the last conv block's activations z3 (C, N*Hin*Win)
    to the 2x2-average-pooled value of spatial position s for every image:
    (z3 @ block_s)[c, n] = pooled[n, c, s]."""
    ho, wo = Hin // 2, Win // 2
    ncols = N * Hin * Win
    P = np.zeros((ho * wo * ncols, N), np.float32)
    for n in range(N):
        for io in range(ho):
            for jo in range(wo):
                s = io * wo + jo
                for dh in range(2):
                    for dw in range(2):
                        row = (n * Hin + 2 * io + dh) * Win + (2 * jo + dw)
                        P[s * ncols + row, n] = 0.25
    return P


# ---------------------------------------------------------------------------
# The single fused kernel.
#   Activations are kept TRANSPOSED: (channels, pixels) — channels on
#   sublanes, (batch x spatial) pixels on lanes — so GEMM outputs are
#   lane-dense and BN / ReLU vreg occupancy is full.
# ---------------------------------------------------------------------------
def _encoder_kernel(p1_ref, w1_ref, b1_ref, g1_ref, be1_ref,
                    pp2_ref, w2_ref, b2_ref, g2_ref, be2_ref,
                    pp3_ref, w3_ref, b3_ref, g3_ref, be3_ref,
                    pf_ref, wd_ref, db_ref, dg_ref, dbe_ref,
                    o_ref, *, N, H, W, C, M, eps):
    f32 = jnp.float32
    bf16 = jnp.bfloat16

    def bn_relu(y, g_ref, be_ref):
        # training-mode BatchNorm2d over (N, H, W): per-channel (sublane row)
        # stats reduced over lanes, f32 two-pass mean / E[(x-m)^2].
        mean = jnp.mean(y, axis=1, keepdims=True)
        var = jnp.mean(jnp.square(y - mean), axis=1, keepdims=True)
        scale = g_ref[...] * lax.rsqrt(var + eps)
        shift = be_ref[...] - mean * scale
        return jnp.maximum(y * scale + shift, 0.0)

    def conv_taps(patches_bf, w_ref, bs):
        # patches_bf: (Cin, 9*bs) bf16, nine 128-lane-aligned tap blocks.
        # w_ref:      (9*Cout, Cin) bf16, rows ordered (tap, cout).
        # conv = sum over taps of W_t @ patch_block_t  (all aligned slices,
        # no relayouts; bf16 operands, f32 accumulation on the MXU).
        acc = None
        for t in range(9):
            wt = w_ref[t * C:(t + 1) * C, :]
            blk = patches_bf[:, t * bs:(t + 1) * bs]
            part = jnp.dot(wt, blk, preferred_element_type=f32)
            acc = part if acc is None else acc + part
        return acc

    # ----- conv block 1 (patches prebuilt on host, transposed) -------------
    y1 = jnp.dot(w1_ref[...], p1_ref[...], preferred_element_type=f32) + b1_ref[...]
    z1 = bn_relu(y1, g1_ref, be1_ref).astype(bf16)            # (C, N*H*W)

    # ----- conv block 2: pool+pad+im2col folded into one bf16 GEMM ---------
    n2 = N * (H // 2) * (W // 2)
    bs2 = _round_up(n2, 128)
    patches2 = jnp.dot(z1, pp2_ref[...], preferred_element_type=f32).astype(bf16)
    y2 = conv_taps(patches2, w2_ref, bs2)[:, :n2] + b2_ref[...]
    z2 = bn_relu(y2, g2_ref, be2_ref).astype(bf16)            # (C, n2)

    # ----- conv block 3 -----------------------------------------------------
    n3 = N * (H // 4) * (W // 4)
    bs3 = _round_up(n3, 128)
    patches3 = jnp.dot(z2, pp3_ref[...], preferred_element_type=f32).astype(bf16)
    y3 = conv_taps(patches3, w3_ref, bs3)[:, :n3] + b3_ref[...]
    z3 = bn_relu(y3, g3_ref, be3_ref).astype(bf16)            # (C, n3)

    # ----- final AvgPool2d(2) + NCHW flatten + Linear, fused ---------------
    # out^T[m, n] = sum_s  Wd_s (M, C) @ (z3 @ Pf_s) (C, N); the NCHW flatten
    # is absorbed into the host-side row permutation of Wd (no in-kernel
    # transpose / lane-concat needed).
    S = (H // 8) * (W // 8)
    acc = None
    for s in range(S):
        pooled_s = jnp.dot(z3, pf_ref[s * n3:(s + 1) * n3, :],
                           preferred_element_type=f32).astype(bf16)   # (C, N)
        part = jnp.dot(wd_ref[s * M:(s + 1) * M, :], pooled_s,
                       preferred_element_type=f32)                    # (M, N)
        acc = part if acc is None else acc + part

    # dense bias + training-mode BatchNorm1d (per-feature stats over batch)
    yd = acc + db_ref[...]
    mean = jnp.mean(yd, axis=1, keepdims=True)
    var = jnp.mean(jnp.square(yd - mean), axis=1, keepdims=True)
    scale = dg_ref[...] * lax.rsqrt(var + eps)
    shift = dbe_ref[...] - mean * scale
    o_ref[...] = yd * scale + shift                                   # (M, N)


# ---------------------------------------------------------------------------
# Wrapper
# ---------------------------------------------------------------------------
def encoder_forward(x_nchw, params, output_size, eps=1e-5):
    """x_nchw: (N, Cin, H, W) float32.  Returns (mu, logvar), each (N, output_size)."""
    N, Cin, H, W = x_nchw.shape
    assert H % 8 == 0 and W % 8 == 0
    C = params["conv1"]["w"].shape[-1]
    S = (H // 8) * (W // 8)
    M = 2 * output_size
    bf16, f32 = jnp.bfloat16, jnp.float32

    # ---- layer-1 im2col patches, transposed: (9*Cin, N*H*W), rows (tap, ci)
    xp = jnp.pad(x_nchw, ((0, 0), (0, 0), (1, 1), (1, 1)))
    taps = [xp[:, :, dy:dy + H, dx:dx + W] for dy in range(3) for dx in range(3)]
    p1 = (jnp.stack(taps, 0).transpose(0, 2, 1, 3, 4)
          .reshape(9 * Cin, N * H * W).astype(bf16))

    def w_packed_1(p):   # (3,3,Cin,Cout) -> (Cout, 9*Cin), cols (tap, ci)
        w = p["w"]
        return w.reshape(9 * w.shape[2], w.shape[3]).T.astype(bf16)

    def w_stack(p):      # (3,3,Cin,Cout) -> (9*Cout, Cin), rows (tap, cout)
        w = p["w"]
        return jnp.transpose(w, (0, 1, 3, 2)).reshape(9 * w.shape[3], w.shape[2]).astype(bf16)

    def col(v):          # per-channel / per-feature params as column vectors
        return v.reshape(-1, 1).astype(f32)

    # Pool/pad/im2col matrices (entries 0 / 0.25 -> exact in bf16).
    pp2 = jnp.asarray(_pool_patch_matrix(N, H, W), dtype=bf16)
    pp3 = jnp.asarray(_pool_patch_matrix(N, H // 2, W // 2), dtype=bf16)
    pf = jnp.asarray(_final_pool_stack(N, H // 4, W // 4), dtype=bf16)

    # Dense weight rows follow PyTorch's NCHW flatten (c, i, j); re-stack them
    # per spatial position s so the kernel can fuse pool+flatten+Linear as
    # S accumulated GEMMs:  wd_stack[s*M + m, c] = Wd[c*S + s, m].
    d = params["den1"]
    wd_stack = (d["w"].reshape(C, S, M).transpose(1, 2, 0)
                .reshape(S * M, C).astype(bf16))

    c1, c2, c3 = params["conv1"], params["conv2"], params["conv3"]
    ins = [p1, w_packed_1(c1), col(c1["b"]), col(c1["gamma"]), col(c1["beta"]),
           pp2, w_stack(c2), col(c2["b"]), col(c2["gamma"]), col(c2["beta"]),
           pp3, w_stack(c3), col(c3["b"]), col(c3["gamma"]), col(c3["beta"]),
           pf, wd_stack, col(d["b"]), col(d["gamma"]), col(d["beta"])]

    kernel = functools.partial(_encoder_kernel, N=N, H=H, W=W, C=C, M=M, eps=eps)
    out_t = pl.pallas_call(
        kernel,
        out_shape=jax.ShapeDtypeStruct((M, N), f32),
        grid=(1,),
        in_specs=[pl.BlockSpec(a.shape, lambda i: (0, 0)) for a in ins],
        out_specs=pl.BlockSpec((M, N), lambda i: (0, 0)),
        compiler_params=pltpu.CompilerParams(
            dimension_semantics=("arbitrary",),
            vmem_limit_bytes=32 * 1024 * 1024),
    )(*ins)

    out = out_t.T                      # (N, 2*output_size)
    return out[:, :output_size], out[:, output_size:]


# ---------------------------------------------------------------------------
# Deterministic parameter initialization (shapes follow the nn.Module __init__)
# ---------------------------------------------------------------------------
def init_params(key, in_ch, hidden, feat_hw, output_size):
    def conv_block(k, cin, cout):
        k1, k2, k3, k4 = jax.random.split(k, 4)
        return dict(
            w=jax.random.normal(k1, (3, 3, cin, cout), jnp.float32)
              * (1.0 / math.sqrt(9.0 * cin)),
            b=0.1 * jax.random.normal(k2, (cout,), jnp.float32),
            gamma=1.0 + 0.1 * jax.random.normal(k3, (cout,), jnp.float32),
            beta=0.1 * jax.random.normal(k4, (cout,), jnp.float32),
        )

    k1, k2, k3, k4 = jax.random.split(key, 4)
    F = hidden * feat_hw[0] * feat_hw[1]
    M = 2 * output_size
    kd1, kd2, kd3, kd4 = jax.random.split(k4, 4)
    return dict(
        conv1=conv_block(k1, in_ch, hidden),
        conv2=conv_block(k2, hidden, hidden),
        conv3=conv_block(k3, hidden, hidden),
        den1=dict(
            w=jax.random.normal(kd1, (F, M), jnp.float32) * (1.0 / math.sqrt(F)),
            b=0.1 * jax.random.normal(kd2, (M,), jnp.float32),
            gamma=1.0 + 0.1 * jax.random.normal(kd3, (M,), jnp.float32),
            beta=0.1 * jax.random.normal(kd4, (M,), jnp.float32),
        ),
    )


if __name__ == "__main__":
    # Encoder(input_size=(4, 16, 16), hidden_size=32, output_size=16)
    N, Cin, H, W = 2, 4, 16, 16
    hidden, output_size = 32, 16

    key = jax.random.PRNGKey(0)
    kx, kp = jax.random.split(key)
    x = jax.random.normal(kx, (N, Cin, H, W), jnp.float32)
    params = init_params(kp, Cin, hidden, (H // 8, W // 8), output_size)

    fwd = jax.jit(lambda xx: encoder_forward(xx, params, output_size))
    mu, logvar = fwd(x)
    jax.block_until_ready((mu, logvar))

    assert mu.shape == (N, output_size) and logvar.shape == (N, output_size)
    assert bool(jnp.all(jnp.isfinite(mu))) and bool(jnp.all(jnp.isfinite(logvar)))
    print("KERNEL_OK")
</pallas_src>

<mosaic_0001>
module attributes {stable_mosaic.version = 11 : i64} {
  func.func @_encoder_kernel(%arg0: i32, %arg1: memref<36x512xbf16, #tpu.memory_space<vmem>>, %arg2: memref<32x36xbf16, #tpu.memory_space<vmem>>, %arg3: memref<32x1xf32, #tpu.memory_space<vmem>>, %arg4: memref<32x1xf32, #tpu.memory_space<vmem>>, %arg5: memref<32x1xf32, #tpu.memory_space<vmem>>, %arg6: memref<512x1152xbf16, #tpu.memory_space<vmem>>, %arg7: memref<288x32xbf16, #tpu.memory_space<vmem>>, %arg8: memref<32x1xf32, #tpu.memory_space<vmem>>, %arg9: memref<32x1xf32, #tpu.memory_space<vmem>>, %arg10: memref<32x1xf32, #tpu.memory_space<vmem>>, %arg11: memref<128x1152xbf16, #tpu.memory_space<vmem>>, %arg12: memref<288x32xbf16, #tpu.memory_space<vmem>>, %arg13: memref<32x1xf32, #tpu.memory_space<vmem>>, %arg14: memref<32x1xf32, #tpu.memory_space<vmem>>, %arg15: memref<32x1xf32, #tpu.memory_space<vmem>>, %arg16: memref<128x2xbf16, #tpu.memory_space<vmem>>, %arg17: memref<128x32xbf16, #tpu.memory_space<vmem>>, %arg18: memref<32x1xf32, #tpu.memory_space<vmem>>, %arg19: memref<32x1xf32, #tpu.memory_space<vmem>>, %arg20: memref<32x1xf32, #tpu.memory_space<vmem>>, %arg21: memref<32x2xf32, #tpu.memory_space<vmem>>) attributes {dimension_semantics = [#tpu.dimension_semantics<arbitrary>], iteration_bounds = array<i64: 1>, scalar_prefetch = 0 : i64, scratch_operands = 0 : i64, tpu.core_type = #tpu.core_type<tc>, window_params = [{pipeline_mode = #tpu.pipeline_mode<synchronous>, transform_indices = @transform_0, window_bounds = array<i64: 36, 512>}, {pipeline_mode = #tpu.pipeline_mode<synchronous>, transform_indices = @transform_1, window_bounds = array<i64: 32, 36>}, {pipeline_mode = #tpu.pipeline_mode<synchronous>, transform_indices = @transform_2, window_bounds = array<i64: 32, 1>}, {pipeline_mode = #tpu.pipeline_mode<synchronous>, transform_indices = @transform_3, window_bounds = array<i64: 32, 1>}, {pipeline_mode = #tpu.pipeline_mode<synchronous>, transform_indices = @transform_4, window_bounds = array<i64: 32, 1>}, {pipeline_mode = #tpu.pipeline_mode<synchronous>, transform_indices = @transform_5, window_bounds = array<i64: 512, 1152>}, {pipeline_mode = #tpu.pipeline_mode<synchronous>, transform_indices = @transform_6, window_bounds = array<i64: 288, 32>}, {pipeline_mode = #tpu.pipeline_mode<synchronous>, transform_indices = @transform_7, window_bounds = array<i64: 32, 1>}, {pipeline_mode = #tpu.pipeline_mode<synchronous>, transform_indices = @transform_8, window_bounds = array<i64: 32, 1>}, {pipeline_mode = #tpu.pipeline_mode<synchronous>, transform_indices = @transform_9, window_bounds = array<i64: 32, 1>}, {pipeline_mode = #tpu.pipeline_mode<synchronous>, transform_indices = @transform_10, window_bounds = array<i64: 128, 1152>}, {pipeline_mode = #tpu.pipeline_mode<synchronous>, transform_indices = @transform_11, window_bounds = array<i64: 288, 32>}, {pipeline_mode = #tpu.pipeline_mode<synchronous>, transform_indices = @transform_12, window_bounds = array<i64: 32, 1>}, {pipeline_mode = #tpu.pipeline_mode<synchronous>, transform_indices = @transform_13, window_bounds = array<i64: 32, 1>}, {pipeline_mode = #tpu.pipeline_mode<synchronous>, transform_indices = @transform_14, window_bounds = array<i64: 32, 1>}, {pipeline_mode = #tpu.pipeline_mode<synchronous>, transform_indices = @transform_15, window_bounds = array<i64: 128, 2>}, {pipeline_mode = #tpu.pipeline_mode<synchronous>, transform_indices = @transform_16, window_bounds = array<i64: 128, 32>}, {pipeline_mode = #tpu.pipeline_mode<synchronous>, transform_indices = @transform_17, window_bounds = array<i64: 32, 1>}, {pipeline_mode = #tpu.pipeline_mode<synchronous>, transform_indices = @transform_18, window_bounds = array<i64: 32, 1>}, {pipeline_mode = #tpu.pipeline_mode<synchronous>, transform_indices = @transform_19, window_bounds = array<i64: 32, 1>}, {pipeline_mode = #tpu.pipeline_mode<synchronous>, transform_indices = @transform_20, window_bounds = array<i64: 32, 2>}]} {
    %c0 = arith.constant 0 : index
    %c0_0 = arith.constant 0 : index
    %0 = vector.load %arg2[%c0, %c0_0] : memref<32x36xbf16, #tpu.memory_space<vmem>>, vector<32x36xbf16>
    %c0_1 = arith.constant 0 : index
    %c0_2 = arith.constant 0 : index
    %1 = vector.load %arg1[%c0_1, %c0_2] : memref<36x512xbf16, #tpu.memory_space<vmem>>, vector<36x512xbf16>
    %cst = arith.constant dense<0.000000e+00> : vector<32x512xf32>
    %2 = tpu.matmul %0, %1, %cst {dimension_numbers = #tpu.dot_dimension_numbers<[1], [0], [0], [1], [0, 0, 1, 1], [], []>} : vector<32x36xbf16>, vector<36x512xbf16>, vector<32x512xf32> -> vector<32x512xf32>
    %c0_3 = arith.constant 0 : index
    %c0_4 = arith.constant 0 : index
    %3 = vector.load %arg3[%c0_3, %c0_4] : memref<32x1xf32, #tpu.memory_space<vmem>>, vector<32x1xf32>
    %4 = vector.broadcast %3 : vector<32x1xf32> to vector<32x512xf32>
    %5 = arith.addf %2, %4 : vector<32x512xf32>
    %cst_5 = arith.constant dense<0.000000e+00> : vector<32xf32>
    %6 = vector.multi_reduction <add>, %5, %cst_5 [1] : vector<32x512xf32> to vector<32xf32>
    %7 = vector.shape_cast %6 : vector<32xf32> to vector<32x1xf32>
    %cst_6 = arith.constant 5.120000e+02 : f32
    %8 = vector.broadcast %cst_6 : f32 to vector<32x1xf32>
    %9 = arith.divf %7, %8 : vector<32x1xf32>
    %10 = vector.broadcast %9 : vector<32x1xf32> to vector<32x512xf32>
    %11 = arith.subf %5, %10 : vector<32x512xf32>
    %12 = arith.mulf %11, %11 : vector<32x512xf32>
    %cst_7 = arith.constant dense<0.000000e+00> : vector<32xf32>
    %13 = vector.multi_reduction <add>, %12, %cst_7 [1] : vector<32x512xf32> to vector<32xf32>
    %14 = vector.shape_cast %13 : vector<32xf32> to vector<32x1xf32>
    %cst_8 = arith.constant 5.120000e+02 : f32
    %15 = vector.broadcast %cst_8 : f32 to vector<32x1xf32>
    %16 = arith.divf %14, %15 : vector<32x1xf32>
    %c0_9 = arith.constant 0 : index
    %c0_10 = arith.constant 0 : index
    %17 = vector.load %arg4[%c0_9, %c0_10] : memref<32x1xf32, #tpu.memory_space<vmem>>, vector<32x1xf32>
    %cst_11 = arith.constant 9.99999974E-6 : f32
    %18 = vector.broadcast %cst_11 : f32 to vector<32x1xf32>
    %19 = arith.addf %16, %18 : vector<32x1xf32>
    %20 = math.rsqrt %19 : vector<32x1xf32>
    %21 = arith.mulf %17, %20 : vector<32x1xf32>
    %c0_12 = arith.constant 0 : index
    %c0_13 = arith.constant 0 : index
    %22 = vector.load %arg5[%c0_12, %c0_13] : memref<32x1xf32, #tpu.memory_space<vmem>>, vector<32x1xf32>
    %23 = arith.mulf %9, %21 : vector<32x1xf32>
    %24 = arith.subf %22, %23 : vector<32x1xf32>
    %25 = vector.broadcast %21 : vector<32x1xf32> to vector<32x512xf32>
    %26 = arith.mulf %5, %25 : vector<32x512xf32>
    %27 = vector.broadcast %24 : vector<32x1xf32> to vector<32x512xf32>
    %28 = arith.addf %26, %27 : vector<32x512xf32>
    %cst_14 = arith.constant 0.000000e+00 : f32
    %29 = vector.broadcast %cst_14 : f32 to vector<32x512xf32>
    %30 = arith.maximumf %28, %29 : vector<32x512xf32>
    %31 = arith.truncf %30 : vector<32x512xf32> to vector<32x512xbf16>
    %c0_15 = arith.constant 0 : index
    %c0_16 = arith.constant 0 : index
    %32 = vector.load %arg6[%c0_15, %c0_16] : memref<512x1152xbf16, #tpu.memory_space<vmem>>, vector<512x1152xbf16>
    %cst_17 = arith.constant dense<0.000000e+00> : vector<32x1152xf32>
    %33 = tpu.matmul %31, %32, %cst_17 {dimension_numbers = #tpu.dot_dimension_numbers<[1], [0], [0], [1], [0, 0, 1, 1], [], []>} : vector<32x512xbf16>, vector<512x1152xbf16>, vector<32x1152xf32> -> vector<32x1152xf32>
    %34 = arith.truncf %33 : vector<32x1152xf32> to vector<32x1152xbf16>
    %c0_18 = arith.constant 0 : index
    %c0_19 = arith.constant 0 : index
    %35 = vector.load %arg7[%c0_18, %c0_19] : memref<288x32xbf16, #tpu.memory_space<vmem>>, vector<32x32xbf16>
    %36 = vector.extract_strided_slice %34 {offsets = [0, 0], sizes = [32, 128], strides = [1, 1]} : vector<32x1152xbf16> to vector<32x128xbf16>
    %cst_20 = arith.constant dense<0.000000e+00> : vector<32x128xf32>
    %37 = tpu.matmul %35, %36, %cst_20 {dimension_numbers = #tpu.dot_dimension_numbers<[1], [0], [0], [1], [0, 0, 1, 1], [], []>} : vector<32x32xbf16>, vector<32x128xbf16>, vector<32x128xf32> -> vector<32x128xf32>
    %c32 = arith.constant 32 : index
    %c0_21 = arith.constant 0 : index
    %38 = vector.load %arg7[%c32, %c0_21] : memref<288x32xbf16, #tpu.memory_space<vmem>>, vector<32x32xbf16>
    %39 = vector.extract_strided_slice %34 {offsets = [0, 128], sizes = [32, 128], strides = [1, 1]} : vector<32x1152xbf16> to vector<32x128xbf16>
    %cst_22 = arith.constant dense<0.000000e+00> : vector<32x128xf32>
    %40 = tpu.matmul %38, %39, %cst_22 {dimension_numbers = #tpu.dot_dimension_numbers<[1], [0], [0], [1], [0, 0, 1, 1], [], []>} : vector<32x32xbf16>, vector<32x128xbf16>, vector<32x128xf32> -> vector<32x128xf32>
    %41 = arith.addf %37, %40 : vector<32x128xf32>
    %c64 = arith.constant 64 : index
    %c0_23 = arith.constant 0 : index
    %42 = vector.load %arg7[%c64, %c0_23] : memref<288x32xbf16, #tpu.memory_space<vmem>>, vector<32x32xbf16>
    %43 = vector.extract_strided_slice %34 {offsets = [0, 256], sizes = [32, 128], strides = [1, 1]} : vector<32x1152xbf16> to vector<32x128xbf16>
    %cst_24 = arith.constant dense<0.000000e+00> : vector<32x128xf32>
    %44 = tpu.matmul %42, %43, %cst_24 {dimension_numbers = #tpu.dot_dimension_numbers<[1], [0], [0], [1], [0, 0, 1, 1], [], []>} : vector<32x32xbf16>, vector<32x128xbf16>, vector<32x128xf32> -> vector<32x128xf32>
    %45 = arith.addf %41, %44 : vector<32x128xf32>
    %c96 = arith.constant 96 : index
    %c0_25 = arith.constant 0 : index
    %46 = vector.load %arg7[%c96, %c0_25] : memref<288x32xbf16, #tpu.memory_space<vmem>>, vector<32x32xbf16>
    %47 = vector.extract_strided_slice %34 {offsets = [0, 384], sizes = [32, 128], strides = [1, 1]} : vector<32x1152xbf16> to vector<32x128xbf16>
    %cst_26 = arith.constant dense<0.000000e+00> : vector<32x128xf32>
    %48 = tpu.matmul %46, %47, %cst_26 {dimension_numbers = #tpu.dot_dimension_numbers<[1], [0], [0], [1], [0, 0, 1, 1], [], []>} : vector<32x32xbf16>, vector<32x128xbf16>, vector<32x128xf32> -> vector<32x128xf32>
    %49 = arith.addf %45, %48 : vector<32x128xf32>
    %c128 = arith.constant 128 : index
    %c0_27 = arith.constant 0 : index
    %50 = vector.load %arg7[%c128, %c0_27] : memref<288x32xbf16, #tpu.memory_space<vmem>>, vector<32x32xbf16>
    %51 = vector.extract_strided_slice %34 {offsets = [0, 512], sizes = [32, 128], strides = [1, 1]} : vector<32x1152xbf16> to vector<32x128xbf16>
    %cst_28 = arith.constant dense<0.000000e+00> : vector<32x128xf32>
    %52 = tpu.matmul %50, %51, %cst_28 {dimension_numbers = #tpu.dot_dimension_numbers<[1], [0], [0], [1], [0, 0, 1, 1], [], []>} : vector<32x32xbf16>, vector<32x128xbf16>, vector<32x128xf32> -> vector<32x128xf32>
    %53 = arith.addf %49, %52 : vector<32x128xf32>
    %c160 = arith.constant 160 : index
    %c0_29 = arith.constant 0 : index
    %54 = vector.load %arg7[%c160, %c0_29] : memref<288x32xbf16, #tpu.memory_space<vmem>>, vector<32x32xbf16>
    %55 = vector.extract_strided_slice %34 {offsets = [0, 640], sizes = [32, 128], strides = [1, 1]} : vector<32x1152xbf16> to vector<32x128xbf16>
    %cst_30 = arith.constant dense<0.000000e+00> : vector<32x128xf32>
    %56 = tpu.matmul %54, %55, %cst_30 {dimension_numbers = #tpu.dot_dimension_numbers<[1], [0], [0], [1], [0, 0, 1, 1], [], []>} : vector<32x32xbf16>, vector<32x128xbf16>, vector<32x128xf32> -> vector<32x128xf32>
    %57 = arith.addf %53, %56 : vector<32x128xf32>
    %c192 = arith.constant 192 : index
    %c0_31 = arith.constant 0 : index
    %58 = vector.load %arg7[%c192, %c0_31] : memref<288x32xbf16, #tpu.memory_space<vmem>>, vector<32x32xbf16>
    %59 = vector.extract_strided_slice %34 {offsets = [0, 768], sizes = [32, 128], strides = [1, 1]} : vector<32x1152xbf16> to vector<32x128xbf16>
    %cst_32 = arith.constant dense<0.000000e+00> : vector<32x128xf32>
    %60 = tpu.matmul %58, %59, %cst_32 {dimension_numbers = #tpu.dot_dimension_numbers<[1], [0], [0], [1], [0, 0, 1, 1], [], []>} : vector<32x32xbf16>, vector<32x128xbf16>, vector<32x128xf32> -> vector<32x128xf32>
    %61 = arith.addf %57, %60 : vector<32x128xf32>
    %c224 = arith.constant 224 : index
    %c0_33 = arith.constant 0 : index
    %62 = vector.load %arg7[%c224, %c0_33] : memref<288x32xbf16, #tpu.memory_space<vmem>>, vector<32x32xbf16>
    %63 = vector.extract_strided_slice %34 {offsets = [0, 896], sizes = [32, 128], strides = [1, 1]} : vector<32x1152xbf16> to vector<32x128xbf16>
    %cst_34 = arith.constant dense<0.000000e+00> : vector<32x128xf32>
    %64 = tpu.matmul %62, %63, %cst_34 {dimension_numbers = #tpu.dot_dimension_numbers<[1], [0], [0], [1], [0, 0, 1, 1], [], []>} : vector<32x32xbf16>, vector<32x128xbf16>, vector<32x128xf32> -> vector<32x128xf32>
    %65 = arith.addf %61, %64 : vector<32x128xf32>
    %c256 = arith.constant 256 : index
    %c0_35 = arith.constant 0 : index
    %66 = vector.load %arg7[%c256, %c0_35] : memref<288x32xbf16, #tpu.memory_space<vmem>>, vector<32x32xbf16>
    %67 = vector.extract_strided_slice %34 {offsets = [0, 1024], sizes = [32, 128], strides = [1, 1]} : vector<32x1152xbf16> to vector<32x128xbf16>
    %cst_36 = arith.constant dense<0.000000e+00> : vector<32x128xf32>
    %68 = tpu.matmul %66, %67, %cst_36 {dimension_numbers = #tpu.dot_dimension_numbers<[1], [0], [0], [1], [0, 0, 1, 1], [], []>} : vector<32x32xbf16>, vector<32x128xbf16>, vector<32x128xf32> -> vector<32x128xf32>
    %69 = arith.addf %65, %68 : vector<32x128xf32>
    %c0_37 = arith.constant 0 : index
    %c0_38 = arith.constant 0 : index
    %70 = vector.load %arg8[%c0_37, %c0_38] : memref<32x1xf32, #tpu.memory_space<vmem>>, vector<32x1xf32>
    %71 = vector.broadcast %70 : vector<32x1xf32> to vector<32x128xf32>
    %72 = arith.addf %69, %71 : vector<32x128xf32>
    %cst_39 = arith.constant dense<0.000000e+00> : vector<32xf32>
    %73 = vector.multi_reduction <add>, %72, %cst_39 [1] : vector<32x128xf32> to vector<32xf32>
    %74 = vector.shape_cast %73 : vector<32xf32> to vector<32x1xf32>
    %cst_40 = arith.constant 1.280000e+02 : f32
    %75 = vector.broadcast %cst_40 : f32 to vector<32x1xf32>
    %76 = arith.divf %74, %75 : vector<32x1xf32>
    %77 = vector.broadcast %76 : vector<32x1xf32> to vector<32x128xf32>
    %78 = arith.subf %72, %77 : vector<32x128xf32>
    %79 = arith.mulf %78, %78 : vector<32x128xf32>
    %cst_41 = arith.constant dense<0.000000e+00> : vector<32xf32>
    %80 = vector.multi_reduction <add>, %79, %cst_41 [1] : vector<32x128xf32> to vector<32xf32>
    %81 = vector.shape_cast %80 : vector<32xf32> to vector<32x1xf32>
    %cst_42 = arith.constant 1.280000e+02 : f32
    %82 = vector.broadcast %cst_42 : f32 to vector<32x1xf32>
    %83 = arith.divf %81, %82 : vector<32x1xf32>
    %c0_43 = arith.constant 0 : index
    %c0_44 = arith.constant 0 : index
    %84 = vector.load %arg9[%c0_43, %c0_44] : memref<32x1xf32, #tpu.memory_space<vmem>>, vector<32x1xf32>
    %cst_45 = arith.constant 9.99999974E-6 : f32
    %85 = vector.broadcast %cst_45 : f32 to vector<32x1xf32>
    %86 = arith.addf %83, %85 : vector<32x1xf32>
    %87 = math.rsqrt %86 : vector<32x1xf32>
    %88 = arith.mulf %84, %87 : vector<32x1xf32>
    %c0_46 = arith.constant 0 : index
    %c0_47 = arith.constant 0 : index
    %89 = vector.load %arg10[%c0_46, %c0_47] : memref<32x1xf32, #tpu.memory_space<vmem>>, vector<32x1xf32>
    %90 = arith.mulf %76, %88 : vector<32x1xf32>
    %91 = arith.subf %89, %90 : vector<32x1xf32>
    %92 = vector.broadcast %88 : vector<32x1xf32> to vector<32x128xf32>
    %93 = arith.mulf %72, %92 : vector<32x128xf32>
    %94 = vector.broadcast %91 : vector<32x1xf32> to vector<32x128xf32>
    %95 = arith.addf %93, %94 : vector<32x128xf32>
    %cst_48 = arith.constant 0.000000e+00 : f32
    %96 = vector.broadcast %cst_48 : f32 to vector<32x128xf32>
    %97 = arith.maximumf %95, %96 : vector<32x128xf32>
    %98 = arith.truncf %97 : vector<32x128xf32> to vector<32x128xbf16>
    %c0_49 = arith.constant 0 : index
    %c0_50 = arith.constant 0 : index
    %99 = vector.load %arg11[%c0_49, %c0_50] : memref<128x1152xbf16, #tpu.memory_space<vmem>>, vector<128x1152xbf16>
    %cst_51 = arith.constant dense<0.000000e+00> : vector<32x1152xf32>
    %100 = tpu.matmul %98, %99, %cst_51 {dimension_numbers = #tpu.dot_dimension_numbers<[1], [0], [0], [1], [0, 0, 1, 1], [], []>} : vector<32x128xbf16>, vector<128x1152xbf16>, vector<32x1152xf32> -> vector<32x1152xf32>
    %101 = arith.truncf %100 : vector<32x1152xf32> to vector<32x1152xbf16>
    %c0_52 = arith.constant 0 : index
    %c0_53 = arith.constant 0 : index
    %102 = vector.load %arg12[%c0_52, %c0_53] : memref<288x32xbf16, #tpu.memory_space<vmem>>, vector<32x32xbf16>
    %103 = vector.extract_strided_slice %101 {offsets = [0, 0], sizes = [32, 128], strides = [1, 1]} : vector<32x1152xbf16> to vector<32x128xbf16>
    %cst_54 = arith.constant dense<0.000000e+00> : vector<32x128xf32>
    %104 = tpu.matmul %102, %103, %cst_54 {dimension_numbers = #tpu.dot_dimension_numbers<[1], [0], [0], [1], [0, 0, 1, 1], [], []>} : vector<32x32xbf16>, vector<32x128xbf16>, vector<32x128xf32> -> vector<32x128xf32>
    %c32_55 = arith.constant 32 : index
    %c0_56 = arith.constant 0 : index
    %105 = vector.load %arg12[%c32_55, %c0_56] : memref<288x32xbf16, #tpu.memory_space<vmem>>, vector<32x32xbf16>
    %106 = vector.extract_strided_slice %101 {offsets = [0, 128], sizes = [32, 128], strides = [1, 1]} : vector<32x1152xbf16> to vector<32x128xbf16>
    %cst_57 = arith.constant dense<0.000000e+00> : vector<32x128xf32>
    %107 = tpu.matmul %105, %106, %cst_57 {dimension_numbers = #tpu.dot_dimension_numbers<[1], [0], [0], [1], [0, 0, 1, 1], [], []>} : vector<32x32xbf16>, vector<32x128xbf16>, vector<32x128xf32> -> vector<32x128xf32>
    %108 = arith.addf %104, %107 : vector<32x128xf32>
    %c64_58 = arith.constant 64 : index
    %c0_59 = arith.constant 0 : index
    %109 = vector.load %arg12[%c64_58, %c0_59] : memref<288x32xbf16, #tpu.memory_space<vmem>>, vector<32x32xbf16>
    %110 = vector.extract_strided_slice %101 {offsets = [0, 256], sizes = [32, 128], strides = [1, 1]} : vector<32x1152xbf16> to vector<32x128xbf16>
    %cst_60 = arith.constant dense<0.000000e+00> : vector<32x128xf32>
    %111 = tpu.matmul %109, %110, %cst_60 {dimension_numbers = #tpu.dot_dimension_numbers<[1], [0], [0], [1], [0, 0, 1, 1], [], []>} : vector<32x32xbf16>, vector<32x128xbf16>, vector<32x128xf32> -> vector<32x128xf32>
    %112 = arith.addf %108, %111 : vector<32x128xf32>
    %c96_61 = arith.constant 96 : index
    %c0_62 = arith.constant 0 : index
    %113 = vector.load %arg12[%c96_61, %c0_62] : memref<288x32xbf16, #tpu.memory_space<vmem>>, vector<32x32xbf16>
    %114 = vector.extract_strided_slice %101 {offsets = [0, 384], sizes = [32, 128], strides = [1, 1]} : vector<32x1152xbf16> to vector<32x128xbf16>
    %cst_63 = arith.constant dense<0.000000e+00> : vector<32x128xf32>
    %115 = tpu.matmul %113, %114, %cst_63 {dimension_numbers = #tpu.dot_dimension_numbers<[1], [0], [0], [1], [0, 0, 1, 1], [], []>} : vector<32x32xbf16>, vector<32x128xbf16>, vector<32x128xf32> -> vector<32x128xf32>
    %116 = arith.addf %112, %115 : vector<32x128xf32>
    %c128_64 = arith.constant 128 : index
    %c0_65 = arith.constant 0 : index
    %117 = vector.load %arg12[%c128_64, %c0_65] : memref<288x32xbf16, #tpu.memory_space<vmem>>, vector<32x32xbf16>
    %118 = vector.extract_strided_slice %101 {offsets = [0, 512], sizes = [32, 128], strides = [1, 1]} : vector<32x1152xbf16> to vector<32x128xbf16>
    %cst_66 = arith.constant dense<0.000000e+00> : vector<32x128xf32>
    %119 = tpu.matmul %117, %118, %cst_66 {dimension_numbers = #tpu.dot_dimension_numbers<[1], [0], [0], [1], [0, 0, 1, 1], [], []>} : vector<32x32xbf16>, vector<32x128xbf16>, vector<32x128xf32> -> vector<32x128xf32>
    %120 = arith.addf %116, %119 : vector<32x128xf32>
    %c160_67 = arith.constant 160 : index
    %c0_68 = arith.constant 0 : index
    %121 = vector.load %arg12[%c160_67, %c0_68] : memref<288x32xbf16, #tpu.memory_space<vmem>>, vector<32x32xbf16>
    %122 = vector.extract_strided_slice %101 {offsets = [0, 640], sizes = [32, 128], strides = [1, 1]} : vector<32x1152xbf16> to vector<32x128xbf16>
    %cst_69 = arith.constant dense<0.000000e+00> : vector<32x128xf32>
    %123 = tpu.matmul %121, %122, %cst_69 {dimension_numbers = #tpu.dot_dimension_numbers<[1], [0], [0], [1], [0, 0, 1, 1], [], []>} : vector<32x32xbf16>, vector<32x128xbf16>, vector<32x128xf32> -> vector<32x128xf32>
    %124 = arith.addf %120, %123 : vector<32x128xf32>
    %c192_70 = arith.constant 192 : index
    %c0_71 = arith.constant 0 : index
    %125 = vector.load %arg12[%c192_70, %c0_71] : memref<288x32xbf16, #tpu.memory_space<vmem>>, vector<32x32xbf16>
    %126 = vector.extract_strided_slice %101 {offsets = [0, 768], sizes = [32, 128], strides = [1, 1]} : vector<32x1152xbf16> to vector<32x128xbf16>
    %cst_72 = arith.constant dense<0.000000e+00> : vector<32x128xf32>
    %127 = tpu.matmul %125, %126, %cst_72 {dimension_numbers = #tpu.dot_dimension_numbers<[1], [0], [0], [1], [0, 0, 1, 1], [], []>} : vector<32x32xbf16>, vector<32x128xbf16>, vector<32x128xf32> -> vector<32x128xf32>
    %128 = arith.addf %124, %127 : vector<32x128xf32>
    %c224_73 = arith.constant 224 : index
    %c0_74 = arith.constant 0 : index
    %129 = vector.load %arg12[%c224_73, %c0_74] : memref<288x32xbf16, #tpu.memory_space<vmem>>, vector<32x32xbf16>
    %130 = vector.extract_strided_slice %101 {offsets = [0, 896], sizes = [32, 128], strides = [1, 1]} : vector<32x1152xbf16> to vector<32x128xbf16>
    %cst_75 = arith.constant dense<0.000000e+00> : vector<32x128xf32>
    %131 = tpu.matmul %129, %130, %cst_75 {dimension_numbers = #tpu.dot_dimension_numbers<[1], [0], [0], [1], [0, 0, 1, 1], [], []>} : vector<32x32xbf16>, vector<32x128xbf16>, vector<32x128xf32> -> vector<32x128xf32>
    %132 = arith.addf %128, %131 : vector<32x128xf32>
    %c256_76 = arith.constant 256 : index
    %c0_77 = arith.constant 0 : index
    %133 = vector.load %arg12[%c256_76, %c0_77] : memref<288x32xbf16, #tpu.memory_space<vmem>>, vector<32x32xbf16>
    %134 = vector.extract_strided_slice %101 {offsets = [0, 1024], sizes = [32, 128], strides = [1, 1]} : vector<32x1152xbf16> to vector<32x128xbf16>
    %cst_78 = arith.constant dense<0.000000e+00> : vector<32x128xf32>
    %135 = tpu.matmul %133, %134, %cst_78 {dimension_numbers = #tpu.dot_dimension_numbers<[1], [0], [0], [1], [0, 0, 1, 1], [], []>} : vector<32x32xbf16>, vector<32x128xbf16>, vector<32x128xf32> -> vector<32x128xf32>
    %136 = arith.addf %132, %135 : vector<32x128xf32>
    %137 = vector.extract_strided_slice %136 {offsets = [0, 0], sizes = [32, 32], strides = [1, 1]} : vector<32x128xf32> to vector<32x32xf32>
    %c0_79 = arith.constant 0 : index
    %c0_80 = arith.constant 0 : index
    %138 = vector.load %arg13[%c0_79, %c0_80] : memref<32x1xf32, #tpu.memory_space<vmem>>, vector<32x1xf32>
    %139 = vector.broadcast %138 : vector<32x1xf32> to vector<32x32xf32>
    %140 = arith.addf %137, %139 : vector<32x32xf32>
    %cst_81 = arith.constant dense<0.000000e+00> : vector<32xf32>
    %141 = vector.multi_reduction <add>, %140, %cst_81 [1] : vector<32x32xf32> to vector<32xf32>
    %142 = vector.shape_cast %141 : vector<32xf32> to vector<32x1xf32>
    %cst_82 = arith.constant 3.200000e+01 : f32
    %143 = vector.broadcast %cst_82 : f32 to vector<32x1xf32>
    %144 = arith.divf %142, %143 : vector<32x1xf32>
    %145 = vector.broadcast %144 : vector<32x1xf32> to vector<32x32xf32>
    %146 = arith.subf %140, %145 : vector<32x32xf32>
    %147 = arith.mulf %146, %146 : vector<32x32xf32>
    %cst_83 = arith.constant dense<0.000000e+00> : vector<32xf32>
    %148 = vector.multi_reduction <add>, %147, %cst_83 [1] : vector<32x32xf32> to vector<32xf32>
    %149 = vector.shape_cast %148 : vector<32xf32> to vector<32x1xf32>
    %cst_84 = arith.constant 3.200000e+01 : f32
    %150 = vector.broadcast %cst_84 : f32 to vector<32x1xf32>
    %151 = arith.divf %149, %150 : vector<32x1xf32>
    %c0_85 = arith.constant 0 : index
    %c0_86 = arith.constant 0 : index
    %152 = vector.load %arg14[%c0_85, %c0_86] : memref<32x1xf32, #tpu.memory_space<vmem>>, vector<32x1xf32>
    %cst_87 = arith.constant 9.99999974E-6 : f32
    %153 = vector.broadcast %cst_87 : f32 to vector<32x1xf32>
    %154 = arith.addf %151, %153 : vector<32x1xf32>
    %155 = math.rsqrt %154 : vector<32x1xf32>
    %156 = arith.mulf %152, %155 : vector<32x1xf32>
    %c0_88 = arith.constant 0 : index
    %c0_89 = arith.constant 0 : index
    %157 = vector.load %arg15[%c0_88, %c0_89] : memref<32x1xf32, #tpu.memory_space<vmem>>, vector<32x1xf32>
    %158 = arith.mulf %144, %156 : vector<32x1xf32>
    %159 = arith.subf %157, %158 : vector<32x1xf32>
    %160 = vector.broadcast %156 : vector<32x1xf32> to vector<32x32xf32>
    %161 = arith.mulf %140, %160 : vector<32x32xf32>
    %162 = vector.broadcast %159 : vector<32x1xf32> to vector<32x32xf32>
    %163 = arith.addf %161, %162 : vector<32x32xf32>
    %cst_90 = arith.constant 0.000000e+00 : f32
    %164 = vector.broadcast %cst_90 : f32 to vector<32x32xf32>
    %165 = arith.maximumf %163, %164 : vector<32x32xf32>
    %166 = arith.truncf %165 : vector<32x32xf32> to vector<32x32xbf16>
    %c0_91 = arith.constant 0 : index
    %c0_92 = arith.constant 0 : index
    %167 = vector.load %arg16[%c0_91, %c0_92] : memref<128x2xbf16, #tpu.memory_space<vmem>>, vector<32x2xbf16>
    %cst_93 = arith.constant dense<0.000000e+00> : vector<32x2xf32>
    %168 = tpu.matmul %166, %167, %cst_93 {dimension_numbers = #tpu.dot_dimension_numbers<[1], [0], [0], [1], [0, 0, 1, 1], [], []>} : vector<32x32xbf16>, vector<32x2xbf16>, vector<32x2xf32> -> vector<32x2xf32>
    %169 = arith.truncf %168 : vector<32x2xf32> to vector<32x2xbf16>
    %c0_94 = arith.constant 0 : index
    %c0_95 = arith.constant 0 : index
    %170 = vector.load %arg17[%c0_94, %c0_95] : memref<128x32xbf16, #tpu.memory_space<vmem>>, vector<32x32xbf16>
    %cst_96 = arith.constant dense<0.000000e+00> : vector<32x2xf32>
    %171 = tpu.matmul %170, %169, %cst_96 {dimension_numbers = #tpu.dot_dimension_numbers<[1], [0], [0], [1], [0, 0, 1, 1], [], []>} : vector<32x32xbf16>, vector<32x2xbf16>, vector<32x2xf32> -> vector<32x2xf32>
    %c32_97 = arith.constant 32 : index
    %c0_98 = arith.constant 0 : index
    %172 = vector.load %arg16[%c32_97, %c0_98] : memref<128x2xbf16, #tpu.memory_space<vmem>>, vector<32x2xbf16>
    %cst_99 = arith.constant dense<0.000000e+00> : vector<32x2xf32>
    %173 = tpu.matmul %166, %172, %cst_99 {dimension_numbers = #tpu.dot_dimension_numbers<[1], [0], [0], [1], [0, 0, 1, 1], [], []>} : vector<32x32xbf16>, vector<32x2xbf16>, vector<32x2xf32> -> vector<32x2xf32>
    %174 = arith.truncf %173 : vector<32x2xf32> to vector<32x2xbf16>
    %c32_100 = arith.constant 32 : index
    %c0_101 = arith.constant 0 : index
    %175 = vector.load %arg17[%c32_100, %c0_101] : memref<128x32xbf16, #tpu.memory_space<vmem>>, vector<32x32xbf16>
    %cst_102 = arith.constant dense<0.000000e+00> : vector<32x2xf32>
    %176 = tpu.matmul %175, %174, %cst_102 {dimension_numbers = #tpu.dot_dimension_numbers<[1], [0], [0], [1], [0, 0, 1, 1], [], []>} : vector<32x32xbf16>, vector<32x2xbf16>, vector<32x2xf32> -> vector<32x2xf32>
    %177 = arith.addf %171, %176 : vector<32x2xf32>
    %c64_103 = arith.constant 64 : index
    %c0_104 = arith.constant 0 : index
    %178 = vector.load %arg16[%c64_103, %c0_104] : memref<128x2xbf16, #tpu.memory_space<vmem>>, vector<32x2xbf16>
    %cst_105 = arith.constant dense<0.000000e+00> : vector<32x2xf32>
    %179 = tpu.matmul %166, %178, %cst_105 {dimension_numbers = #tpu.dot_dimension_numbers<[1], [0], [0], [1], [0, 0, 1, 1], [], []>} : vector<32x32xbf16>, vector<32x2xbf16>, vector<32x2xf32> -> vector<32x2xf32>
    %180 = arith.truncf %179 : vector<32x2xf32> to vector<32x2xbf16>
    %c64_106 = arith.constant 64 : index
    %c0_107 = arith.constant 0 : index
    %181 = vector.load %arg17[%c64_106, %c0_107] : memref<128x32xbf16, #tpu.memory_space<vmem>>, vector<32x32xbf16>
    %cst_108 = arith.constant dense<0.000000e+00> : vector<32x2xf32>
    %182 = tpu.matmul %181, %180, %cst_108 {dimension_numbers = #tpu.dot_dimension_numbers<[1], [0], [0], [1], [0, 0, 1, 1], [], []>} : vector<32x32xbf16>, vector<32x2xbf16>, vector<32x2xf32> -> vector<32x2xf32>
    %183 = arith.addf %177, %182 : vector<32x2xf32>
    %c96_109 = arith.constant 96 : index
    %c0_110 = arith.constant 0 : index
    %184 = vector.load %arg16[%c96_109, %c0_110] : memref<128x2xbf16, #tpu.memory_space<vmem>>, vector<32x2xbf16>
    %cst_111 = arith.constant dense<0.000000e+00> : vector<32x2xf32>
    %185 = tpu.matmul %166, %184, %cst_111 {dimension_numbers = #tpu.dot_dimension_numbers<[1], [0], [0], [1], [0, 0, 1, 1], [], []>} : vector<32x32xbf16>, vector<32x2xbf16>, vector<32x2xf32> -> vector<32x2xf32>
    %186 = arith.truncf %185 : vector<32x2xf32> to vector<32x2xbf16>
    %c96_112 = arith.constant 96 : index
    %c0_113 = arith.constant 0 : index
    %187 = vector.load %arg17[%c96_112, %c0_113] : memref<128x32xbf16, #tpu.memory_space<vmem>>, vector<32x32xbf16>
    %cst_114 = arith.constant dense<0.000000e+00> : vector<32x2xf32>
    %188 = tpu.matmul %187, %186, %cst_114 {dimension_numbers = #tpu.dot_dimension_numbers<[1], [0], [0], [1], [0, 0, 1, 1], [], []>} : vector<32x32xbf16>, vector<32x2xbf16>, vector<32x2xf32> -> vector<32x2xf32>
    %189 = arith.addf %183, %188 : vector<32x2xf32>
    %c0_115 = arith.constant 0 : index
    %c0_116 = arith.constant 0 : index
    %190 = vector.load %arg18[%c0_115, %c0_116] : memref<32x1xf32, #tpu.memory_space<vmem>>, vector<32x1xf32>
    %191 = vector.broadcast %190 : vector<32x1xf32> to vector<32x2xf32>
    %192 = arith.addf %189, %191 : vector<32x2xf32>
    %cst_117 = arith.constant dense<0.000000e+00> : vector<32xf32>
    %193 = vector.multi_reduction <add>, %192, %cst_117 [1] : vector<32x2xf32> to vector<32xf32>
    %194 = vector.shape_cast %193 : vector<32xf32> to vector<32x1xf32>
    %cst_118 = arith.constant 2.000000e+00 : f32
    %195 = vector.broadcast %cst_118 : f32 to vector<32x1xf32>
    %196 = arith.divf %194, %195 : vector<32x1xf32>
    %197 = vector.broadcast %196 : vector<32x1xf32> to vector<32x2xf32>
    %198 = arith.subf %192, %197 : vector<32x2xf32>
    %199 = arith.mulf %198, %198 : vector<32x2xf32>
    %cst_119 = arith.constant dense<0.000000e+00> : vector<32xf32>
    %200 = vector.multi_reduction <add>, %199, %cst_119 [1] : vector<32x2xf32> to vector<32xf32>
    %201 = vector.shape_cast %200 : vector<32xf32> to vector<32x1xf32>
    %cst_120 = arith.constant 2.000000e+00 : f32
    %202 = vector.broadcast %cst_120 : f32 to vector<32x1xf32>
    %203 = arith.divf %201, %202 : vector<32x1xf32>
    %c0_121 = arith.constant 0 : index
    %c0_122 = arith.constant 0 : index
    %204 = vector.load %arg19[%c0_121, %c0_122] : memref<32x1xf32, #tpu.memory_space<vmem>>, vector<32x1xf32>
    %cst_123 = arith.constant 9.99999974E-6 : f32
    %205 = vector.broadcast %cst_123 : f32 to vector<32x1xf32>
    %206 = arith.addf %203, %205 : vector<32x1xf32>
    %207 = math.rsqrt %206 : vector<32x1xf32>
    %208 = arith.mulf %204, %207 : vector<32x1xf32>
    %c0_124 = arith.constant 0 : index
    %c0_125 = arith.constant 0 : index
    %209 = vector.load %arg20[%c0_124, %c0_125] : memref<32x1xf32, #tpu.memory_space<vmem>>, vector<32x1xf32>
    %210 = arith.mulf %196, %208 : vector<32x1xf32>
    %211 = arith.subf %209, %210 : vector<32x1xf32>
    %212 = vector.broadcast %208 : vector<32x1xf32> to vector<32x2xf32>
    %213 = arith.mulf %192, %212 : vector<32x2xf32>
    %214 = vector.broadcast %211 : vector<32x1xf32> to vector<32x2xf32>
    %215 = arith.addf %213, %214 : vector<32x2xf32>
    %c0_126 = arith.constant 0 : index
    %c0_127 = arith.constant 0 : index
    %216 = vector.load %arg21[%c0_126, %c0_127] : memref<32x2xf32, #tpu.memory_space<vmem>>, vector<32x2xf32>
    tpu.vector_store %arg21[%c0_126, %c0_127], %215 {strides = array<i32>} : memref<32x2xf32, #tpu.memory_space<vmem>>, vector<32x2xf32>,
    return
  }
  func.func @transform_0(%arg0: i32) -> (i32, i32) {
    %c0_i32 = arith.constant 0 : i32
    %c0_i32_0 = arith.constant 0 : i32
    %c0_i32_1 = arith.constant 0 : i32
    return %c0_i32, %c0_i32_0 : i32, i32
  }
  func.func @transform_1(%arg0: i32) -> (i32, i32) {
    %c0_i32 = arith.constant 0 : i32
    %c0_i32_0 = arith.constant 0 : i32
    %c0_i32_1 = arith.constant 0 : i32
    return %c0_i32, %c0_i32_0 : i32, i32
  }
  func.func @transform_2(%arg0: i32) -> (i32, i32) {
    %c0_i32 = arith.constant 0 : i32
    %c0_i32_0 = arith.constant 0 : i32
    %c0_i32_1 = arith.constant 0 : i32
    return %c0_i32, %c0_i32_0 : i32, i32
  }
  func.func @transform_3(%arg0: i32) -> (i32, i32) {
    %c0_i32 = arith.constant 0 : i32
    %c0_i32_0 = arith.constant 0 : i32
    %c0_i32_1 = arith.constant 0 : i32
    return %c0_i32, %c0_i32_0 : i32, i32
  }
  func.func @transform_4(%arg0: i32) -> (i32, i32) {
    %c0_i32 = arith.constant 0 : i32
    %c0_i32_0 = arith.constant 0 : i32
    %c0_i32_1 = arith.constant 0 : i32
    return %c0_i32, %c0_i32_0 : i32, i32
  }
  func.func @transform_5(%arg0: i32) -> (i32, i32) {
    %c0_i32 = arith.constant 0 : i32
    %c0_i32_0 = arith.constant 0 : i32
    %c0_i32_1 = arith.constant 0 : i32
    return %c0_i32, %c0_i32_0 : i32, i32
  }
  func.func @transform_6(%arg0: i32) -> (i32, i32) {
    %c0_i32 = arith.constant 0 : i32
    %c0_i32_0 = arith.constant 0 : i32
    %c0_i32_1 = arith.constant 0 : i32
    return %c0_i32, %c0_i32_0 : i32, i32
  }
  func.func @transform_7(%arg0: i32) -> (i32, i32) {
    %c0_i32 = arith.constant 0 : i32
    %c0_i32_0 = arith.constant 0 : i32
    %c0_i32_1 = arith.constant 0 : i32
    return %c0_i32, %c0_i32_0 : i32, i32
  }
  func.func @transform_8(%arg0: i32) -> (i32, i32) {
    %c0_i32 = arith.constant 0 : i32
    %c0_i32_0 = arith.constant 0 : i32
    %c0_i32_1 = arith.constant 0 : i32
    return %c0_i32, %c0_i32_0 : i32, i32
  }
  func.func @transform_9(%arg0: i32) -> (i32, i32) {
    %c0_i32 = arith.constant 0 : i32
    %c0_i32_0 = arith.constant 0 : i32
    %c0_i32_1 = arith.constant 0 : i32
    return %c0_i32, %c0_i32_0 : i32, i32
  }
  func.func @transform_10(%arg0: i32) -> (i32, i32) {
    %c0_i32 = arith.constant 0 : i32
    %c0_i32_0 = arith.constant 0 : i32
    %c0_i32_1 = arith.constant 0 : i32
    return %c0_i32, %c0_i32_0 : i32, i32
  }
  func.func @transform_11(%arg0: i32) -> (i32, i32) {
    %c0_i32 = arith.constant 0 : i32
    %c0_i32_0 = arith.constant 0 : i32
    %c0_i32_1 = arith.constant 0 : i32
    return %c0_i32, %c0_i32_0 : i32, i32
  }
  func.func @transform_12(%arg0: i32) -> (i32, i32) {
    %c0_i32 = arith.constant 0 : i32
    %c0_i32_0 = arith.constant 0 : i32
    %c0_i32_1 = arith.constant 0 : i32
    return %c0_i32, %c0_i32_0 : i32, i32
  }
  func.func @transform_13(%arg0: i32) -> (i32, i32) {
    %c0_i32 = arith.constant 0 : i32
    %c0_i32_0 = arith.constant 0 : i32
    %c0_i32_1 = arith.constant 0 : i32
    return %c0_i32, %c0_i32_0 : i32, i32
  }
  func.func @transform_14(%arg0: i32) -> (i32, i32) {
    %c0_i32 = arith.constant 0 : i32
    %c0_i32_0 = arith.constant 0 : i32
    %c0_i32_1 = arith.constant 0 : i32
    return %c0_i32, %c0_i32_0 : i32, i32
  }
  func.func @transform_15(%arg0: i32) -> (i32, i32) {
    %c0_i32 = arith.constant 0 : i32
    %c0_i32_0 = arith.constant 0 : i32
    %c0_i32_1 = arith.constant 0 : i32
    return %c0_i32, %c0_i32_0 : i32, i32
  }
  func.func @transform_16(%arg0: i32) -> (i32, i32) {
    %c0_i32 = arith.constant 0 : i32
    %c0_i32_0 = arith.constant 0 : i32
    %c0_i32_1 = arith.constant 0 : i32
    return %c0_i32, %c0_i32_0 : i32, i32
  }
  func.func @transform_17(%arg0: i32) -> (i32, i32) {
    %c0_i32 = arith.constant 0 : i32
    %c0_i32_0 = arith.constant 0 : i32
    %c0_i32_1 = arith.constant 0 : i32
    return %c0_i32, %c0_i32_0 : i32, i32
  }
  func.func @transform_18(%arg0: i32) -> (i32, i32) {
    %c0_i32 = arith.constant 0 : i32
    %c0_i32_0 = arith.constant 0 : i32
    %c0_i32_1 = arith.constant 0 : i32
    return %c0_i32, %c0_i32_0 : i32, i32
  }
  func.func @transform_19(%arg0: i32) -> (i32, i32) {
    %c0_i32 = arith.constant 0 : i32
    %c0_i32_0 = arith.constant 0 : i32
    %c0_i32_1 = arith.constant 0 : i32
    return %c0_i32, %c0_i32_0 : i32, i32
  }
  func.func @transform_20(%arg0: i32) -> (i32, i32) {
    %c0_i32 = arith.constant 0 : i32
    %c0_i32_0 = arith.constant 0 : i32
    %c0_i32_1 = arith.constant 0 : i32
    return %c0_i32, %c0_i32_0 : i32, i32
  }
}

</mosaic_0001>

<llo_original>
// kernel: _lambda_.1
$region0: #{_lambda_.1}
  #allocation0 [shape = 'u32[]', space=smem, size = 0x4, offset = 0x4, fixed_abs, tag = 'smem constant byte address 0x4 - core index']
  #allocation1 [shape = 'u32[144,128]{1,0:T(1,128)}', space=vmem, size = 0x12000, scoped, tag = 'internal scratch']
  %s0 = inlined_call_operand.vmem [shape: bf16[36,512], index: 0, kind: input, shape index: {}]
  %s1 = inlined_call_operand.vmem [shape: bf16[32,36], index: 1, kind: input, shape index: {}]
  %s2 = inlined_call_operand.vmem [shape: f32[32,1], index: 2, kind: input, shape index: {}]
  %s3 = inlined_call_operand.vmem [shape: f32[32,1], index: 3, kind: input, shape index: {}]
  %s4 = inlined_call_operand.vmem [shape: f32[32,1], index: 4, kind: input, shape index: {}]
  %s5 = inlined_call_operand.vmem [shape: bf16[512,1152], index: 5, kind: input, shape index: {}]
  %s6 = inlined_call_operand.vmem [shape: bf16[288,32], index: 6, kind: input, shape index: {}]
  %s7 = inlined_call_operand.vmem [shape: f32[32,1], index: 7, kind: input, shape index: {}]
  %s8 = inlined_call_operand.vmem [shape: f32[32,1], index: 8, kind: input, shape index: {}]
  %s9 = inlined_call_operand.vmem [shape: f32[32,1], index: 9, kind: input, shape index: {}]
  %s10 = inlined_call_operand.vmem [shape: bf16[128,1152], index: 10, kind: input, shape index: {}]
  %s11 = inlined_call_operand.vmem [shape: bf16[288,32], index: 11, kind: input, shape index: {}]
  %s12 = inlined_call_operand.vmem [shape: f32[32,1], index: 12, kind: input, shape index: {}]
  %s13 = inlined_call_operand.vmem [shape: f32[32,1], index: 13, kind: input, shape index: {}]
  %s14 = inlined_call_operand.vmem [shape: f32[32,1], index: 14, kind: input, shape index: {}]
  %s15 = inlined_call_operand.vmem [shape: bf16[128,2], index: 15, kind: input, shape index: {}]
  %s16 = inlined_call_operand.vmem [shape: bf16[128,32], index: 16, kind: input, shape index: {}]
  %s17 = inlined_call_operand.vmem [shape: f32[32,1], index: 17, kind: input, shape index: {}]
  %s18 = inlined_call_operand.vmem [shape: f32[32,1], index: 18, kind: input, shape index: {}]
  %s19 = inlined_call_operand.vmem [shape: f32[32,1], index: 19, kind: input, shape index: {}]
  %s20 = inlined_call_operand.vmem [shape: f32[32,2], index: 20, kind: output, shape index: {}]
  %s21 = sld [smem:[#allocation0]]
  $region90: #{_lambda_.1} parent=0
    _
  %s23 = ssub.s32 1, %s21
  %s24 = scalar_select 0, %s23, %s21
  // Predicated region
  $region2: #{_lambda_.1} parent=0 // pred_check
    _
  $region3: #{_lambda_.1} parent=0 // pred_check_branch
    %26 = sbr.rel (0) target = $region5
  $region4: #{_lambda_.1} parent=0 // pred_region
    _
  $region5: #{_lambda_.1} parent=0 // pred_fallthru
    _
  // Predicated region
  $region6: #{_lambda_.1} parent=0 // pred_check
    _
  $region7: #{_lambda_.1} parent=0 // pred_check_branch
    %28 = sbr.rel (0) target = $region9
  $region8: #{_lambda_.1} parent=0 // pred_region
    _
  $region9: #{_lambda_.1} parent=0 // pred_fallthru
    _
  // Predicated region
  $region10: #{_lambda_.1} parent=0 // pred_check
    _
  $region11: #{_lambda_.1} parent=0 // pred_check_branch
    %30 = sbr.rel (0) target = $region13
  $region12: #{_lambda_.1} parent=0 // pred_region
    _
  $region13: #{_lambda_.1} parent=0 // pred_fallthru
    _
  // Predicated region
  $region14: #{_lambda_.1} parent=0 // pred_check
    _
  $region15: #{_lambda_.1} parent=0 // pred_check_branch
    %32 = sbr.rel (0) target = $region17
  $region16: #{_lambda_.1} parent=0 // pred_region
    _
  $region17: #{_lambda_.1} parent=0 // pred_fallthru
    _
  // Predicated region
  $region18: #{_lambda_.1} parent=0 // pred_check
    _
  $region19: #{_lambda_.1} parent=0 // pred_check_branch
    %34 = sbr.rel (0) target = $region21
  $region20: #{_lambda_.1} parent=0 // pred_region
    _
  $region21: #{_lambda_.1} parent=0 // pred_fallthru
    _
  // Predicated region
  $region22: #{_lambda_.1} parent=0 // pred_check
    _
  $region23: #{_lambda_.1} parent=0 // pred_check_branch
    %36 = sbr.rel (0) target = $region25
  $region24: #{_lambda_.1} parent=0 // pred_region
    _
  $region25: #{_lambda_.1} parent=0 // pred_fallthru
    _
  // Predicated region
  $region26: #{_lambda_.1} parent=0 // pred_check
    _
  $region27: #{_lambda_.1} parent=0 // pred_check_branch
    %38 = sbr.rel (0) target = $region29
  $region28: #{_lambda_.1} parent=0 // pred_region
    _
  $region29: #{_lambda_.1} parent=0 // pred_fallthru
    _
  // Predicated region
  $region30: #{_lambda_.1} parent=0 // pred_check
    _
  $region31: #{_lambda_.1} parent=0 // pred_check_branch
    %40 = sbr.rel (0) target = $region33
  $region32: #{_lambda_.1} parent=0 // pred_region
    _
  $region33: #{_lambda_.1} parent=0 // pred_fallthru
    _
  // Predicated region
  $region34: #{_lambda_.1} parent=0 // pred_check
    _
  $region35: #{_lambda_.1} parent=0 // pred_check_branch
    %42 = sbr.rel (0) target = $region37
  $region36: #{_lambda_.1} parent=0 // pred_region
    _
  $region37: #{_lambda_.1} parent=0 // pred_fallthru
    _
  // Predicated region
  $region38: #{_lambda_.1} parent=0 // pred_check
    _
  $region39: #{_lambda_.1} parent=0 // pred_check_branch
    %44 = sbr.rel (0) target = $region41
  $region40: #{_lambda_.1} parent=0 // pred_region
    _
  $region41: #{_lambda_.1} parent=0 // pred_fallthru
    _
  // Predicated region
  $region42: #{_lambda_.1} parent=0 // pred_check
    _
  $region43: #{_lambda_.1} parent=0 // pred_check_branch
    %46 = sbr.rel (0) target = $region45
  $region44: #{_lambda_.1} parent=0 // pred_region
    _
  $region45: #{_lambda_.1} parent=0 // pred_fallthru
    _
  // Predicated region
  $region46: #{_lambda_.1} parent=0 // pred_check
    _
  $region47: #{_lambda_.1} parent=0 // pred_check_branch
    %48 = sbr.rel (0) target = $region49
  $region48: #{_lambda_.1} parent=0 // pred_region
    _
  $region49: #{_lambda_.1} parent=0 // pred_fallthru
    _
  // Predicated region
  $region50: #{_lambda_.1} parent=0 // pred_check
    _
  $region51: #{_lambda_.1} parent=0 // pred_check_branch
    %50 = sbr.rel (0) target = $region53
  $region52: #{_lambda_.1} parent=0 // pred_region
    _
  $region53: #{_lambda_.1} parent=0 // pred_fallthru
    _
  // Predicated region
  $region54: #{_lambda_.1} parent=0 // pred_check
    _
  $region55: #{_lambda_.1} parent=0 // pred_check_branch
    %52 = sbr.rel (0) target = $region57
  $region56: #{_lambda_.1} parent=0 // pred_region
    _
  $region57: #{_lambda_.1} parent=0 // pred_fallthru
    _
  // Predicated region
  $region58: #{_lambda_.1} parent=0 // pred_check
    _
  $region59: #{_lambda_.1} parent=0 // pred_check_branch
    %54 = sbr.rel (0) target = $region61
  $region60: #{_lambda_.1} parent=0 // pred_region
    _
  $region61: #{_lambda_.1} parent=0 // pred_fallthru
    _
  // Predicated region
  $region62: #{_lambda_.1} parent=0 // pred_check
    _
  $region63: #{_lambda_.1} parent=0 // pred_check_branch
    %56 = sbr.rel (0) target = $region65
  $region64: #{_lambda_.1} parent=0 // pred_region
    _
  $region65: #{_lambda_.1} parent=0 // pred_fallthru
    _
  // Predicated region
  $region66: #{_lambda_.1} parent=0 // pred_check
    _
  $region67: #{_lambda_.1} parent=0 // pred_check_branch
    %58 = sbr.rel (0) target = $region69
  $region68: #{_lambda_.1} parent=0 // pred_region
    _
  $region69: #{_lambda_.1} parent=0 // pred_fallthru
    _
  // Predicated region
  $region70: #{_lambda_.1} parent=0 // pred_check
    _
  $region71: #{_lambda_.1} parent=0 // pred_check_branch
    %60 = sbr.rel (0) target = $region73
  $region72: #{_lambda_.1} parent=0 // pred_region
    _
  $region73: #{_lambda_.1} parent=0 // pred_fallthru
    _
  // Predicated region
  $region74: #{_lambda_.1} parent=0 // pred_check
    _
  $region75: #{_lambda_.1} parent=0 // pred_check_branch
    %62 = sbr.rel (0) target = $region77
  $region76: #{_lambda_.1} parent=0 // pred_region
    _
  $region77: #{_lambda_.1} parent=0 // pred_fallthru
    _
  // Predicated region
  $region78: #{_lambda_.1} parent=0 // pred_check
    _
  $region79: #{_lambda_.1} parent=0 // pred_check_branch
    %64 = sbr.rel (0) target = $region81
  $region80: #{_lambda_.1} parent=0 // pred_region
    _
  $region81: #{_lambda_.1} parent=0 // pred_fallthru
    _
  %v66 = vld [vmem:[%s1] sm:$0xf]
  %v67 = vld [vmem:[%s1 + $0x4] sm:$0xf]
  %v68 = vld [vmem:[%s1 + $0x8] sm:$0xf]
  %v69 = vld [vmem:[%s1 + $0xc] sm:$0xf]
  %v70 = vld [vmem:[%s0] sm:$0xff]
  %v71 = vld [vmem:[%s0 + $0x8] sm:$0xff]
  %v72 = vld [vmem:[%s0 + $0x10] sm:$0xff]
  %v73 = vld [vmem:[%s0 + $0x18] sm:$0xff]
  %v74 = vld [vmem:[%s0 + $0x20] sm:$0xff]
  %v75 = vld [vmem:[%s0 + $0x28] sm:$0xff]
  %v76 = vld [vmem:[%s0 + $0x30] sm:$0xff]
  %v77 = vld [vmem:[%s0 + $0x38] sm:$0xff]
  %v78 = vld [vmem:[%s0 + $0x40] sm:$0x33]
  %v79 = vld [vmem:[%s0 + $0x48] sm:$0x33]
  %v80 = vld [vmem:[%s2] sm:$0xff]
  %v81 = vld [vmem:[%s2 + $0x8] sm:$0xff]
  %v82 = vld [vmem:[%s2 + $0x10] sm:$0xff]
  %v83 = vld [vmem:[%s2 + $0x18] sm:$0xff]
  %85 = vset.pattern.permute.xlu0 0
  %86 = vperm.xlu0 %85, %v80
  %v87 = vpop.permute.xlu0 %86
  %90 = vset.pattern.permute.xlu0 0
  %91 = vperm.xlu0 %90, %v81
  %v92 = vpop.permute.xlu0 %91
  %95 = vset.pattern.permute.xlu0 0
  %96 = vperm.xlu0 %95, %v82
  %v97 = vpop.permute.xlu0 %96
  %100 = vset.pattern.permute.xlu0 0
  %101 = vperm.xlu0 %100, %v83
  %v102 = vpop.permute.xlu0 %101
  %v108 = vunpack.c.l.b16 %v66
  %v109 = vunpack.c.l.b16 %v67
  %v110 = vunpack.c.l.b16 %v68
  %v111 = vunpack.c.l.b16 %v69
  %v112 = vpack.c.b16 %v109, %v108
  %v113 = vpack.c.b16 %v111, %v110
  %v124 = vunpack.c.l.b16 %v70
  %v125 = vunpack.c.h.b16 %v70
  %v126 = vunpack.c.l.b16 %v71
  %v127 = vunpack.c.h.b16 %v71
  %v128 = vunpack.c.l.b16 %v72
  %v129 = vunpack.c.h.b16 %v72
  %v130 = vunpack.c.l.b16 %v73
  %v131 = vunpack.c.h.b16 %v73
  %v132 = vunpack.c.l.b16 %v74
  %v133 = vunpack.c.h.b16 %v74
  %v134 = vunpack.c.l.b16 %v75
  %v135 = vunpack.c.h.b16 %v75
  %v136 = vunpack.c.l.b16 %v76
  %v137 = vunpack.c.h.b16 %v76
  %v138 = vunpack.c.l.b16 %v77
  %v139 = vunpack.c.h.b16 %v77
  %v140 = vunpack.c.l.b16 %v78
  %v141 = vunpack.c.h.b16 %v78
  %v142 = vunpack.c.l.b16 %v79
  %v143 = vunpack.c.h.b16 %v79
  %v144 = vpack.c.b16 %v128, %v124
  %v145 = vpack.c.b16 %v129, %v125
  %v146 = vpack.c.b16 %v130, %v126
  %v147 = vpack.c.b16 %v131, %v127
  %v148 = vpack.c.b16 %v136, %v132
  %v149 = vpack.c.b16 %v137, %v133
  %v150 = vpack.c.b16 %v138, %v134
  %v151 = vpack.c.b16 %v139, %v135
  %v152 = vpack.c.b16 %v140, %v140
  %v153 = vpack.c.b16 %v141, %v141
  %v154 = vpack.c.b16 %v142, %v142
  %v155 = vpack.c.b16 %v143, %v143
  %vm164 = vcmask 293888
  %v166 = vsel %vm164, %v112, 0
  %v169 = vsel %vm164, %v113, 0
  %vm171 = vcmask 1041408
  %v173 = vsel %vm171, %v152, 0
  %v176 = vsel %vm171, %v153, 0
  %v179 = vsel %vm171, %v154, 0
  %v182 = vsel %vm171, %v155, 0
  %184 = vmatprep.subr.bf16.mxu0 %v145
  %185 = vmatpush1.bf16.msra.mxu0 %v144
  %186 = vmatprep.subr.bf16.mxu0 %v149
  %187 = vmatpush1.bf16.msra.mxu0 %v148
  %188 = vmatprep.subr.bf16.mxu0 %v176
  %189 = vmatpush1.bf16.msra.mxu0 %v173
  %190 = vmatprep.subr.bf16.mxu0 0
  %191 = vmatpush1.bf16.msra.mxu0 0
  %192 = vmatprep.subr.bf16.mxu0 0
  %193 = vmatpush1.bf16.msra.mxu0 0
  %194 = vmatprep.subr.bf16.mxu0 0
  %195 = vmatpush1.bf16.msra.mxu0 0
  %196 = vmatprep.subr.bf16.mxu0 0
  %197 = vmatpush1.bf16.msra.mxu0 0
  %198 = vmatprep.subr.bf16.mxu0 0
  %199 = vmatpush1.bf16.msra.mxu0 0
  %200 = vmatprep.subr.bf16.mxu0 0
  %201 = vmatpush1.bf16.msra.mxu0 0
  %202 = vmatprep.subr.bf16.mxu0 0
  %203 = vmatpush1.bf16.msra.mxu0 0
  %204 = vmatprep.subr.bf16.mxu0 0
  %205 = vmatpush1.bf16.msra.mxu0 0
  %206 = vmatprep.subr.bf16.mxu0 0
  %207 = vmatpush1.bf16.msra.mxu0 0
  %208 = vmatprep.subr.bf16.mxu0 0
  %209 = vmatpush1.bf16.msra.mxu0 0
  %210 = vmatprep.subr.bf16.mxu0 0
  %211 = vmatpush1.bf16.msra.mxu0 0
  %212 = vmatprep.subr.bf16.mxu0 0
  %213 = vmatpush1.bf16.msra.mxu0 0
  %214 = vmatprep.subr.bf16.mxu0 0
  %215 = vmatpush1.bf16.msra.mxu0 0
  %216 = vmatprep.mubr.bf16.mxu0 0
  %217 = vmatmul.mubr.bf16.gmra.mrb[0].mxu0 %v166
  %v218 = vpop.f32.mrb[0].mxu0
  %v219 = vadd.f32 %v87, %v218
  %v220 = vpop.f32.mrb[0].mxu0
  %v221 = vadd.f32 %v87, %v220
  %v222 = vpop.f32.mrb[0].mxu0
  %v223 = vadd.f32 %v92, %v222
  %v224 = vpop.f32.mrb[0].mxu0
  %v225 = vadd.f32 %v92, %v224
  %226 = vmatprep.mubr.bf16.mxu0 0
  %227 = vmatmul.mubr.bf16.gmra.mrb[0].mxu0 %v169
  %v228 = vpop.f32.mrb[0].mxu0
  %v229 = vadd.f32 %v97, %v228
  %v230 = vpop.f32.mrb[0].mxu0
  %v231 = vadd.f32 %v97, %v230
  %v232 = vpop.f32.mrb[0].mxu0
  %v233 = vadd.f32 %v102, %v232
  %v234 = vpop.f32.mrb[0].mxu0
  %v235 = vadd.f32 %v102, %v234
  %236 = vdwg.mxu0
  %237 = vmatprep.subr.bf16.mxu0 %v147
  %238 = vmatpush1.bf16.msra.mxu0 %v146
  %239 = vmatprep.subr.bf16.mxu0 %v151
  %240 = vmatpush1.bf16.msra.mxu0 %v150
  %241 = vmatprep.subr.bf16.mxu0 %v182
  %242 = vmatpush1.bf16.msra.mxu0 %v179
  %243 = vmatprep.subr.bf16.mxu0 0
  %244 = vmatpush1.bf16.msra.mxu0 0
  %245 = vmatprep.subr.bf16.mxu0 0
  %246 = vmatpush1.bf16.msra.mxu0 0
  %247 = vmatprep.subr.bf16.mxu0 0
  %248 = vmatpush1.bf16.msra.mxu0 0
  %249 = vmatprep.subr.bf16.mxu0 0
  %250 = vmatpush1.bf16.msra.mxu0 0
  %251 = vmatprep.subr.bf16.mxu0 0
  %252 = vmatpush1.bf16.msra.mxu0 0
  %253 = vmatprep.subr.bf16.mxu0 0
  %254 = vmatpush1.bf16.msra.mxu0 0
  %255 = vmatprep.subr.bf16.mxu0 0
  %256 = vmatpush1.bf16.msra.mxu0 0
  %257 = vmatprep.subr.bf16.mxu0 0
  %258 = vmatpush1.bf16.msra.mxu0 0
  %259 = vmatprep.subr.bf16.mxu0 0
  %260 = vmatpush1.bf16.msra.mxu0 0
  %261 = vmatprep.subr.bf16.mxu0 0
  %262 = vmatpush1.bf16.msra.mxu0 0
  %263 = vmatprep.subr.bf16.mxu0 0
  %264 = vmatpush1.bf16.msra.mxu0 0
  %265 = vmatprep.subr.bf16.mxu0 0
  %266 = vmatpush1.bf16.msra.mxu0 0
  %267 = vmatprep.subr.bf16.mxu0 0
  %268 = vmatpush1.bf16.msra.mxu0 0
  %269 = vmatprep.mubr.bf16.mxu0 0
  %270 = vmatmul.mubr.bf16.gmra.mrb[0].mxu0 %v166
  %v271 = vpop.f32.mrb[0].mxu0
  %v272 = vadd.f32 %v87, %v271
  %v273 = vpop.f32.mrb[0].mxu0
  %v274 = vadd.f32 %v87, %v273
  %v275 = vpop.f32.mrb[0].mxu0
  %v276 = vadd.f32 %v92, %v275
  %v277 = vpop.f32.mrb[0].mxu0
  %v278 = vadd.f32 %v92, %v277
  %279 = vmatprep.mubr.bf16.mxu0 0
  %280 = vmatmul.mubr.bf16.gmra.mrb[0].mxu0 %v169
  %v281 = vpop.f32.mrb[0].mxu0
  %v282 = vadd.f32 %v97, %v281
  %v283 = vpop.f32.mrb[0].mxu0
  %v284 = vadd.f32 %v97, %v283
  %v285 = vpop.f32.mrb[0].mxu0
  %v286 = vadd.f32 %v102, %v285
  %v287 = vpop.f32.mrb[0].mxu0
  %v288 = vadd.f32 %v102, %v287
  %289 = vdwg.mxu0
  %v290 = vadd.f32 %v219, %v221
  %v291 = vadd.f32 %v290, %v272
  %v292 = vadd.f32 %v291, %v274
  %293 = vadd.xlane.f32.xlu0 %v292
  %v294 = vpop.xlane.xlu0 %293
  %v295 = vadd.f32 %v223, %v225
  %v296 = vadd.f32 %v295, %v276
  %v297 = vadd.f32 %v296, %v278
  %298 = vadd.xlane.f32.xlu0 %v297
  %v299 = vpop.xlane.xlu0 %298
  %v300 = vadd.f32 %v229, %v231
  %v301 = vadd.f32 %v300, %v282
  %v302 = vadd.f32 %v301, %v284
  %303 = vadd.xlane.f32.xlu0 %v302
  %v304 = vpop.xlane.xlu0 %303
  %v305 = vadd.f32 %v233, %v235
  %v306 = vadd.f32 %v305, %v286
  %v307 = vadd.f32 %v306, %v288
  %308 = vadd.xlane.f32.xlu0 %v307
  %v309 = vpop.xlane.xlu0 %308
  %v310 = vrcp.pop 512.0
  %v311 = vmul.f32 %v294, %v310
  %v312 = vmul.f32 %v299, %v310
  %v313 = vmul.f32 %v304, %v310
  %v314 = vmul.f32 %v309, %v310
  %v315 = vsub.f32 %v219, %v311
  %v316 = vsub.f32 %v221, %v311
  %v317 = vsub.f32 %v272, %v311
  %v318 = vsub.f32 %v274, %v311
  %v319 = vsub.f32 %v223, %v312
  %v320 = vsub.f32 %v225, %v312
  %v321 = vsub.f32 %v276, %v312
  %v322 = vsub.f32 %v278, %v312
  %v323 = vsub.f32 %v229, %v313
  %v324 = vsub.f32 %v231, %v313
  %v325 = vsub.f32 %v282, %v313
  %v326 = vsub.f32 %v284, %v313
  %v327 = vsub.f32 %v233, %v314
  %v328 = vsub.f32 %v235, %v314
  %v329 = vsub.f32 %v286, %v314
  %v330 = vsub.f32 %v288, %v314
  %v331 = vmul.f32 %v315, %v315
  %v332 = vmul.f32 %v316, %v316
  %v333 = vmul.f32 %v317, %v317
  %v334 = vmul.f32 %v318, %v318
  %v335 = vmul.f32 %v319, %v319
  %v336 = vmul.f32 %v320, %v320
  %v337 = vmul.f32 %v321, %v321
  %v338 = vmul.f32 %v322, %v322
  %v339 = vmul.f32 %v323, %v323
  %v340 = vmul.f32 %v324, %v324
  %v341 = vmul.f32 %v325, %v325
  %v342 = vmul.f32 %v326, %v326
  %v343 = vmul.f32 %v327, %v327
  %v344 = vmul.f32 %v328, %v328
  %v345 = vmul.f32 %v329, %v329
  %v346 = vmul.f32 %v330, %v330
  %v347 = vadd.f32 %v331, %v332
  %v348 = vadd.f32 %v347, %v333
  %v349 = vadd.f32 %v348, %v334
  %350 = vadd.xlane.f32.xlu0 %v349
  %v351 = vpop.xlane.xlu0 %350
  %v352 = vadd.f32 %v335, %v336
  %v353 = vadd.f32 %v352, %v337
  %v354 = vadd.f32 %v353, %v338
  %355 = vadd.xlane.f32.xlu0 %v354
  %v356 = vpop.xlane.xlu0 %355
  %v357 = vadd.f32 %v339, %v340
  %v358 = vadd.f32 %v357, %v341
  %v359 = vadd.f32 %v358, %v342
  %360 = vadd.xlane.f32.xlu0 %v359
  %v361 = vpop.xlane.xlu0 %360
  %v362 = vadd.f32 %v343, %v344
  %v363 = vadd.f32 %v362, %v345
  %v364 = vadd.f32 %v363, %v346
  %365 = vadd.xlane.f32.xlu0 %v364
  %v366 = vpop.xlane.xlu0 %365
  %v367 = vmul.f32 %v351, %v310
  %v368 = vmul.f32 %v356, %v310
  %v369 = vmul.f32 %v361, %v310
  %v370 = vmul.f32 %v366, %v310
  %v371 = vld [vmem:[%s3] sm:$0xff]
  %v372 = vld [vmem:[%s3 + $0x8] sm:$0xff]
  %v373 = vld [vmem:[%s3 + $0x10] sm:$0xff]
  %v374 = vld [vmem:[%s3 + $0x18] sm:$0xff]
  %v375 = vadd.f32 %v367, 1e-05
  %v376 = vadd.f32 %v368, 1e-05
  %v377 = vadd.f32 %v369, 1e-05
  %v378 = vadd.f32 %v370, 1e-05
  %v379 = vrsqrt.pop %v375
  %v380 = vrsqrt.pop %v376
  %v381 = vrsqrt.pop %v377
  %v382 = vrsqrt.pop %v378
  %v383 = vmul.f32 %v371, %v379
  %v384 = vmul.f32 %v372, %v380
  %v385 = vmul.f32 %v373, %v381
  %v386 = vmul.f32 %v374, %v382
  %v387 = vld [vmem:[%s4] sm:$0xff]
  %v388 = vld [vmem:[%s4 + $0x8] sm:$0xff]
  %v389 = vld [vmem:[%s4 + $0x10] sm:$0xff]
  %v390 = vld [vmem:[%s4 + $0x18] sm:$0xff]
  %v391 = vmul.f32 %v311, %v383
  %v392 = vmul.f32 %v312, %v384
  %v393 = vmul.f32 %v313, %v385
  %v394 = vmul.f32 %v314, %v386
  %v395 = vsub.f32 %v387, %v391
  %v396 = vsub.f32 %v388, %v392
  %v397 = vsub.f32 %v389, %v393
  %v398 = vsub.f32 %v390, %v394
  %400 = vset.pattern.permute.xlu0 0
  %401 = vperm.xlu0 %400, %v383
  %v402 = vpop.permute.xlu0 %401
  %405 = vset.pattern.permute.xlu0 0
  %406 = vperm.xlu0 %405, %v384
  %v407 = vpop.permute.xlu0 %406
  %410 = vset.pattern.permute.xlu0 0
  %411 = vperm.xlu0 %410, %v385
  %v412 = vpop.permute.xlu0 %411
  %415 = vset.pattern.permute.xlu0 0
  %416 = vperm.xlu0 %415, %v386
  %v417 = vpop.permute.xlu0 %416
  %v419 = vmul.f32 %v219, %v402
  %v420 = vmul.f32 %v221, %v402
  %v421 = vmul.f32 %v272, %v402
  %v422 = vmul.f32 %v274, %v402
  %v423 = vmul.f32 %v223, %v407
  %v424 = vmul.f32 %v225, %v407
  %v425 = vmul.f32 %v276, %v407
  %v426 = vmul.f32 %v278, %v407
  %v427 = vmul.f32 %v229, %v412
  %v428 = vmul.f32 %v231, %v412
  %v429 = vmul.f32 %v282, %v412
  %v430 = vmul.f32 %v284, %v412
  %v431 = vmul.f32 %v233, %v417
  %v432 = vmul.f32 %v235, %v417
  %v433 = vmul.f32 %v286, %v417
  %v434 = vmul.f32 %v288, %v417
  %436 = vset.pattern.permute.xlu0 0
  %437 = vperm.xlu0 %436, %v395
  %v438 = vpop.permute.xlu0 %437
  %441 = vset.pattern.permute.xlu0 0
  %442 = vperm.xlu0 %441, %v396
  %v443 = vpop.permute.xlu0 %442
  %446 = vset.pattern.permute.xlu0 0
  %447 = vperm.xlu0 %446, %v397
  %v448 = vpop.permute.xlu0 %447
  %451 = vset.pattern.permute.xlu0 0
  %452 = vperm.xlu0 %451, %v398
  %v453 = vpop.permute.xlu0 %452
  %v455 = vadd.f32 %v419, %v438
  %v456 = vadd.f32 %v420, %v438
  %v457 = vadd.f32 %v421, %v438
  %v458 = vadd.f32 %v422, %v438
  %v459 = vadd.f32 %v423, %v443
  %v460 = vadd.f32 %v424, %v443
  %v461 = vadd.f32 %v425, %v443
  %v462 = vadd.f32 %v426, %v443
  %v463 = vadd.f32 %v427, %v448
  %v464 = vadd.f32 %v428, %v448
  %v465 = vadd.f32 %v429, %v448
  %v466 = vadd.f32 %v430, %v448
  %v467 = vadd.f32 %v431, %v453
  %v468 = vadd.f32 %v432, %v453
  %v469 = vadd.f32 %v433, %v453
  %v470 = vadd.f32 %v434, %v453
  %v471 = vmax.f32 %v455, 0.0
  %v472 = vmax.f32 %v456, 0.0
  %v473 = vmax.f32 %v457, 0.0
  %v474 = vmax.f32 %v458, 0.0
  %v475 = vmax.f32 %v459, 0.0
  %v476 = vmax.f32 %v460, 0.0
  %v477 = vmax.f32 %v461, 0.0
  %v478 = vmax.f32 %v462, 0.0
  %v479 = vmax.f32 %v463, 0.0
  %v480 = vmax.f32 %v464, 0.0
  %v481 = vmax.f32 %v465, 0.0
  %v482 = vmax.f32 %v466, 0.0
  %v483 = vmax.f32 %v467, 0.0
  %v484 = vmax.f32 %v468, 0.0
  %v485 = vmax.f32 %v469, 0.0
  %v486 = vmax.f32 %v470, 0.0
  %v487 = vpack.c.bf16 %v475, %v471
  %v488 = vpack.c.bf16 %v476, %v472
  %v489 = vpack.c.bf16 %v477, %v473
  %v490 = vpack.c.bf16 %v478, %v474
  %v491 = vpack.c.bf16 %v483, %v479
  %v492 = vpack.c.bf16 %v484, %v480
  %v493 = vpack.c.bf16 %v485, %v481
  %v494 = vpack.c.bf16 %v486, %v482
  %v495 = vld [vmem:[%s5] sm:$0xff]
  %v496 = vld [vmem:[%s5 + $0x8] sm:$0xff]
  %v497 = vld [vmem:[%s5 + $0x10] sm:$0xff]
  %v498 = vld [vmem:[%s5 + $0x18] sm:$0xff]
  %v499 = vld [vmem:[%s5 + $0x20] sm:$0xf]
  %v500 = vld [vmem:[%s5 + $0x24] sm:$0xff]
  %v501 = vld [vmem:[%s5 + $0x2c] sm:$0xff]
  %v502 = vld [vmem:[%s5 + $0x34] sm:$0xff]
  %v503 = vld [vmem:[%s5 + $0x3c] sm:$0xff]
  %v504 = vld [vmem:[%s5 + $0x44] sm:$0xf]
  %v505 = vld [vmem:[%s5 + $0x48] sm:$0xff]
  %v506 = vld [vmem:[%s5 + $0x50] sm:$0xff]
  %v507 = vld [vmem:[%s5 + $0x58] sm:$0xff]
  %v508 = vld [vmem:[%s5 + $0x60] sm:$0xff]
  %v509 = vld [vmem:[%s5 + $0x68] sm:$0xf]
  %v510 = vld [vmem:[%s5 + $0x6c] sm:$0xff]
  %v511 = vld [vmem:[%s5 + $0x74] sm:$0xff]
  %v512 = vld [vmem:[%s5 + $0x7c] sm:$0xff]
  %v513 = vld [vmem:[%s5 + $0x84] sm:$0xff]
  %v514 = vld [vmem:[%s5 + $0x8c] sm:$0xf]
  %v515 = vld [vmem:[%s5 + $0x90] sm:$0xff]
  %v516 = vld [vmem:[%s5 + $0x98] sm:$0xff]
  %v517 = vld [vmem:[%s5 + $0xa0] sm:$0xff]
  %v518 = vld [vmem:[%s5 + $0xa8] sm:$0xff]
  %v519 = vld [vmem:[%s5 + $0xb0] sm:$0xf]
  %v520 = vld [vmem:[%s5 + $0xb4] sm:$0xff]
  %v521 = vld [vmem:[%s5 + $0xbc] sm:$0xff]
  %v522 = vld [vmem:[%s5 + $0xc4] sm:$0xff]
  %v523 = vld [vmem:[%s5 + $0xcc] sm:$0xff]
  %v524 = vld [vmem:[%s5 + $0xd4] sm:$0xf]
  %v525 = vld [vmem:[%s5 + $0xd8] sm:$0xff]
  %v526 = vld [vmem:[%s5 + $0xe0] sm:$0xff]
  %v527 = vld [vmem:[%s5 + $0xe8] sm:$0xff]
  %v528 = vld [vmem:[%s5 + $0xf0] sm:$0xff]
  %v529 = vld [vmem:[%s5 + $0xf8] sm:$0xf]
  %v530 = vld [vmem:[%s5 + $0xfc] sm:$0xff]
  %v531 = vld [vmem:[%s5 + $0x104] sm:$0xff]
  %v532 = vld [vmem:[%s5 + $0x10c] sm:$0xff]
  %v533 = vld [vmem:[%s5 + $0x114] sm:$0xff]
  %v534 = vld [vmem:[%s5 + $0x11c] sm:$0xf]
  %v535 = vld [vmem:[%s5 + $0x120] sm:$0xff]
  %v536 = vld [vmem:[%s5 + $0x128] sm:$0xff]
  %v537 = vld [vmem:[%s5 + $0x130] sm:$0xff]
  %v538 = vld [vmem:[%s5 + $0x138] sm:$0xff]
  %v539 = vld [vmem:[%s5 + $0x140] sm:$0xf]
  %v540 = vld [vmem:[%s5 + $0x144] sm:$0xff]
  %v541 = vld [vmem:[%s5 + $0x14c] sm:$0xff]
  %v542 = vld [vmem:[%s5 + $0x154] sm:$0xff]
  %v543 = vld [vmem:[%s5 + $0x15c] sm:$0xff]
  %v544 = vld [vmem:[%s5 + $0x164] sm:$0xf]
  %v545 = vld [vmem:[%s5 + $0x168] sm:$0xff]
  %v546 = vld [vmem:[%s5 + $0x170] sm:$0xff]
  %v547 = vld [vmem:[%s5 + $0x178] sm:$0xff]
  %v548 = vld [vmem:[%s5 + $0x180] sm:$0xff]
  %v549 = vld [vmem:[%s5 + $0x188] sm:$0xf]
  %v550 = vld [vmem:[%s5 + $0x18c] sm:$0xff]
  %v551 = vld [vmem:[%s5 + $0x194] sm:$0xff]
  %v552 = vld [vmem:[%s5 + $0x19c] sm:$0xff]
  %v553 = vld [vmem:[%s5 + $0x1a4] sm:$0xff]
  %v554 = vld [vmem:[%s5 + $0x1ac] sm:$0xf]
  %v555 = vld [vmem:[%s5 + $0x1b0] sm:$0xff]
  %v556 = vld [vmem:[%s5 + $0x1b8] sm:$0xff]
  %v557 = vld [vmem:[%s5 + $0x1c0] sm:$0xff]
  %v558 = vld [vmem:[%s5 + $0x1c8] sm:$0xff]
  %v559 = vld [vmem:[%s5 + $0x1d0] sm:$0xf]
  %v560 = vld [vmem:[%s5 + $0x1d4] sm:$0xff]
  %v561 = vld [vmem:[%s5 + $0x1dc] sm:$0xff]
  %v562 = vld [vmem:[%s5 + $0x1e4] sm:$0xff]
  %v563 = vld [vmem:[%s5 + $0x1ec] sm:$0xff]
  %v564 = vld [vmem:[%s5 + $0x1f4] sm:$0xf]
  %v565 = vld [vmem:[%s5 + $0x1f8] sm:$0xff]
  %v566 = vld [vmem:[%s5 + $0x200] sm:$0xff]
  %v567 = vld [vmem:[%s5 + $0x208] sm:$0xff]
  %v568 = vld [vmem:[%s5 + $0x210] sm:$0xff]
  %v569 = vld [vmem:[%s5 + $0x218] sm:$0xf]
  %v570 = vld [vmem:[%s5 + $0x21c] sm:$0xff]
  %v571 = vld [vmem:[%s5 + $0x224] sm:$0xff]
  %v572 = vld [vmem:[%s5 + $0x22c] sm:$0xff]
  %v573 = vld [vmem:[%s5 + $0x234] sm:$0xff]
  %v574 = vld [vmem:[%s5 + $0x23c] sm:$0xf]
  %v575 = vld [vmem:[%s5 + $0x240] sm:$0xff]
  %v576 = vld [vmem:[%s5 + $0x248] sm:$0xff]
  %v577 = vld [vmem:[%s5 + $0x250] sm:$0xff]
  %v578 = vld [vmem:[%s5 + $0x258] sm:$0xff]
  %v579 = vld [vmem:[%s5 + $0x260] sm:$0xf]
  %v580 = vld [vmem:[%s5 + $0x264] sm:$0xff]
  %v581 = vld [vmem:[%s5 + $0x26c] sm:$0xff]
  %v582 = vld [vmem:[%s5 + $0x274] sm:$0xff]
  %v583 = vld [vmem:[%s5 + $0x27c] sm:$0xff]
  %v584 = vld [vmem:[%s5 + $0x284] sm:$0xf]
  %v585 = vld [vmem:[%s5 + $0x288] sm:$0xff]
  %v586 = vld [vmem:[%s5 + $0x290] sm:$0xff]
  %v587 = vld [vmem:[%s5 + $0x298] sm:$0xff]
  %v588 = vld [vmem:[%s5 + $0x2a0] sm:$0xff]
  %v589 = vld [vmem:[%s5 + $0x2a8] sm:$0xf]
  %v590 = vld [vmem:[%s5 + $0x2ac] sm:$0xff]
  %v591 = vld [vmem:[%s5 + $0x2b4] sm:$0xff]
  %v592 = vld [vmem:[%s5 + $0x2bc] sm:$0xff]
  %v593 = vld [vmem:[%s5 + $0x2c4] sm:$0xff]
  %v594 = vld [vmem:[%s5 + $0x2cc] sm:$0xf]
  %v595 = vld [vmem:[%s5 + $0x2d0] sm:$0xff]
  %v596 = vld [vmem:[%s5 + $0x2d8] sm:$0xff]
  %v597 = vld [vmem:[%s5 + $0x2e0] sm:$0xff]
  %v598 = vld [vmem:[%s5 + $0x2e8] sm:$0xff]
  %v599 = vld [vmem:[%s5 + $0x2f0] sm:$0xf]
  %v600 = vld [vmem:[%s5 + $0x2f4] sm:$0xff]
  %v601 = vld [vmem:[%s5 + $0x2fc] sm:$0xff]
  %v602 = vld [vmem:[%s5 + $0x304] sm:$0xff]
  %v603 = vld [vmem:[%s5 + $0x30c] sm:$0xff]
  %v604 = vld [vmem:[%s5 + $0x314] sm:$0xf]
  %v605 = vld [vmem:[%s5 + $0x318] sm:$0xff]
  %v606 = vld [vmem:[%s5 + $0x320] sm:$0xff]
  %v607 = vld [vmem:[%s5 + $0x328] sm:$0xff]
  %v608 = vld [vmem:[%s5 + $0x330] sm:$0xff]
  %v609 = vld [vmem:[%s5 + $0x338] sm:$0xf]
  %v610 = vld [vmem:[%s5 + $0x33c] sm:$0xff]
  %v611 = vld [vmem:[%s5 + $0x344] sm:$0xff]
  %v612 = vld [vmem:[%s5 + $0x34c] sm:$0xff]
  %v613 = vld [vmem:[%s5 + $0x354] sm:$0xff]
  %v614 = vld [vmem:[%s5 + $0x35c] sm:$0xf]
  %v615 = vld [vmem:[%s5 + $0x360] sm:$0xff]
  %v616 = vld [vmem:[%s5 + $0x368] sm:$0xff]
  %v617 = vld [vmem:[%s5 + $0x370] sm:$0xff]
  %v618 = vld [vmem:[%s5 + $0x378] sm:$0xff]
  %v619 = vld [vmem:[%s5 + $0x380] sm:$0xf]
  %v620 = vld [vmem:[%s5 + $0x384] sm:$0xff]
  %v621 = vld [vmem:[%s5 + $0x38c] sm:$0xff]
  %v622 = vld [vmem:[%s5 + $0x394] sm:$0xff]
  %v623 = vld [vmem:[%s5 + $0x39c] sm:$0xff]
  %v624 = vld [vmem:[%s5 + $0x3a4] sm:$0xf]
  %v625 = vld [vmem:[%s5 + $0x3a8] sm:$0xff]
  %v626 = vld [vmem:[%s5 + $0x3b0] sm:$0xff]
  %v627 = vld [vmem:[%s5 + $0x3b8] sm:$0xff]
  %v628 = vld [vmem:[%s5 + $0x3c0] sm:$0xff]
  %v629 = vld [vmem:[%s5 + $0x3c8] sm:$0xf]
  %v630 = vld [vmem:[%s5 + $0x3cc] sm:$0xff]
  %v631 = vld [vmem:[%s5 + $0x3d4] sm:$0xff]
  %v632 = vld [vmem:[%s5 + $0x3dc] sm:$0xff]
  %v633 = vld [vmem:[%s5 + $0x3e4] sm:$0xff]
  %v634 = vld [vmem:[%s5 + $0x3ec] sm:$0xf]
  %v635 = vld [vmem:[%s5 + $0x3f0] sm:$0xff]
  %v636 = vld [vmem:[%s5 + $0x3f8] sm:$0xff]
  %v637 = vld [vmem:[%s5 + $0x400] sm:$0xff]
  %v638 = vld [vmem:[%s5 + $0x408] sm:$0xff]
  %v639 = vld [vmem:[%s5 + $0x410] sm:$0xf]
  %v640 = vld [vmem:[%s5 + $0x414] sm:$0xff]
  %v641 = vld [vmem:[%s5 + $0x41c] sm:$0xff]
  %v642 = vld [vmem:[%s5 + $0x424] sm:$0xff]
  %v643 = vld [vmem:[%s5 + $0x42c] sm:$0xff]
  %v644 = vld [vmem:[%s5 + $0x434] sm:$0xf]
  %v645 = vld [vmem:[%s5 + $0x438] sm:$0xff]
  %v646 = vld [vmem:[%s5 + $0x440] sm:$0xff]
  %v647 = vld [vmem:[%s5 + $0x448] sm:$0xff]
  %v648 = vld [vmem:[%s5 + $0x450] sm:$0xff]
  %v649 = vld [vmem:[%s5 + $0x458] sm:$0xf]
  %v650 = vld [vmem:[%s5 + $0x45c] sm:$0xff]
  %v651 = vld [vmem:[%s5 + $0x464] sm:$0xff]
  %v652 = vld [vmem:[%s5 + $0x46c] sm:$0xff]
  %v653 = vld [vmem:[%s5 + $0x474] sm:$0xff]
  %v654 = vld [vmem:[%s5 + $0x47c] sm:$0xf]
  %v655 = vld [vmem:[%s5 + $0x480] sm:$0xff]
  %v656 = vld [vmem:[%s5 + $0x488] sm:$0xff]
  %v657 = vld [vmem:[%s5 + $0x490] sm:$0xff]
  %v658 = vld [vmem:[%s5 + $0x498] sm:$0xff]
  %v659 = vld [vmem:[%s5 + $0x4a0] sm:$0xf]
  %v660 = vld [vmem:[%s5 + $0x4a4] sm:$0xff]
  %v661 = vld [vmem:[%s5 + $0x4ac] sm:$0xff]
  %v662 = vld [vmem:[%s5 + $0x4b4] sm:$0xff]
  %v663 = vld [vmem:[%s5 + $0x4bc] sm:$0xff]
  %v664 = vld [vmem:[%s5 + $0x4c4] sm:$0xf]
  %v665 = vld [vmem:[%s5 + $0x4c8] sm:$0xff]
  %v666 = vld [vmem:[%s5 + $0x4d0] sm:$0xff]
  %v667 = vld [vmem:[%s5 + $0x4d8] sm:$0xff]
  %v668 = vld [vmem:[%s5 + $0x4e0] sm:$0xff]
  %v669 = vld [vmem:[%s5 + $0x4e8] sm:$0xf]
  %v670 = vld [vmem:[%s5 + $0x4ec] sm:$0xff]
  %v671 = vld [vmem:[%s5 + $0x4f4] sm:$0xff]
  %v672 = vld [vmem:[%s5 + $0x4fc] sm:$0xff]
  %v673 = vld [vmem:[%s5 + $0x504] sm:$0xff]
  %v674 = vld [vmem:[%s5 + $0x50c] sm:$0xf]
  %v675 = vld [vmem:[%s5 + $0x510] sm:$0xff]
  %v676 = vld [vmem:[%s5 + $0x518] sm:$0xff]
  %v677 = vld [vmem:[%s5 + $0x520] sm:$0xff]
  %v678 = vld [vmem:[%s5 + $0x528] sm:$0xff]
  %v679 = vld [vmem:[%s5 + $0x530] sm:$0xf]
  %v680 = vld [vmem:[%s5 + $0x534] sm:$0xff]
  %v681 = vld [vmem:[%s5 + $0x53c] sm:$0xff]
  %v682 = vld [vmem:[%s5 + $0x544] sm:$0xff]
  %v683 = vld [vmem:[%s5 + $0x54c] sm:$0xff]
  %v684 = vld [vmem:[%s5 + $0x554] sm:$0xf]
  %v685 = vld [vmem:[%s5 + $0x558] sm:$0xff]
  %v686 = vld [vmem:[%s5 + $0x560] sm:$0xff]
  %v687 = vld [vmem:[%s5 + $0x568] sm:$0xff]
  %v688 = vld [vmem:[%s5 + $0x570] sm:$0xff]
  %v689 = vld [vmem:[%s5 + $0x578] sm:$0xf]
  %v690 = vld [vmem:[%s5 + $0x57c] sm:$0xff]
  %v691 = vld [vmem:[%s5 + $0x584] sm:$0xff]
  %v692 = vld [vmem:[%s5 + $0x58c] sm:$0xff]
  %v693 = vld [vmem:[%s5 + $0x594] sm:$0xff]
  %v694 = vld [vmem:[%s5 + $0x59c] sm:$0xf]
  %v695 = vld [vmem:[%s5 + $0x5a0] sm:$0xff]
  %v696 = vld [vmem:[%s5 + $0x5a8] sm:$0xff]
  %v697 = vld [vmem:[%s5 + $0x5b0] sm:$0xff]
  %v698 = vld [vmem:[%s5 + $0x5b8] sm:$0xff]
  %v699 = vld [vmem:[%s5 + $0x5c0] sm:$0xf]
  %v700 = vld [vmem:[%s5 + $0x5c4] sm:$0xff]
  %v701 = vld [vmem:[%s5 + $0x5cc] sm:$0xff]
  %v702 = vld [vmem:[%s5 + $0x5d4] sm:$0xff]
  %v703 = vld [vmem:[%s5 + $0x5dc] sm:$0xff]
  %v704 = vld [vmem:[%s5 + $0x5e4] sm:$0xf]
  %v705 = vld [vmem:[%s5 + $0x5e8] sm:$0xff]
  %v706 = vld [vmem:[%s5 + $0x5f0] sm:$0xff]
  %v707 = vld [vmem:[%s5 + $0x5f8] sm:$0xff]
  %v708 = vld [vmem:[%s5 + $0x600] sm:$0xff]
  %v709 = vld [vmem:[%s5 + $0x608] sm:$0xf]
  %v710 = vld [vmem:[%s5 + $0x60c] sm:$0xff]
  %v711 = vld [vmem:[%s5 + $0x614] sm:$0xff]
  %v712 = vld [vmem:[%s5 + $0x61c] sm:$0xff]
  %v713 = vld [vmem:[%s5 + $0x624] sm:$0xff]
  %v714 = vld [vmem:[%s5 + $0x62c] sm:$0xf]
  %v715 = vld [vmem:[%s5 + $0x630] sm:$0xff]
  %v716 = vld [vmem:[%s5 + $0x638] sm:$0xff]
  %v717 = vld [vmem:[%s5 + $0x640] sm:$0xff]
  %v718 = vld [vmem:[%s5 + $0x648] sm:$0xff]
  %v719 = vld [vmem:[%s5 + $0x650] sm:$0xf]
  %v720 = vld [vmem:[%s5 + $0x654] sm:$0xff]
  %v721 = vld [vmem:[%s5 + $0x65c] sm:$0xff]
  %v722 = vld [vmem:[%s5 + $0x664] sm:$0xff]
  %v723 = vld [vmem:[%s5 + $0x66c] sm:$0xff]
  %v724 = vld [vmem:[%s5 + $0x674] sm:$0xf]
  %v725 = vld [vmem:[%s5 + $0x678] sm:$0xff]
  %v726 = vld [vmem:[%s5 + $0x680] sm:$0xff]
  %v727 = vld [vmem:[%s5 + $0x688] sm:$0xff]
  %v728 = vld [vmem:[%s5 + $0x690] sm:$0xff]
  %v729 = vld [vmem:[%s5 + $0x698] sm:$0xf]
  %v730 = vld [vmem:[%s5 + $0x69c] sm:$0xff]
  %v731 = vld [vmem:[%s5 + $0x6a4] sm:$0xff]
  %v732 = vld [vmem:[%s5 + $0x6ac] sm:$0xff]
  %v733 = vld [vmem:[%s5 + $0x6b4] sm:$0xff]
  %v734 = vld [vmem:[%s5 + $0x6bc] sm:$0xf]
  %v735 = vld [vmem:[%s5 + $0x6c0] sm:$0xff]
  %v736 = vld [vmem:[%s5 + $0x6c8] sm:$0xff]
  %v737 = vld [vmem:[%s5 + $0x6d0] sm:$0xff]
  %v738 = vld [vmem:[%s5 + $0x6d8] sm:$0xff]
  %v739 = vld [vmem:[%s5 + $0x6e0] sm:$0xf]
  %v740 = vld [vmem:[%s5 + $0x6e4] sm:$0xff]
  %v741 = vld [vmem:[%s5 + $0x6ec] sm:$0xff]
  %v742 = vld [vmem:[%s5 + $0x6f4] sm:$0xff]
  %v743 = vld [vmem:[%s5 + $0x6fc] sm:$0xff]
  %v744 = vld [vmem:[%s5 + $0x704] sm:$0xf]
  %v745 = vld [vmem:[%s5 + $0x708] sm:$0xff]
  %v746 = vld [vmem:[%s5 + $0x710] sm:$0xff]
  %v747 = vld [vmem:[%s5 + $0x718] sm:$0xff]
  %v748 = vld [vmem:[%s5 + $0x720] sm:$0xff]
  %v749 = vld [vmem:[%s5 + $0x728] sm:$0xf]
  %v750 = vld [vmem:[%s5 + $0x72c] sm:$0xff]
  %v751 = vld [vmem:[%s5 + $0x734] sm:$0xff]
  %v752 = vld [vmem:[%s5 + $0x73c] sm:$0xff]
  %v753 = vld [vmem:[%s5 + $0x744] sm:$0xff]
  %v754 = vld [vmem:[%s5 + $0x74c] sm:$0xf]
  %v755 = vld [vmem:[%s5 + $0x750] sm:$0xff]
  %v756 = vld [vmem:[%s5 + $0x758] sm:$0xff]
  %v757 = vld [vmem:[%s5 + $0x760] sm:$0xff]
  %v758 = vld [vmem:[%s5 + $0x768] sm:$0xff]
  %v759 = vld [vmem:[%s5 + $0x770] sm:$0xf]
  %v760 = vld [vmem:[%s5 + $0x774] sm:$0xff]
  %v761 = vld [vmem:[%s5 + $0x77c] sm:$0xff]
  %v762 = vld [vmem:[%s5 + $0x784] sm:$0xff]
  %v763 = vld [vmem:[%s5 + $0x78c] sm:$0xff]
  %v764 = vld [vmem:[%s5 + $0x794] sm:$0xf]
  %v765 = vld [vmem:[%s5 + $0x798] sm:$0xff]
  %v766 = vld [vmem:[%s5 + $0x7a0] sm:$0xff]
  %v767 = vld [vmem:[%s5 + $0x7a8] sm:$0xff]
  %v768 = vld [vmem:[%s5 + $0x7b0] sm:$0xff]
  %v769 = vld [vmem:[%s5 + $0x7b8] sm:$0xf]
  %v770 = vld [vmem:[%s5 + $0x7bc] sm:$0xff]
  %v771 = vld [vmem:[%s5 + $0x7c4] sm:$0xff]
  %v772 = vld [vmem:[%s5 + $0x7cc] sm:$0xff]
  %v773 = vld [vmem:[%s5 + $0x7d4] sm:$0xff]
  %v774 = vld [vmem:[%s5 + $0x7dc] sm:$0xf]
  %v775 = vld [vmem:[%s5 + $0x7e0] sm:$0xff]
  %v776 = vld [vmem:[%s5 + $0x7e8] sm:$0xff]
  %v777 = vld [vmem:[%s5 + $0x7f0] sm:$0xff]
  %v778 = vld [vmem:[%s5 + $0x7f8] sm:$0xff]
  %v779 = vld [vmem:[%s5 + $0x800] sm:$0xf]
  %v780 = vld [vmem:[%s5 + $0x804] sm:$0xff]
  %v781 = vld [vmem:[%s5 + $0x80c] sm:$0xff]
  %v782 = vld [vmem:[%s5 + $0x814] sm:$0xff]
  %v783 = vld [vmem:[%s5 + $0x81c] sm:$0xff]
  %v784 = vld [vmem:[%s5 + $0x824] sm:$0xf]
  %v785 = vld [vmem:[%s5 + $0x828] sm:$0xff]
  %v786 = vld [vmem:[%s5 + $0x830] sm:$0xff]
  %v787 = vld [vmem:[%s5 + $0x838] sm:$0xff]
  %v788 = vld [vmem:[%s5 + $0x840] sm:$0xff]
  %v789 = vld [vmem:[%s5 + $0x848] sm:$0xf]
  %v790 = vld [vmem:[%s5 + $0x84c] sm:$0xff]
  %v791 = vld [vmem:[%s5 + $0x854] sm:$0xff]
  %v792 = vld [vmem:[%s5 + $0x85c] sm:$0xff]
  %v793 = vld [vmem:[%s5 + $0x864] sm:$0xff]
  %v794 = vld [vmem:[%s5 + $0x86c] sm:$0xf]
  %v795 = vld [vmem:[%s5 + $0x870] sm:$0xff]
  %v796 = vld [vmem:[%s5 + $0x878] sm:$0xff]
  %v797 = vld [vmem:[%s5 + $0x880] sm:$0xff]
  %v798 = vld [vmem:[%s5 + $0x888] sm:$0xff]
  %v799 = vld [vmem:[%s5 + $0x890] sm:$0xf]
  %v800 = vld [vmem:[%s5 + $0x894] sm:$0xff]
  %v801 = vld [vmem:[%s5 + $0x89c] sm:$0xff]
  %v802 = vld [vmem:[%s5 + $0x8a4] sm:$0xff]
  %v803 = vld [vmem:[%s5 + $0x8ac] sm:$0xff]
  %v804 = vld [vmem:[%s5 + $0x8b4] sm:$0xf]
  %v805 = vld [vmem:[%s5 + $0x8b8] sm:$0xff]
  %v806 = vld [vmem:[%s5 + $0x8c0] sm:$0xff]
  %v807 = vld [vmem:[%s5 + $0x8c8] sm:$0xff]
  %v808 = vld [vmem:[%s5 + $0x8d0] sm:$0xff]
  %v809 = vld [vmem:[%s5 + $0x8d8] sm:$0xf]
  %v810 = vld [vmem:[%s5 + $0x8dc] sm:$0xff]
  %v811 = vld [vmem:[%s5 + $0x8e4] sm:$0xff]
  %v812 = vld [vmem:[%s5 + $0x8ec] sm:$0xff]
  %v813 = vld [vmem:[%s5 + $0x8f4] sm:$0xff]
  %v814 = vld [vmem:[%s5 + $0x8fc] sm:$0xf]
  %v1135 = vunpack.c.l.b16 %v495
  %v1136 = vunpack.c.h.b16 %v495
  %v1137 = vunpack.c.l.b16 %v496
  %v1138 = vunpack.c.h.b16 %v496
  %v1139 = vunpack.c.l.b16 %v497
  %v1140 = vunpack.c.h.b16 %v497
  %v1141 = vunpack.c.l.b16 %v498
  %v1142 = vunpack.c.h.b16 %v498
  %v1143 = vunpack.c.l.b16 %v499
  %v1144 = vunpack.c.l.b16 %v500
  %v1145 = vunpack.c.h.b16 %v500
  %v1146 = vunpack.c.l.b16 %v501
  %v1147 = vunpack.c.h.b16 %v501
  %v1148 = vunpack.c.l.b16 %v502
  %v1149 = vunpack.c.h.b16 %v502
  %v1150 = vunpack.c.l.b16 %v503
  %v1151 = vunpack.c.h.b16 %v503
  %v1152 = vunpack.c.l.b16 %v504
  %v1153 = vunpack.c.l.b16 %v505
  %v1154 = vunpack.c.h.b16 %v505
  %v1155 = vunpack.c.l.b16 %v506
  %v1156 = vunpack.c.h.b16 %v506
  %v1157 = vunpack.c.l.b16 %v507
  %v1158 = vunpack.c.h.b16 %v507
  %v1159 = vunpack.c.l.b16 %v508
  %v1160 = vunpack.c.h.b16 %v508
  %v1161 = vunpack.c.l.b16 %v509
  %v1162 = vunpack.c.l.b16 %v510
  %v1163 = vunpack.c.h.b16 %v510
  %v1164 = vunpack.c.l.b16 %v511
  %v1165 = vunpack.c.h.b16 %v511
  %v1166 = vunpack.c.l.b16 %v512
  %v1167 = vunpack.c.h.b16 %v512
  %v1168 = vunpack.c.l.b16 %v513
  %v1169 = vunpack.c.h.b16 %v513
  %v1170 = vunpack.c.l.b16 %v514
  %v1171 = vunpack.c.l.b16 %v515
  %v1172 = vunpack.c.h.b16 %v515
  %v1173 = vunpack.c.l.b16 %v516
  %v1174 = vunpack.c.h.b16 %v516
  %v1175 = vunpack.c.l.b16 %v517
  %v1176 = vunpack.c.h.b16 %v517
  %v1177 = vunpack.c.l.b16 %v518
  %v1178 = vunpack.c.h.b16 %v518
  %v1179 = vunpack.c.l.b16 %v519
  %v1180 = vunpack.c.l.b16 %v520
  %v1181 = vunpack.c.h.b16 %v520
  %v1182 = vunpack.c.l.b16 %v521
  %v1183 = vunpack.c.h.b16 %v521
  %v1184 = vunpack.c.l.b16 %v522
  %v1185 = vunpack.c.h.b16 %v522
  %v1186 = vunpack.c.l.b16 %v523
  %v1187 = vunpack.c.h.b16 %v523
  %v1188 = vunpack.c.l.b16 %v524
  %v1189 = vunpack.c.l.b16 %v525
  %v1190 = vunpack.c.h.b16 %v525
  %v1191 = vunpack.c.l.b16 %v526
  %v1192 = vunpack.c.h.b16 %v526
  %v1193 = vunpack.c.l.b16 %v527
  %v1194 = vunpack.c.h.b16 %v527
  %v1195 = vunpack.c.l.b16 %v528
  %v1196 = vunpack.c.h.b16 %v528
  %v1197 = vunpack.c.l.b16 %v529
  %v1198 = vunpack.c.l.b16 %v530
  %v1199 = vunpack.c.h.b16 %v530
  %v1200 = vunpack.c.l.b16 %v531
  %v1201 = vunpack.c.h.b16 %v531
  %v1202 = vunpack.c.l.b16 %v532
  %v1203 = vunpack.c.h.b16 %v532
  %v1204 = vunpack.c.l.b16 %v533
  %v1205 = vunpack.c.h.b16 %v533
  %v1206 = vunpack.c.l.b16 %v534
  %v1207 = vunpack.c.l.b16 %v535
  %v1208 = vunpack.c.h.b16 %v535
  %v1209 = vunpack.c.l.b16 %v536
  %v1210 = vunpack.c.h.b16 %v536
  %v1211 = vunpack.c.l.b16 %v537
  %v1212 = vunpack.c.h.b16 %v537
  %v1213 = vunpack.c.l.b16 %v538
  %v1214 = vunpack.c.h.b16 %v538
  %v1215 = vunpack.c.l.b16 %v539
  %v1216 = vunpack.c.l.b16 %v540
  %v1217 = vunpack.c.h.b16 %v540
  %v1218 = vunpack.c.l.b16 %v541
  %v1219 = vunpack.c.h.b16 %v541
  %v1220 = vunpack.c.l.b16 %v542
  %v1221 = vunpack.c.h.b16 %v542
  %v1222 = vunpack.c.l.b16 %v543
  %v1223 = vunpack.c.h.b16 %v543
  %v1224 = vunpack.c.l.b16 %v544
  %v1225 = vunpack.c.l.b16 %v545
  %v1226 = vunpack.c.h.b16 %v545
  %v1227 = vunpack.c.l.b16 %v546
  %v1228 = vunpack.c.h.b16 %v546
  %v1229 = vunpack.c.l.b16 %v547
  %v1230 = vunpack.c.h.b16 %v547
  %v1231 = vunpack.c.l.b16 %v548
  %v1232 = vunpack.c.h.b16 %v548
  %v1233 = vunpack.c.l.b16 %v549
  %v1234 = vunpack.c.l.b16 %v550
  %v1235 = vunpack.c.h.b16 %v550
  %v1236 = vunpack.c.l.b16 %v551
  %v1237 = vunpack.c.h.b16 %v551
  %v1238 = vunpack.c.l.b16 %v552
  %v1239 = vunpack.c.h.b16 %v552
  %v1240 = vunpack.c.l.b16 %v553
  %v1241 = vunpack.c.h.b16 %v553
  %v1242 = vunpack.c.l.b16 %v554
  %v1243 = vunpack.c.l.b16 %v555
  %v1244 = vunpack.c.h.b16 %v555
  %v1245 = vunpack.c.l.b16 %v556
  %v1246 = vunpack.c.h.b16 %v556
  %v1247 = vunpack.c.l.b16 %v557
  %v1248 = vunpack.c.h.b16 %v557
  %v1249 = vunpack.c.l.b16 %v558
  %v1250 = vunpack.c.h.b16 %v558
  %v1251 = vunpack.c.l.b16 %v559
  %v1252 = vunpack.c.l.b16 %v560
  %v1253 = vunpack.c.h.b16 %v560
  %v1254 = vunpack.c.l.b16 %v561
  %v1255 = vunpack.c.h.b16 %v561
  %v1256 = vunpack.c.l.b16 %v562
  %v1257 = vunpack.c.h.b16 %v562
  %v1258 = vunpack.c.l.b16 %v563
  %v1259 = vunpack.c.h.b16 %v563
  %v1260 = vunpack.c.l.b16 %v564
  %v1261 = vunpack.c.l.b16 %v565
  %v1262 = vunpack.c.h.b16 %v565
  %v1263 = vunpack.c.l.b16 %v566
  %v1264 = vunpack.c.h.b16 %v566
  %v1265 = vunpack.c.l.b16 %v567
  %v1266 = vunpack.c.h.b16 %v567
  %v1267 = vunpack.c.l.b16 %v568
  %v1268 = vunpack.c.h.b16 %v568
  %v1269 = vunpack.c.l.b16 %v569
  %v1270 = vunpack.c.l.b16 %v570
  %v1271 = vunpack.c.h.b16 %v570
  %v1272 = vunpack.c.l.b16 %v571
  %v1273 = vunpack.c.h.b16 %v571
  %v1274 = vunpack.c.l.b16 %v572
  %v1275 = vunpack.c.h.b16 %v572
  %v1276 = vunpack.c.l.b16 %v573
  %v1277 = vunpack.c.h.b16 %v573
  %v1278 = vunpack.c.l.b16 %v574
  %v1279 = vunpack.c.l.b16 %v575
  %v1280 = vunpack.c.h.b16 %v575
  %v1281 = vunpack.c.l.b16 %v576
  %v1282 = vunpack.c.h.b16 %v576
  %v1283 = vunpack.c.l.b16 %v577
  %v1284 = vunpack.c.h.b16 %v577
  %v1285 = vunpack.c.l.b16 %v578
  %v1286 = vunpack.c.h.b16 %v578
  %v1287 = vunpack.c.l.b16 %v579
  %v1288 = vunpack.c.l.b16 %v580
  %v1289 = vunpack.c.h.b16 %v580
  %v1290 = vunpack.c.l.b16 %v581
  %v1291 = vunpack.c.h.b16 %v581
  %v1292 = vunpack.c.l.b16 %v582
  %v1293 = vunpack.c.h.b16 %v582
  %v1294 = vunpack.c.l.b16 %v583
  %v1295 = vunpack.c.h.b16 %v583
  %v1296 = vunpack.c.l.b16 %v584
  %v1297 = vunpack.c.l.b16 %v585
  %v1298 = vunpack.c.h.b16 %v585
  %v1299 = vunpack.c.l.b16 %v586
  %v1300 = vunpack.c.h.b16 %v586
  %v1301 = vunpack.c.l.b16 %v587
  %v1302 = vunpack.c.h.b16 %v587
  %v1303 = vunpack.c.l.b16 %v588
  %v1304 = vunpack.c.h.b16 %v588
  %v1305 = vunpack.c.l.b16 %v589
  %v1306 = vunpack.c.l.b16 %v590
  %v1307 = vunpack.c.h.b16 %v590
  %v1308 = vunpack.c.l.b16 %v591
  %v1309 = vunpack.c.h.b16 %v591
  %v1310 = vunpack.c.l.b16 %v592
  %v1311 = vunpack.c.h.b16 %v592
  %v1312 = vunpack.c.l.b16 %v593
  %v1313 = vunpack.c.h.b16 %v593
  %v1314 = vunpack.c.l.b16 %v594
  %v1315 = vunpack.c.l.b16 %v595
  %v1316 = vunpack.c.h.b16 %v595
  %v1317 = vunpack.c.l.b16 %v596
  %v1318 = vunpack.c.h.b16 %v596
  %v1319 = vunpack.c.l.b16 %v597
  %v1320 = vunpack.c.h.b16 %v597
  %v1321 = vunpack.c.l.b16 %v598
  %v1322 = vunpack.c.h.b16 %v598
  %v1323 = vunpack.c.l.b16 %v599
  %v1324 = vunpack.c.l.b16 %v600
  %v1325 = vunpack.c.h.b16 %v600
  %v1326 = vunpack.c.l.b16 %v601
  %v1327 = vunpack.c.h.b16 %v601
  %v1328 = vunpack.c.l.b16 %v602
  %v1329 = vunpack.c.h.b16 %v602
  %v1330 = vunpack.c.l.b16 %v603
  %v1331 = vunpack.c.h.b16 %v603
  %v1332 = vunpack.c.l.b16 %v604
  %v1333 = vunpack.c.l.b16 %v605
  %v1334 = vunpack.c.h.b16 %v605
  %v1335 = vunpack.c.l.b16 %v606
  %v1336 = vunpack.c.h.b16 %v606
  %v1337 = vunpack.c.l.b16 %v607
  %v1338 = vunpack.c.h.b16 %v607
  %v1339 = vunpack.c.l.b16 %v608
  %v1340 = vunpack.c.h.b16 %v608
  %v1341 = vunpack.c.l.b16 %v609
  %v1342 = vunpack.c.l.b16 %v610
  %v1343 = vunpack.c.h.b16 %v610
  %v1344 = vunpack.c.l.b16 %v611
  %v1345 = vunpack.c.h.b16 %v611
  %v1346 = vunpack.c.l.b16 %v612
  %v1347 = vunpack.c.h.b16 %v612
  %v1348 = vunpack.c.l.b16 %v613
  %v1349 = vunpack.c.h.b16 %v613
  %v1350 = vunpack.c.l.b16 %v614
  %v1351 = vunpack.c.l.b16 %v615
  %v1352 = vunpack.c.h.b16 %v615
  %v1353 = vunpack.c.l.b16 %v616
  %v1354 = vunpack.c.h.b16 %v616
  %v1355 = vunpack.c.l.b16 %v617
  %v1356 = vunpack.c.h.b16 %v617
  %v1357 = vunpack.c.l.b16 %v618
  %v1358 = vunpack.c.h.b16 %v618
  %v1359 = vunpack.c.l.b16 %v619
  %v1360 = vunpack.c.l.b16 %v620
  %v1361 = vunpack.c.h.b16 %v620
  %v1362 = vunpack.c.l.b16 %v621
  %v1363 = vunpack.c.h.b16 %v621
  %v1364 = vunpack.c.l.b16 %v622
  %v1365 = vunpack.c.h.b16 %v622
  %v1366 = vunpack.c.l.b16 %v623
  %v1367 = vunpack.c.h.b16 %v623
  %v1368 = vunpack.c.l.b16 %v624
  %v1369 = vunpack.c.l.b16 %v625
  %v1370 = vunpack.c.h.b16 %v625
  %v1371 = vunpack.c.l.b16 %v626
  %v1372 = vunpack.c.h.b16 %v626
  %v1373 = vunpack.c.l.b16 %v627
  %v1374 = vunpack.c.h.b16 %v627
  %v1375 = vunpack.c.l.b16 %v628
  %v1376 = vunpack.c.h.b16 %v628
  %v1377 = vunpack.c.l.b16 %v629
  %v1378 = vunpack.c.l.b16 %v630
  %v1379 = vunpack.c.h.b16 %v630
  %v1380 = vunpack.c.l.b16 %v631
  %v1381 = vunpack.c.h.b16 %v631
  %v1382 = vunpack.c.l.b16 %v632
  %v1383 = vunpack.c.h.b16 %v632
  %v1384 = vunpack.c.l.b16 %v633
  %v1385 = vunpack.c.h.b16 %v633
  %v1386 = vunpack.c.l.b16 %v634
  %v1387 = vunpack.c.l.b16 %v635
  %v1388 = vunpack.c.h.b16 %v635
  %v1389 = vunpack.c.l.b16 %v636
  %v1390 = vunpack.c.h.b16 %v636
  %v1391 = vunpack.c.l.b16 %v637
  %v1392 = vunpack.c.h.b16 %v637
  %v1393 = vunpack.c.l.b16 %v638
  %v1394 = vunpack.c.h.b16 %v638
  %v1395 = vunpack.c.l.b16 %v639
  %v1396 = vunpack.c.l.b16 %v640
  %v1397 = vunpack.c.h.b16 %v640
  %v1398 = vunpack.c.l.b16 %v641
  %v1399 = vunpack.c.h.b16 %v641
  %v1400 = vunpack.c.l.b16 %v642
  %v1401 = vunpack.c.h.b16 %v642
  %v1402 = vunpack.c.l.b16 %v643
  %v1403 = vunpack.c.h.b16 %v643
  %v1404 = vunpack.c.l.b16 %v644
  %v1405 = vunpack.c.l.b16 %v645
  %v1406 = vunpack.c.h.b16 %v645
  %v1407 = vunpack.c.l.b16 %v646
  %v1408 = vunpack.c.h.b16 %v646
  %v1409 = vunpack.c.l.b16 %v647
  %v1410 = vunpack.c.h.b16 %v647
  %v1411 = vunpack.c.l.b16 %v648
  %v1412 = vunpack.c.h.b16 %v648
  %v1413 = vunpack.c.l.b16 %v649
  %v1414 = vunpack.c.l.b16 %v650
  %v1415 = vunpack.c.h.b16 %v650
  %v1416 = vunpack.c.l.b16 %v651
  %v1417 = vunpack.c.h.b16 %v651
  %v1418 = vunpack.c.l.b16 %v652
  %v1419 = vunpack.c.h.b16 %v652
  %v1420 = vunpack.c.l.b16 %v653
  %v1421 = vunpack.c.h.b16 %v653
  %v1422 = vunpack.c.l.b16 %v654
  %v1423 = vunpack.c.l.b16 %v655
  %v1424 = vunpack.c.h.b16 %v655
  %v1425 = vunpack.c.l.b16 %v656
  %v1426 = vunpack.c.h.b16 %v656
  %v1427 = vunpack.c.l.b16 %v657
  %v1428 = vunpack.c.h.b16 %v657
  %v1429 = vunpack.c.l.b16 %v658
  %v1430 = vunpack.c.h.b16 %v658
  %v1431 = vunpack.c.l.b16 %v659
  %v1432 = vunpack.c.l.b16 %v660
  %v1433 = vunpack.c.h.b16 %v660
  %v1434 = vunpack.c.l.b16 %v661
  %v1435 = vunpack.c.h.b16 %v661
  %v1436 = vunpack.c.l.b16 %v662
  %v1437 = vunpack.c.h.b16 %v662
  %v1438 = vunpack.c.l.b16 %v663
  %v1439 = vunpack.c.h.b16 %v663
  %v1440 = vunpack.c.l.b16 %v664
  %v1441 = vunpack.c.l.b16 %v665
  %v1442 = vunpack.c.h.b16 %v665
  %v1443 = vunpack.c.l.b16 %v666
  %v1444 = vunpack.c.h.b16 %v666
  %v1445 = vunpack.c.l.b16 %v667
  %v1446 = vunpack.c.h.b16 %v667
  %v1447 = vunpack.c.l.b16 %v668
  %v1448 = vunpack.c.h.b16 %v668
  %v1449 = vunpack.c.l.b16 %v669
  %v1450 = vunpack.c.l.b16 %v670
  %v1451 = vunpack.c.h.b16 %v670
  %v1452 = vunpack.c.l.b16 %v671
  %v1453 = vunpack.c.h.b16 %v671
  %v1454 = vunpack.c.l.b16 %v672
  %v1455 = vunpack.c.h.b16 %v672
  %v1456 = vunpack.c.l.b16 %v673
  %v1457 = vunpack.c.h.b16 %v673
  %v1458 = vunpack.c.l.b16 %v674
  %v1459 = vunpack.c.l.b16 %v675
  %v1460 = vunpack.c.h.b16 %v675
  %v1461 = vunpack.c.l.b16 %v676
  %v1462 = vunpack.c.h.b16 %v676
  %v1463 = vunpack.c.l.b16 %v677
  %v1464 = vunpack.c.h.b16 %v677
  %v1465 = vunpack.c.l.b16 %v678
  %v1466 = vunpack.c.h.b16 %v678
  %v1467 = vunpack.c.l.b16 %v679
  %v1468 = vunpack.c.l.b16 %v680
  %v1469 = vunpack.c.h.b16 %v680
  %v1470 = vunpack.c.l.b16 %v681
  %v1471 = vunpack.c.h.b16 %v681
  %v1472 = vunpack.c.l.b16 %v682
  %v1473 = vunpack.c.h.b16 %v682
  %v1474 = vunpack.c.l.b16 %v683
  %v1475 = vunpack.c.h.b16 %v683
  %v1476 = vunpack.c.l.b16 %v684
  %v1477 = vunpack.c.l.b16 %v685
  %v1478 = vunpack.c.h.b16 %v685
  %v1479 = vunpack.c.l.b16 %v686
  %v1480 = vunpack.c.h.b16 %v686
  %v1481 = vunpack.c.l.b16 %v687
  %v1482 = vunpack.c.h.b16 %v687
  %v1483 = vunpack.c.l.b16 %v688
  %v1484 = vunpack.c.h.b16 %v688
  %v1485 = vunpack.c.l.b16 %v689
  %v1486 = vunpack.c.l.b16 %v690
  %v1487 = vunpack.c.h.b16 %v690
  %v1488 = vunpack.c.l.b16 %v691
  %v1489 = vunpack.c.h.b16 %v691
  %v1490 = vunpack.c.l.b16 %v692
  %v1491 = vunpack.c.h.b16 %v692
  %v1492 = vunpack.c.l.b16 %v693
  %v1493 = vunpack.c.h.b16 %v693
  %v1494 = vunpack.c.l.b16 %v694
  %v1495 = vunpack.c.l.b16 %v695
  %v1496 = vunpack.c.h.b16 %v695
  %v1497 = vunpack.c.l.b16 %v696
  %v1498 = vunpack.c.h.b16 %v696
  %v1499 = vunpack.c.l.b16 %v697
  %v1500 = vunpack.c.h.b16 %v697
  %v1501 = vunpack.c.l.b16 %v698
  %v1502 = vunpack.c.h.b16 %v698
  %v1503 = vunpack.c.l.b16 %v699
  %v1504 = vunpack.c.l.b16 %v700
  %v1505 = vunpack.c.h.b16 %v700
  %v1506 = vunpack.c.l.b16 %v701
  %v1507 = vunpack.c.h.b16 %v701
  %v1508 = vunpack.c.l.b16 %v702
  %v1509 = vunpack.c.h.b16 %v702
  %v1510 = vunpack.c.l.b16 %v703
  %v1511 = vunpack.c.h.b16 %v703
  %v1512 = vunpack.c.l.b16 %v704
  %v1513 = vunpack.c.l.b16 %v705
  %v1514 = vunpack.c.h.b16 %v705
  %v1515 = vunpack.c.l.b16 %v706
  %v1516 = vunpack.c.h.b16 %v706
  %v1517 = vunpack.c.l.b16 %v707
  %v1518 = vunpack.c.h.b16 %v707
  %v1519 = vunpack.c.l.b16 %v708
  %v1520 = vunpack.c.h.b16 %v708
  %v1521 = vunpack.c.l.b16 %v709
  %v1522 = vunpack.c.l.b16 %v710
  %v1523 = vunpack.c.h.b16 %v710
  %v1524 = vunpack.c.l.b16 %v711
  %v1525 = vunpack.c.h.b16 %v711
  %v1526 = vunpack.c.l.b16 %v712
  %v1527 = vunpack.c.h.b16 %v712
  %v1528 = vunpack.c.l.b16 %v713
  %v1529 = vunpack.c.h.b16 %v713
  %v1530 = vunpack.c.l.b16 %v714
  %v1531 = vunpack.c.l.b16 %v715
  %v1532 = vunpack.c.h.b16 %v715
  %v1533 = vunpack.c.l.b16 %v716
  %v1534 = vunpack.c.h.b16 %v716
  %v1535 = vunpack.c.l.b16 %v717
  %v1536 = vunpack.c.h.b16 %v717
  %v1537 = vunpack.c.l.b16 %v718
  %v1538 = vunpack.c.h.b16 %v718
  %v1539 = vunpack.c.l.b16 %v719
  %v1540 = vunpack.c.l.b16 %v720
  %v1541 = vunpack.c.h.b16 %v720
  %v1542 = vunpack.c.l.b16 %v721
  %v1543 = vunpack.c.h.b16 %v721
  %v1544 = vunpack.c.l.b16 %v722
  %v1545 = vunpack.c.h.b16 %v722
  %v1546 = vunpack.c.l.b16 %v723
  %v1547 = vunpack.c.h.b16 %v723
  %v1548 = vunpack.c.l.b16 %v724
  %v1549 = vunpack.c.l.b16 %v725
  %v1550 = vunpack.c.h.b16 %v725
  %v1551 = vunpack.c.l.b16 %v726
  %v1552 = vunpack.c.h.b16 %v726
  %v1553 = vunpack.c.l.b16 %v727
  %v1554 = vunpack.c.h.b16 %v727
  %v1555 = vunpack.c.l.b16 %v728
  %v1556 = vunpack.c.h.b16 %v728
  %v1557 = vunpack.c.l.b16 %v729
  %v1558 = vunpack.c.l.b16 %v730
  %v1559 = vunpack.c.h.b16 %v730
  %v1560 = vunpack.c.l.b16 %v731
  %v1561 = vunpack.c.h.b16 %v731
  %v1562 = vunpack.c.l.b16 %v732
  %v1563 = vunpack.c.h.b16 %v732
  %v1564 = vunpack.c.l.b16 %v733
  %v1565 = vunpack.c.h.b16 %v733
  %v1566 = vunpack.c.l.b16 %v734
  %v1567 = vunpack.c.l.b16 %v735
  %v1568 = vunpack.c.h.b16 %v735
  %v1569 = vunpack.c.l.b16 %v736
  %v1570 = vunpack.c.h.b16 %v736
  %v1571 = vunpack.c.l.b16 %v737
  %v1572 = vunpack.c.h.b16 %v737
  %v1573 = vunpack.c.l.b16 %v738
  %v1574 = vunpack.c.h.b16 %v738
  %v1575 = vunpack.c.l.b16 %v739
  %v1576 = vunpack.c.l.b16 %v740
  %v1577 = vunpack.c.h.b16 %v740
  %v1578 = vunpack.c.l.b16 %v741
  %v1579 = vunpack.c.h.b16 %v741
  %v1580 = vunpack.c.l.b16 %v742
  %v1581 = vunpack.c.h.b16 %v742
  %v1582 = vunpack.c.l.b16 %v743
  %v1583 = vunpack.c.h.b16 %v743
  %v1584 = vunpack.c.l.b16 %v744
  %v1585 = vunpack.c.l.b16 %v745
  %v1586 = vunpack.c.h.b16 %v745
  %v1587 = vunpack.c.l.b16 %v746
  %v1588 = vunpack.c.h.b16 %v746
  %v1589 = vunpack.c.l.b16 %v747
  %v1590 = vunpack.c.h.b16 %v747
  %v1591 = vunpack.c.l.b16 %v748
  %v1592 = vunpack.c.h.b16 %v748
  %v1593 = vunpack.c.l.b16 %v749
  %v1594 = vunpack.c.l.b16 %v750
  %v1595 = vunpack.c.h.b16 %v750
  %v1596 = vunpack.c.l.b16 %v751
  %v1597 = vunpack.c.h.b16 %v751
  %v1598 = vunpack.c.l.b16 %v752
  %v1599 = vunpack.c.h.b16 %v752
  %v1600 = vunpack.c.l.b16 %v753
  %v1601 = vunpack.c.h.b16 %v753
  %v1602 = vunpack.c.l.b16 %v754
  %v1603 = vunpack.c.l.b16 %v755
  %v1604 = vunpack.c.h.b16 %v755
  %v1605 = vunpack.c.l.b16 %v756
  %v1606 = vunpack.c.h.b16 %v756
  %v1607 = vunpack.c.l.b16 %v757
  %v1608 = vunpack.c.h.b16 %v757
  %v1609 = vunpack.c.l.b16 %v758
  %v1610 = vunpack.c.h.b16 %v758
  %v1611 = vunpack.c.l.b16 %v759
  %v1612 = vunpack.c.l.b16 %v760
  %v1613 = vunpack.c.h.b16 %v760
  %v1614 = vunpack.c.l.b16 %v761
  %v1615 = vunpack.c.h.b16 %v761
  %v1616 = vunpack.c.l.b16 %v762
  %v1617 = vunpack.c.h.b16 %v762
  %v1618 = vunpack.c.l.b16 %v763
  %v1619 = vunpack.c.h.b16 %v763
  %v1620 = vunpack.c.l.b16 %v764
  %v1621 = vunpack.c.l.b16 %v765
  %v1622 = vunpack.c.h.b16 %v765
  %v1623 = vunpack.c.l.b16 %v766
  %v1624 = vunpack.c.h.b16 %v766
  %v1625 = vunpack.c.l.b16 %v767
  %v1626 = vunpack.c.h.b16 %v767
  %v1627 = vunpack.c.l.b16 %v768
  %v1628 = vunpack.c.h.b16 %v768
  %v1629 = vunpack.c.l.b16 %v769
  %v1630 = vunpack.c.l.b16 %v770
  %v1631 = vunpack.c.h.b16 %v770
  %v1632 = vunpack.c.l.b16 %v771
  %v1633 = vunpack.c.h.b16 %v771
  %v1634 = vunpack.c.l.b16 %v772
  %v1635 = vunpack.c.h.b16 %v772
  %v1636 = vunpack.c.l.b16 %v773
  %v1637 = vunpack.c.h.b16 %v773
  %v1638 = vunpack.c.l.b16 %v774
  %v1639 = vunpack.c.l.b16 %v775
  %v1640 = vunpack.c.h.b16 %v775
  %v1641 = vunpack.c.l.b16 %v776
  %v1642 = vunpack.c.h.b16 %v776
  %v1643 = vunpack.c.l.b16 %v777
  %v1644 = vunpack.c.h.b16 %v777
  %v1645 = vunpack.c.l.b16 %v778
  %v1646 = vunpack.c.h.b16 %v778
  %v1647 = vunpack.c.l.b16 %v779
  %v1648 = vunpack.c.l.b16 %v780
  %v1649 = vunpack.c.h.b16 %v780
  %v1650 = vunpack.c.l.b16 %v781
  %v1651 = vunpack.c.h.b16 %v781
  %v1652 = vunpack.c.l.b16 %v782
  %v1653 = vunpack.c.h.b16 %v782
  %v1654 = vunpack.c.l.b16 %v783
  %v1655 = vunpack.c.h.b16 %v783
  %v1656 = vunpack.c.l.b16 %v784
  %v1657 = vunpack.c.l.b16 %v785
  %v1658 = vunpack.c.h.b16 %v785
  %v1659 = vunpack.c.l.b16 %v786
  %v1660 = vunpack.c.h.b16 %v786
  %v1661 = vunpack.c.l.b16 %v787
  %v1662 = vunpack.c.h.b16 %v787
  %v1663 = vunpack.c.l.b16 %v788
  %v1664 = vunpack.c.h.b16 %v788
  %v1665 = vunpack.c.l.b16 %v789
  %v1666 = vunpack.c.l.b16 %v790
  %v1667 = vunpack.c.h.b16 %v790
  %v1668 = vunpack.c.l.b16 %v791
  %v1669 = vunpack.c.h.b16 %v791
  %v1670 = vunpack.c.l.b16 %v792
  %v1671 = vunpack.c.h.b16 %v792
  %v1672 = vunpack.c.l.b16 %v793
  %v1673 = vunpack.c.h.b16 %v793
  %v1674 = vunpack.c.l.b16 %v794
  %v1675 = vunpack.c.l.b16 %v795
  %v1676 = vunpack.c.h.b16 %v795
  %v1677 = vunpack.c.l.b16 %v796
  %v1678 = vunpack.c.h.b16 %v796
  %v1679 = vunpack.c.l.b16 %v797
  %v1680 = vunpack.c.h.b16 %v797
  %v1681 = vunpack.c.l.b16 %v798
  %v1682 = vunpack.c.h.b16 %v798
  %v1683 = vunpack.c.l.b16 %v799
  %v1684 = vunpack.c.l.b16 %v800
  %v1685 = vunpack.c.h.b16 %v800
  %v1686 = vunpack.c.l.b16 %v801
  %v1687 = vunpack.c.h.b16 %v801
  %v1688 = vunpack.c.l.b16 %v802
  %v1689 = vunpack.c.h.b16 %v802
  %v1690 = vunpack.c.l.b16 %v803
  %v1691 = vunpack.c.h.b16 %v803
  %v1692 = vunpack.c.l.b16 %v804
  %v1693 = vunpack.c.l.b16 %v805
  %v1694 = vunpack.c.h.b16 %v805
  %v1695 = vunpack.c.l.b16 %v806
  %v1696 = vunpack.c.h.b16 %v806
  %v1697 = vunpack.c.l.b16 %v807
  %v1698 = vunpack.c.h.b16 %v807
  %v1699 = vunpack.c.l.b16 %v808
  %v1700 = vunpack.c.h.b16 %v808
  %v1701 = vunpack.c.l.b16 %v809
  %v1702 = vunpack.c.l.b16 %v810
  %v1703 = vunpack.c.h.b16 %v810
  %v1704 = vunpack.c.l.b16 %v811
  %v1705 = vunpack.c.h.b16 %v811
  %v1706 = vunpack.c.l.b16 %v812
  %v1707 = vunpack.c.h.b16 %v812
  %v1708 = vunpack.c.l.b16 %v813
  %v1709 = vunpack.c.h.b16 %v813
  %v1710 = vunpack.c.l.b16 %v814
  %v1711 = vpack.c.b16 %v1144, %v1135
  %v1712 = vpack.c.b16 %v1145, %v1136
  %v1713 = vpack.c.b16 %v1146, %v1137
  %v1714 = vpack.c.b16 %v1147, %v1138
  %v1715 = vpack.c.b16 %v1148, %v1139
  %v1716 = vpack.c.b16 %v1149, %v1140
  %v1717 = vpack.c.b16 %v1150, %v1141
  %v1718 = vpack.c.b16 %v1151, %v1142
  %v1719 = vpack.c.b16 %v1152, %v1143
  %v1720 = vpack.c.b16 %v1162, %v1153
  %v1721 = vpack.c.b16 %v1163, %v1154
  %v1722 = vpack.c.b16 %v1164, %v1155
  %v1723 = vpack.c.b16 %v1165, %v1156
  %v1724 = vpack.c.b16 %v1166, %v1157
  %v1725 = vpack.c.b16 %v1167, %v1158
  %v1726 = vpack.c.b16 %v1168, %v1159
  %v1727 = vpack.c.b16 %v1169, %v1160
  %v1728 = vpack.c.b16 %v1170, %v1161
  %v1729 = vpack.c.b16 %v1180, %v1171
  %v1730 = vpack.c.b16 %v1181, %v1172
  %v1731 = vpack.c.b16 %v1182, %v1173
  %v1732 = vpack.c.b16 %v1183, %v1174
  %v1733 = vpack.c.b16 %v1184, %v1175
  %v1734 = vpack.c.b16 %v1185, %v1176
  %v1735 = vpack.c.b16 %v1186, %v1177
  %v1736 = vpack.c.b16 %v1187, %v1178
  %v1737 = vpack.c.b16 %v1188, %v1179
  %v1738 = vpack.c.b16 %v1198, %v1189
  %v1739 = vpack.c.b16 %v1199, %v1190
  %v1740 = vpack.c.b16 %v1200, %v1191
  %v1741 = vpack.c.b16 %v1201, %v1192
  %v1742 = vpack.c.b16 %v1202, %v1193
  %v1743 = vpack.c.b16 %v1203, %v1194
  %v1744 = vpack.c.b16 %v1204, %v1195
  %v1745 = vpack.c.b16 %v1205, %v1196
  %v1746 = vpack.c.b16 %v1206, %v1197
  %v1747 = vpack.c.b16 %v1216, %v1207
  %v1748 = vpack.c.b16 %v1217, %v1208
  %v1749 = vpack.c.b16 %v1218, %v1209
  %v1750 = vpack.c.b16 %v1219, %v1210
  %v1751 = vpack.c.b16 %v1220, %v1211
  %v1752 = vpack.c.b16 %v1221, %v1212
  %v1753 = vpack.c.b16 %v1222, %v1213
  %v1754 = vpack.c.b16 %v1223, %v1214
  %v1755 = vpack.c.b16 %v1224, %v1215
  %v1756 = vpack.c.b16 %v1234, %v1225
  %v1757 = vpack.c.b16 %v1235, %v1226
  %v1758 = vpack.c.b16 %v1236, %v1227
  %v1759 = vpack.c.b16 %v1237, %v1228
  %v1760 = vpack.c.b16 %v1238, %v1229
  %v1761 = vpack.c.b16 %v1239, %v1230
  %v1762 = vpack.c.b16 %v1240, %v1231
  %v1763 = vpack.c.b16 %v1241, %v1232
  %v1764 = vpack.c.b16 %v1242, %v1233
  %v1765 = vpack.c.b16 %v1252, %v1243
  %v1766 = vpack.c.b16 %v1253, %v1244
  %v1767 = vpack.c.b16 %v1254, %v1245
  %v1768 = vpack.c.b16 %v1255, %v1246
  %v1769 = vpack.c.b16 %v1256, %v1247
  %v1770 = vpack.c.b16 %v1257, %v1248
  %v1771 = vpack.c.b16 %v1258, %v1249
  %v1772 = vpack.c.b16 %v1259, %v1250
  %v1773 = vpack.c.b16 %v1260, %v1251
  %v1774 = vpack.c.b16 %v1270, %v1261
  %v1775 = vpack.c.b16 %v1271, %v1262
  %v1776 = vpack.c.b16 %v1272, %v1263
  %v1777 = vpack.c.b16 %v1273, %v1264
  %v1778 = vpack.c.b16 %v1274, %v1265
  %v1779 = vpack.c.b16 %v1275, %v1266
  %v1780 = vpack.c.b16 %v1276, %v1267
  %v1781 = vpack.c.b16 %v1277, %v1268
  %v1782 = vpack.c.b16 %v1278, %v1269
  %v1783 = vpack.c.b16 %v1288, %v1279
  %v1784 = vpack.c.b16 %v1289, %v1280
  %v1785 = vpack.c.b16 %v1290, %v1281
  %v1786 = vpack.c.b16 %v1291, %v1282
  %v1787 = vpack.c.b16 %v1292, %v1283
  %v1788 = vpack.c.b16 %v1293, %v1284
  %v1789 = vpack.c.b16 %v1294, %v1285
  %v1790 = vpack.c.b16 %v1295, %v1286
  %v1791 = vpack.c.b16 %v1296, %v1287
  %v1792 = vpack.c.b16 %v1306, %v1297
  %v1793 = vpack.c.b16 %v1307, %v1298
  %v1794 = vpack.c.b16 %v1308, %v1299
  %v1795 = vpack.c.b16 %v1309, %v1300
  %v1796 = vpack.c.b16 %v1310, %v1301
  %v1797 = vpack.c.b16 %v1311, %v1302
  %v1798 = vpack.c.b16 %v1312, %v1303
  %v1799 = vpack.c.b16 %v1313, %v1304
  %v1800 = vpack.c.b16 %v1314, %v1305
  %v1801 = vpack.c.b16 %v1324, %v1315
  %v1802 = vpack.c.b16 %v1325, %v1316
  %v1803 = vpack.c.b16 %v1326, %v1317
  %v1804 = vpack.c.b16 %v1327, %v1318
  %v1805 = vpack.c.b16 %v1328, %v1319
  %v1806 = vpack.c.b16 %v1329, %v1320
  %v1807 = vpack.c.b16 %v1330, %v1321
  %v1808 = vpack.c.b16 %v1331, %v1322
  %v1809 = vpack.c.b16 %v1332, %v1323
  %v1810 = vpack.c.b16 %v1342, %v1333
  %v1811 = vpack.c.b16 %v1343, %v1334
  %v1812 = vpack.c.b16 %v1344, %v1335
  %v1813 = vpack.c.b16 %v1345, %v1336
  %v1814 = vpack.c.b16 %v1346, %v1337
  %v1815 = vpack.c.b16 %v1347, %v1338
  %v1816 = vpack.c.b16 %v1348, %v1339
  %v1817 = vpack.c.b16 %v1349, %v1340
  %v1818 = vpack.c.b16 %v1350, %v1341
  %v1819 = vpack.c.b16 %v1360, %v1351
  %v1820 = vpack.c.b16 %v1361, %v1352
  %v1821 = vpack.c.b16 %v1362, %v1353
  %v1822 = vpack.c.b16 %v1363, %v1354
  %v1823 = vpack.c.b16 %v1364, %v1355
  %v1824 = vpack.c.b16 %v1365, %v1356
  %v1825 = vpack.c.b16 %v1366, %v1357
  %v1826 = vpack.c.b16 %v1367, %v1358
  %v1827 = vpack.c.b16 %v1368, %v1359
  %v1828 = vpack.c.b16 %v1378, %v1369
  %v1829 = vpack.c.b16 %v1379, %v1370
  %v1830 = vpack.c.b16 %v1380, %v1371
  %v1831 = vpack.c.b16 %v1381, %v1372
  %v1832 = vpack.c.b16 %v1382, %v1373
  %v1833 = vpack.c.b16 %v1383, %v1374
  %v1834 = vpack.c.b16 %v1384, %v1375
  %v1835 = vpack.c.b16 %v1385, %v1376
  %v1836 = vpack.c.b16 %v1386, %v1377
  %v1837 = vpack.c.b16 %v1396, %v1387
  %v1838 = vpack.c.b16 %v1397, %v1388
  %v1839 = vpack.c.b16 %v1398, %v1389
  %v1840 = vpack.c.b16 %v1399, %v1390
  %v1841 = vpack.c.b16 %v1400, %v1391
  %v1842 = vpack.c.b16 %v1401, %v1392
  %v1843 = vpack.c.b16 %v1402, %v1393
  %v1844 = vpack.c.b16 %v1403, %v1394
  %v1845 = vpack.c.b16 %v1404, %v1395
  %v1846 = vpack.c.b16 %v1414, %v1405
  %v1847 = vpack.c.b16 %v1415, %v1406
  %v1848 = vpack.c.b16 %v1416, %v1407
  %v1849 = vpack.c.b16 %v1417, %v1408
  %v1850 = vpack.c.b16 %v1418, %v1409
  %v1851 = vpack.c.b16 %v1419, %v1410
  %v1852 = vpack.c.b16 %v1420, %v1411
  %v1853 = vpack.c.b16 %v1421, %v1412
  %v1854 = vpack.c.b16 %v1422, %v1413
  %v1855 = vpack.c.b16 %v1432, %v1423
  %v1856 = vpack.c.b16 %v1433, %v1424
  %v1857 = vpack.c.b16 %v1434, %v1425
  %v1858 = vpack.c.b16 %v1435, %v1426
  %v1859 = vpack.c.b16 %v1436, %v1427
  %v1860 = vpack.c.b16 %v1437, %v1428
  %v1861 = vpack.c.b16 %v1438, %v1429
  %v1862 = vpack.c.b16 %v1439, %v1430
  %v1863 = vpack.c.b16 %v1440, %v1431
  %v1864 = vpack.c.b16 %v1450, %v1441
  %v1865 = vpack.c.b16 %v1451, %v1442
  %v1866 = vpack.c.b16 %v1452, %v1443
  %v1867 = vpack.c.b16 %v1453, %v1444
  %v1868 = vpack.c.b16 %v1454, %v1445
  %v1869 = vpack.c.b16 %v1455, %v1446
  %v1870 = vpack.c.b16 %v1456, %v1447
  %v1871 = vpack.c.b16 %v1457, %v1448
  %v1872 = vpack.c.b16 %v1458, %v1449
  %v1873 = vpack.c.b16 %v1468, %v1459
  %v1874 = vpack.c.b16 %v1469, %v1460
  %v1875 = vpack.c.b16 %v1470, %v1461
  %v1876 = vpack.c.b16 %v1471, %v1462
  %v1877 = vpack.c.b16 %v1472, %v1463
  %v1878 = vpack.c.b16 %v1473, %v1464
  %v1879 = vpack.c.b16 %v1474, %v1465
  %v1880 = vpack.c.b16 %v1475, %v1466
  %v1881 = vpack.c.b16 %v1476, %v1467
  %v1882 = vpack.c.b16 %v1486, %v1477
  %v1883 = vpack.c.b16 %v1487, %v1478
  %v1884 = vpack.c.b16 %v1488, %v1479
  %v1885 = vpack.c.b16 %v1489, %v1480
  %v1886 = vpack.c.b16 %v1490, %v1481
  %v1887 = vpack.c.b16 %v1491, %v1482
  %v1888 = vpack.c.b16 %v1492, %v1483
  %v1889 = vpack.c.b16 %v1493, %v1484
  %v1890 = vpack.c.b16 %v1494, %v1485
  %v1891 = vpack.c.b16 %v1504, %v1495
  %v1892 = vpack.c.b16 %v1505, %v1496
  %v1893 = vpack.c.b16 %v1506, %v1497
  %v1894 = vpack.c.b16 %v1507, %v1498
  %v1895 = vpack.c.b16 %v1508, %v1499
  %v1896 = vpack.c.b16 %v1509, %v1500
  %v1897 = vpack.c.b16 %v1510, %v1501
  %v1898 = vpack.c.b16 %v1511, %v1502
  %v1899 = vpack.c.b16 %v1512, %v1503
  %v1900 = vpack.c.b16 %v1522, %v1513
  %v1901 = vpack.c.b16 %v1523, %v1514
  %v1902 = vpack.c.b16 %v1524, %v1515
  %v1903 = vpack.c.b16 %v1525, %v1516
  %v1904 = vpack.c.b16 %v1526, %v1517
  %v1905 = vpack.c.b16 %v1527, %v1518
  %v1906 = vpack.c.b16 %v1528, %v1519
  %v1907 = vpack.c.b16 %v1529, %v1520
  %v1908 = vpack.c.b16 %v1530, %v1521
  %v1909 = vpack.c.b16 %v1540, %v1531
  %v1910 = vpack.c.b16 %v1541, %v1532
  %v1911 = vpack.c.b16 %v1542, %v1533
  %v1912 = vpack.c.b16 %v1543, %v1534
  %v1913 = vpack.c.b16 %v1544, %v1535
  %v1914 = vpack.c.b16 %v1545, %v1536
  %v1915 = vpack.c.b16 %v1546, %v1537
  %v1916 = vpack.c.b16 %v1547, %v1538
  %v1917 = vpack.c.b16 %v1548, %v1539
  %v1918 = vpack.c.b16 %v1558, %v1549
  %v1919 = vpack.c.b16 %v1559, %v1550
  %v1920 = vpack.c.b16 %v1560, %v1551
  %v1921 = vpack.c.b16 %v1561, %v1552
  %v1922 = vpack.c.b16 %v1562, %v1553
  %v1923 = vpack.c.b16 %v1563, %v1554
  %v1924 = vpack.c.b16 %v1564, %v1555
  %v1925 = vpack.c.b16 %v1565, %v1556
  %v1926 = vpack.c.b16 %v1566, %v1557
  %v1927 = vpack.c.b16 %v1576, %v1567
  %v1928 = vpack.c.b16 %v1577, %v1568
  %v1929 = vpack.c.b16 %v1578, %v1569
  %v1930 = vpack.c.b16 %v1579, %v1570
  %v1931 = vpack.c.b16 %v1580, %v1571
  %v1932 = vpack.c.b16 %v1581, %v1572
  %v1933 = vpack.c.b16 %v1582, %v1573
  %v1934 = vpack.c.b16 %v1583, %v1574
  %v1935 = vpack.c.b16 %v1584, %v1575
  %v1936 = vpack.c.b16 %v1594, %v1585
  %v1937 = vpack.c.b16 %v1595, %v1586
  %v1938 = vpack.c.b16 %v1596, %v1587
  %v1939 = vpack.c.b16 %v1597, %v1588
  %v1940 = vpack.c.b16 %v1598, %v1589
  %v1941 = vpack.c.b16 %v1599, %v1590
  %v1942 = vpack.c.b16 %v1600, %v1591
  %v1943 = vpack.c.b16 %v1601, %v1592
  %v1944 = vpack.c.b16 %v1602, %v1593
  %v1945 = vpack.c.b16 %v1612, %v1603
  %v1946 = vpack.c.b16 %v1613, %v1604
  %v1947 = vpack.c.b16 %v1614, %v1605
  %v1948 = vpack.c.b16 %v1615, %v1606
  %v1949 = vpack.c.b16 %v1616, %v1607
  %v1950 = vpack.c.b16 %v1617, %v1608
  %v1951 = vpack.c.b16 %v1618, %v1609
  %v1952 = vpack.c.b16 %v1619, %v1610
  %v1953 = vpack.c.b16 %v1620, %v1611
  %v1954 = vpack.c.b16 %v1630, %v1621
  %v1955 = vpack.c.b16 %v1631, %v1622
  %v1956 = vpack.c.b16 %v1632, %v1623
  %v1957 = vpack.c.b16 %v1633, %v1624
  %v1958 = vpack.c.b16 %v1634, %v1625
  %v1959 = vpack.c.b16 %v1635, %v1626
  %v1960 = vpack.c.b16 %v1636, %v1627
  %v1961 = vpack.c.b16 %v1637, %v1628
  %v1962 = vpack.c.b16 %v1638, %v1629
  %v1963 = vpack.c.b16 %v1648, %v1639
  %v1964 = vpack.c.b16 %v1649, %v1640
  %v1965 = vpack.c.b16 %v1650, %v1641
  %v1966 = vpack.c.b16 %v1651, %v1642
  %v1967 = vpack.c.b16 %v1652, %v1643
  %v1968 = vpack.c.b16 %v1653, %v1644
  %v1969 = vpack.c.b16 %v1654, %v1645
  %v1970 = vpack.c.b16 %v1655, %v1646
  %v1971 = vpack.c.b16 %v1656, %v1647
  %v1972 = vpack.c.b16 %v1666, %v1657
  %v1973 = vpack.c.b16 %v1667, %v1658
  %v1974 = vpack.c.b16 %v1668, %v1659
  %v1975 = vpack.c.b16 %v1669, %v1660
  %v1976 = vpack.c.b16 %v1670, %v1661
  %v1977 = vpack.c.b16 %v1671, %v1662
  %v1978 = vpack.c.b16 %v1672, %v1663
  %v1979 = vpack.c.b16 %v1673, %v1664
  %v1980 = vpack.c.b16 %v1674, %v1665
  %v1981 = vpack.c.b16 %v1684, %v1675
  %v1982 = vpack.c.b16 %v1685, %v1676
  %v1983 = vpack.c.b16 %v1686, %v1677
  %v1984 = vpack.c.b16 %v1687, %v1678
  %v1985 = vpack.c.b16 %v1688, %v1679
  %v1986 = vpack.c.b16 %v1689, %v1680
  %v1987 = vpack.c.b16 %v1690, %v1681
  %v1988 = vpack.c.b16 %v1691, %v1682
  %v1989 = vpack.c.b16 %v1692, %v1683
  %v1990 = vpack.c.b16 %v1702, %v1693
  %v1991 = vpack.c.b16 %v1703, %v1694
  %v1992 = vpack.c.b16 %v1704, %v1695
  %v1993 = vpack.c.b16 %v1705, %v1696
  %v1994 = vpack.c.b16 %v1706, %v1697
  %v1995 = vpack.c.b16 %v1707, %v1698
  %v1996 = vpack.c.b16 %v1708, %v1699
  %v1997 = vpack.c.b16 %v1709, %v1700
  %v1998 = vpack.c.b16 %v1710, %v1701
  %2287 = vmatprep.subr.bf16.mxu0 %v1712
  %2288 = vmatpush1.bf16.msra.mxu0 %v1711
  %2289 = vmatprep.subr.bf16.mxu0 %v1721
  %2290 = vmatpush1.bf16.msra.mxu0 %v1720
  %2291 = vmatprep.subr.bf16.mxu0 %v1730
  %2292 = vmatpush1.bf16.msra.mxu0 %v1729
  %2293 = vmatprep.subr.bf16.mxu0 %v1739
  %2294 = vmatpush1.bf16.msra.mxu0 %v1738
  %2295 = vmatprep.subr.bf16.mxu0 %v1748
  %2296 = vmatpush1.bf16.msra.mxu0 %v1747
  %2297 = vmatprep.subr.bf16.mxu0 %v1757
  %2298 = vmatpush1.bf16.msra.mxu0 %v1756
  %2299 = vmatprep.subr.bf16.mxu0 %v1766
  %2300 = vmatpush1.bf16.msra.mxu0 %v1765
  %2301 = vmatprep.subr.bf16.mxu0 %v1775
  %2302 = vmatpush1.bf16.msra.mxu0 %v1774
  %2303 = vmatprep.subr.bf16.mxu0 %v1784
  %2304 = vmatpush1.bf16.msra.mxu0 %v1783
  %2305 = vmatprep.subr.bf16.mxu0 %v1793
  %2306 = vmatpush1.bf16.msra.mxu0 %v1792
  %2307 = vmatprep.subr.bf16.mxu0 %v1802
  %2308 = vmatpush1.bf16.msra.mxu0 %v1801
  %2309 = vmatprep.subr.bf16.mxu0 %v1811
  %2310 = vmatpush1.bf16.msra.mxu0 %v1810
  %2311 = vmatprep.subr.bf16.mxu0 %v1820
  %2312 = vmatpush1.bf16.msra.mxu0 %v1819
  %2313 = vmatprep.subr.bf16.mxu0 %v1829
  %2314 = vmatpush1.bf16.msra.mxu0 %v1828
  %2315 = vmatprep.subr.bf16.mxu0 %v1838
  %2316 = vmatpush1.bf16.msra.mxu0 %v1837
  %2317 = vmatprep.subr.bf16.mxu0 %v1847
  %2318 = vmatpush1.bf16.msra.mxu0 %v1846
  %2319 = vmatprep.mubr.bf16.mxu0 %v488
  %2320 = vmatmul.mubr.bf16.gmra.mrb[0].mxu0 %v487
  %v2321 = vpop.f32.mrb[0].mxu0
  %v2322 = vadd.f32 0.0, %v2321
  %v2323 = vpop.f32.mrb[0].mxu0
  %v2324 = vadd.f32 0.0, %v2323
  %v2325 = vpop.f32.mrb[0].mxu0
  %v2326 = vadd.f32 0.0, %v2325
  %v2327 = vpop.f32.mrb[0].mxu0
  %v2328 = vadd.f32 0.0, %v2327
  %2329 = vmatprep.mubr.bf16.mxu0 %v492
  %2330 = vmatmul.mubr.bf16.gmra.mrb[0].mxu0 %v491
  %v2331 = vpop.f32.mrb[0].mxu0
  %v2332 = vadd.f32 0.0, %v2331
  %v2333 = vpop.f32.mrb[0].mxu0
  %v2334 = vadd.f32 0.0, %v2333
  %v2335 = vpop.f32.mrb[0].mxu0
  %v2336 = vadd.f32 0.0, %v2335
  %v2337 = vpop.f32.mrb[0].mxu0
  %v2338 = vadd.f32 0.0, %v2337
  %2339 = vdwg.mxu0
  %2340 = vmatprep.subr.bf16.mxu0 %v1856
  %2341 = vmatpush1.bf16.msra.mxu0 %v1855
  %2342 = vmatprep.subr.bf16.mxu0 %v1865
  %2343 = vmatpush1.bf16.msra.mxu0 %v1864
  %2344 = vmatprep.subr.bf16.mxu0 %v1874
  %2345 = vmatpush1.bf16.msra.mxu0 %v1873
  %2346 = vmatprep.subr.bf16.mxu0 %v1883
  %2347 = vmatpush1.bf16.msra.mxu0 %v1882
  %2348 = vmatprep.subr.bf16.mxu0 %v1892
  %2349 = vmatpush1.bf16.msra.mxu0 %v1891
  %2350 = vmatprep.subr.bf16.mxu0 %v1901
  %2351 = vmatpush1.bf16.msra.mxu0 %v1900
  %2352 = vmatprep.subr.bf16.mxu0 %v1910
  %2353 = vmatpush1.bf16.msra.mxu0 %v1909
  %2354 = vmatprep.subr.bf16.mxu0 %v1919
  %2355 = vmatpush1.bf16.msra.mxu0 %v1918
  %2356 = vmatprep.subr.bf16.mxu0 %v1928
  %2357 = vmatpush1.bf16.msra.mxu0 %v1927
  %2358 = vmatprep.subr.bf16.mxu0 %v1937
  %2359 = vmatpush1.bf16.msra.mxu0 %v1936
  %2360 = vmatprep.subr.bf16.mxu0 %v1946
  %2361 = vmatpush1.bf16.msra.mxu0 %v1945
  %2362 = vmatprep.subr.bf16.mxu0 %v1955
  %2363 = vmatpush1.bf16.msra.mxu0 %v1954
  %2364 = vmatprep.subr.bf16.mxu0 %v1964
  %2365 = vmatpush1.bf16.msra.mxu0 %v1963
  %2366 = vmatprep.subr.bf16.mxu0 %v1973
  %2367 = vmatpush1.bf16.msra.mxu0 %v1972
  %2368 = vmatprep.subr.bf16.mxu0 %v1982
  %2369 = vmatpush1.bf16.msra.mxu0 %v1981
  %2370 = vmatprep.subr.bf16.mxu0 %v1991
  %2371 = vmatpush1.bf16.msra.mxu0 %v1990
  %2372 = vmatprep.mubr.bf16.mxu0 %v490
  %2373 = vmatmul.mubr.bf16.gmra.mrb[0].mxu0 %v489
  %v2374 = vpop.f32.mrb[0].mxu0
  %v2375 = vadd.f32 %v2322, %v2374
  %v2376 = vpop.f32.mrb[0].mxu0
  %v2377 = vadd.f32 %v2324, %v2376
  %v2378 = vpop.f32.mrb[0].mxu0
  %v2379 = vadd.f32 %v2326, %v2378
  %v2380 = vpop.f32.mrb[0].mxu0
  %v2381 = vadd.f32 %v2328, %v2380
  %2382 = vmatprep.mubr.bf16.mxu0 %v494
  %2383 = vmatmul.mubr.bf16.gmra.mrb[0].mxu0 %v493
  %v2384 = vpop.f32.mrb[0].mxu0
  %v2385 = vadd.f32 %v2332, %v2384
  %v2386 = vpop.f32.mrb[0].mxu0
  %v2387 = vadd.f32 %v2334, %v2386
  %v2388 = vpop.f32.mrb[0].mxu0
  %v2389 = vadd.f32 %v2336, %v2388
  %v2390 = vpop.f32.mrb[0].mxu0
  %v2391 = vadd.f32 %v2338, %v2390
  %2392 = vdwg.mxu0
  %2393 = vmatprep.subr.bf16.mxu0 %v1714
  %2394 = vmatpush1.bf16.msra.mxu0 %v1713
  %2395 = vmatprep.subr.bf16.mxu0 %v1723
  %2396 = vmatpush1.bf16.msra.mxu0 %v1722
  %2397 = vmatprep.subr.bf16.mxu0 %v1732
  %2398 = vmatpush1.bf16.msra.mxu0 %v1731
  %2399 = vmatprep.subr.bf16.mxu0 %v1741
  %2400 = vmatpush1.bf16.msra.mxu0 %v1740
  %2401 = vmatprep.subr.bf16.mxu0 %v1750
  %2402 = vmatpush1.bf16.msra.mxu0 %v1749
  %2403 = vmatprep.subr.bf16.mxu0 %v1759
  %2404 = vmatpush1.bf16.msra.mxu0 %v1758
  %2405 = vmatprep.subr.bf16.mxu0 %v1768
  %2406 = vmatpush1.bf16.msra.mxu0 %v1767
  %2407 = vmatprep.subr.bf16.mxu0 %v1777
  %2408 = vmatpush1.bf16.msra.mxu0 %v1776
  %2409 = vmatprep.subr.bf16.mxu0 %v1786
  %2410 = vmatpush1.bf16.msra.mxu0 %v1785
  %2411 = vmatprep.subr.bf16.mxu0 %v1795
  %2412 = vmatpush1.bf16.msra.mxu0 %v1794
  %2413 = vmatprep.subr.bf16.mxu0 %v1804
  %2414 = vmatpush1.bf16.msra.mxu0 %v1803
  %2415 = vmatprep.subr.bf16.mxu0 %v1813
  %2416 = vmatpush1.bf16.msra.mxu0 %v1812
  %2417 = vmatprep.subr.bf16.mxu0 %v1822
  %2418 = vmatpush1.bf16.msra.mxu0 %v1821
  %2419 = vmatprep.subr.bf16.mxu0 %v1831
  %2420 = vmatpush1.bf16.msra.mxu0 %v1830
  %2421 = vmatprep.subr.bf16.mxu0 %v1840
  %2422 = vmatpush1.bf16.msra.mxu0 %v1839
  %2423 = vmatprep.subr.bf16.mxu0 %v1849
  %2424 = vmatpush1.bf16.msra.mxu0 %v1848
  %2425 = vmatprep.mubr.bf16.mxu0 %v488
  %2426 = vmatmul.mubr.bf16.gmra.mrb[0].mxu0 %v487
  %v2427 = vpop.f32.mrb[0].mxu0
  %v2428 = vadd.f32 0.0, %v2427
  %v2429 = vpop.f32.mrb[0].mxu0
  %v2430 = vadd.f32 0.0, %v2429
  %v2431 = vpop.f32.mrb[0].mxu0
  %v2432 = vadd.f32 0.0, %v2431
  %v2433 = vpop.f32.mrb[0].mxu0
  %v2434 = vadd.f32 0.0, %v2433
  %2435 = vmatprep.mubr.bf16.mxu0 %v492
  %2436 = vmatmul.mubr.bf16.gmra.mrb[0].mxu0 %v491
  %v2437 = vpop.f32.mrb[0].mxu0
  %v2438 = vadd.f32 0.0, %v2437
  %v2439 = vpop.f32.mrb[0].mxu0
  %v2440 = vadd.f32 0.0, %v2439
  %v2441 = vpop.f32.mrb[0].mxu0
  %v2442 = vadd.f32 0.0, %v2441
  %v2443 = vpop.f32.mrb[0].mxu0
  %v2444 = vadd.f32 0.0, %v2443
  %2445 = vdwg.mxu0
  %2446 = vmatprep.subr.bf16.mxu0 %v1858
  %2447 = vmatpush1.bf16.msra.mxu0 %v1857
  %2448 = vmatprep.subr.bf16.mxu0 %v1867
  %2449 = vmatpush1.bf16.msra.mxu0 %v1866
  %2450 = vmatprep.subr.bf16.mxu0 %v1876
  %2451 = vmatpush1.bf16.msra.mxu0 %v1875
  %2452 = vmatprep.subr.bf16.mxu0 %v1885
  %2453 = vmatpush1.bf16.msra.mxu0 %v1884
  %2454 = vmatprep.subr.bf16.mxu0 %v1894
  %2455 = vmatpush1.bf16.msra.mxu0 %v1893
  %2456 = vmatprep.subr.bf16.mxu0 %v1903
  %2457 = vmatpush1.bf16.msra.mxu0 %v1902
  %2458 = vmatprep.subr.bf16.mxu0 %v1912
  %2459 = vmatpush1.bf16.msra.mxu0 %v1911
  %2460 = vmatprep.subr.bf16.mxu0 %v1921
  %2461 = vmatpush1.bf16.msra.mxu0 %v1920
  %2462 = vmatprep.subr.bf16.mxu0 %v1930
  %2463 = vmatpush1.bf16.msra.mxu0 %v1929
  %2464 = vmatprep.subr.bf16.mxu0 %v1939
  %2465 = vmatpush1.bf16.msra.mxu0 %v1938
  %2466 = vmatprep.subr.bf16.mxu0 %v1948
  %2467 = vmatpush1.bf16.msra.mxu0 %v1947
  %2468 = vmatprep.subr.bf16.mxu0 %v1957
  %2469 = vmatpush1.bf16.msra.mxu0 %v1956
  %2470 = vmatprep.subr.bf16.mxu0 %v1966
  %2471 = vmatpush1.bf16.msra.mxu0 %v1965
  %2472 = vmatprep.subr.bf16.mxu0 %v1975
  %2473 = vmatpush1.bf16.msra.mxu0 %v1974
  %2474 = vmatprep.subr.bf16.mxu0 %v1984
  %2475 = vmatpush1.bf16.msra.mxu0 %v1983
  %2476 = vmatprep.subr.bf16.mxu0 %v1993
  %2477 = vmatpush1.bf16.msra.mxu0 %v1992
  %2478 = vmatprep.mubr.bf16.mxu0 %v490
  %2479 = vmatmul.mubr.bf16.gmra.mrb[0].mxu0 %v489
  %v2480 = vpop.f32.mrb[0].mxu0
  %v2481 = vadd.f32 %v2428, %v2480
  %v2482 = vpop.f32.mrb[0].mxu0
  %v2483 = vadd.f32 %v2430, %v2482
  %v2484 = vpop.f32.mrb[0].mxu0
  %v2485 = vadd.f32 %v2432, %v2484
  %v2486 = vpop.f32.mrb[0].mxu0
  %v2487 = vadd.f32 %v2434, %v2486
  %2488 = vmatprep.mubr.bf16.mxu0 %v494
  %2489 = vmatmul.mubr.bf16.gmra.mrb[0].mxu0 %v493
  %v2490 = vpop.f32.mrb[0].mxu0
  %v2491 = vadd.f32 %v2438, %v2490
  %v2492 = vpop.f32.mrb[0].mxu0
  %v2493 = vadd.f32 %v2440, %v2492
  %v2494 = vpop.f32.mrb[0].mxu0
  %v2495 = vadd.f32 %v2442, %v2494
  %v2496 = vpop.f32.mrb[0].mxu0
  %v2497 = vadd.f32 %v2444, %v2496
  %2498 = vdwg.mxu0
  %2499 = vmatprep.subr.bf16.mxu0 %v1716
  %2500 = vmatpush1.bf16.msra.mxu0 %v1715
  %2501 = vmatprep.subr.bf16.mxu0 %v1725
  %2502 = vmatpush1.bf16.msra.mxu0 %v1724
  %2503 = vmatprep.subr.bf16.mxu0 %v1734
  %2504 = vmatpush1.bf16.msra.mxu0 %v1733
  %2505 = vmatprep.subr.bf16.mxu0 %v1743
  %2506 = vmatpush1.bf16.msra.mxu0 %v1742
  %2507 = vmatprep.subr.bf16.mxu0 %v1752
  %2508 = vmatpush1.bf16.msra.mxu0 %v1751
  %2509 = vmatprep.subr.bf16.mxu0 %v1761
  %2510 = vmatpush1.bf16.msra.mxu0 %v1760
  %2511 = vmatprep.subr.bf16.mxu0 %v1770
  %2512 = vmatpush1.bf16.msra.mxu0 %v1769
  %2513 = vmatprep.subr.bf16.mxu0 %v1779
  %2514 = vmatpush1.bf16.msra.mxu0 %v1778
  %2515 = vmatprep.subr.bf16.mxu0 %v1788
  %2516 = vmatpush1.bf16.msra.mxu0 %v1787
  %2517 = vmatprep.subr.bf16.mxu0 %v1797
  %2518 = vmatpush1.bf16.msra.mxu0 %v1796
  %2519 = vmatprep.subr.bf16.mxu0 %v1806
  %2520 = vmatpush1.bf16.msra.mxu0 %v1805
  %2521 = vmatprep.subr.bf16.mxu0 %v1815
  %2522 = vmatpush1.bf16.msra.mxu0 %v1814
  %2523 = vmatprep.subr.bf16.mxu0 %v1824
  %2524 = vmatpush1.bf16.msra.mxu0 %v1823
  %2525 = vmatprep.subr.bf16.mxu0 %v1833
  %2526 = vmatpush1.bf16.msra.mxu0 %v1832
  %2527 = vmatprep.subr.bf16.mxu0 %v1842
  %2528 = vmatpush1.bf16.msra.mxu0 %v1841
  %2529 = vmatprep.subr.bf16.mxu0 %v1851
  %2530 = vmatpush1.bf16.msra.mxu0 %v1850
  %2531 = vmatprep.mubr.bf16.mxu0 %v488
  %2532 = vmatmul.mubr.bf16.gmra.mrb[0].mxu0 %v487
  %v2533 = vpop.f32.mrb[0].mxu0
  %v2534 = vadd.f32 0.0, %v2533
  %v2535 = vpop.f32.mrb[0].mxu0
  %v2536 = vadd.f32 0.0, %v2535
  %v2537 = vpop.f32.mrb[0].mxu0
  %v2538 = vadd.f32 0.0, %v2537
  %v2539 = vpop.f32.mrb[0].mxu0
  %v2540 = vadd.f32 0.0, %v2539
  %2541 = vmatprep.mubr.bf16.mxu0 %v492
  %2542 = vmatmul.mubr.bf16.gmra.mrb[0].mxu0 %v491
  %v2543 = vpop.f32.mrb[0].mxu0
  %v2544 = vadd.f32 0.0, %v2543
  %v2545 = vpop.f32.mrb[0].mxu0
  %v2546 = vadd.f32 0.0, %v2545
  %v2547 = vpop.f32.mrb[0].mxu0
  %v2548 = vadd.f32 0.0, %v2547
  %v2549 = vpop.f32.mrb[0].mxu0
  %v2550 = vadd.f32 0.0, %v2549
  %2551 = vdwg.mxu0
  %2552 = vmatprep.subr.bf16.mxu0 %v1860
  %2553 = vmatpush1.bf16.msra.mxu0 %v1859
  %2554 = vmatprep.subr.bf16.mxu0 %v1869
  %2555 = vmatpush1.bf16.msra.mxu0 %v1868
  %2556 = vmatprep.subr.bf16.mxu0 %v1878
  %2557 = vmatpush1.bf16.msra.mxu0 %v1877
  %2558 = vmatprep.subr.bf16.mxu0 %v1887
  %2559 = vmatpush1.bf16.msra.mxu0 %v1886
  %2560 = vmatprep.subr.bf16.mxu0 %v1896
  %2561 = vmatpush1.bf16.msra.mxu0 %v1895
  %2562 = vmatprep.subr.bf16.mxu0 %v1905
  %2563 = vmatpush1.bf16.msra.mxu0 %v1904
  %2564 = vmatprep.subr.bf16.mxu0 %v1914
  %2565 = vmatpush1.bf16.msra.mxu0 %v1913
  %2566 = vmatprep.subr.bf16.mxu0 %v1923
  %2567 = vmatpush1.bf16.msra.mxu0 %v1922
  %2568 = vmatprep.subr.bf16.mxu0 %v1932
  %2569 = vmatpush1.bf16.msra.mxu0 %v1931
  %2570 = vmatprep.subr.bf16.mxu0 %v1941
  %2571 = vmatpush1.bf16.msra.mxu0 %v1940
  %2572 = vmatprep.subr.bf16.mxu0 %v1950
  %2573 = vmatpush1.bf16.msra.mxu0 %v1949
  %2574 = vmatprep.subr.bf16.mxu0 %v1959
  %2575 = vmatpush1.bf16.msra.mxu0 %v1958
  %2576 = vmatprep.subr.bf16.mxu0 %v1968
  %2577 = vmatpush1.bf16.msra.mxu0 %v1967
  %2578 = vmatprep.subr.bf16.mxu0 %v1977
  %2579 = vmatpush1.bf16.msra.mxu0 %v1976
  %2580 = vmatprep.subr.bf16.mxu0 %v1986
  %2581 = vmatpush1.bf16.msra.mxu0 %v1985
  %2582 = vmatprep.subr.bf16.mxu0 %v1995
  %2583 = vmatpush1.bf16.msra.mxu0 %v1994
  %2584 = vmatprep.mubr.bf16.mxu0 %v490
  %2585 = vmatmul.mubr.bf16.gmra.mrb[0].mxu0 %v489
  %v2586 = vpop.f32.mrb[0].mxu0
  %v2587 = vadd.f32 %v2534, %v2586
  %v2588 = vpop.f32.mrb[0].mxu0
  %v2589 = vadd.f32 %v2536, %v2588
  %v2590 = vpop.f32.mrb[0].mxu0
  %v2591 = vadd.f32 %v2538, %v2590
  %v2592 = vpop.f32.mrb[0].mxu0
  %v2593 = vadd.f32 %v2540, %v2592
  %2594 = vmatprep.mubr.bf16.mxu0 %v494
  %2595 = vmatmul.mubr.bf16.gmra.mrb[0].mxu0 %v493
  %v2596 = vpop.f32.mrb[0].mxu0
  %v2597 = vadd.f32 %v2544, %v2596
  %v2598 = vpop.f32.mrb[0].mxu0
  %v2599 = vadd.f32 %v2546, %v2598
  %v2600 = vpop.f32.mrb[0].mxu0
  %v2601 = vadd.f32 %v2548, %v2600
  %v2602 = vpop.f32.mrb[0].mxu0
  %v2603 = vadd.f32 %v2550, %v2602
  %2604 = vdwg.mxu0
  %2605 = vmatprep.subr.bf16.mxu0 %v1718
  %2606 = vmatpush1.bf16.msra.mxu0 %v1717
  %2607 = vmatprep.subr.bf16.mxu0 %v1727
  %2608 = vmatpush1.bf16.msra.mxu0 %v1726
  %2609 = vmatprep.subr.bf16.mxu0 %v1736
  %2610 = vmatpush1.bf16.msra.mxu0 %v1735
  %2611 = vmatprep.subr.bf16.mxu0 %v1745
  %2612 = vmatpush1.bf16.msra.mxu0 %v1744
  %2613 = vmatprep.subr.bf16.mxu0 %v1754
  %2614 = vmatpush1.bf16.msra.mxu0 %v1753
  %2615 = vmatprep.subr.bf16.mxu0 %v1763
  %2616 = vmatpush1.bf16.msra.mxu0 %v1762
  %2617 = vmatprep.subr.bf16.mxu0 %v1772
  %2618 = vmatpush1.bf16.msra.mxu0 %v1771
  %2619 = vmatprep.subr.bf16.mxu0 %v1781
  %2620 = vmatpush1.bf16.msra.mxu0 %v1780
  %2621 = vmatprep.subr.bf16.mxu0 %v1790
  %2622 = vmatpush1.bf16.msra.mxu0 %v1789
  %2623 = vmatprep.subr.bf16.mxu0 %v1799
  %2624 = vmatpush1.bf16.msra.mxu0 %v1798
  %2625 = vmatprep.subr.bf16.mxu0 %v1808
  %2626 = vmatpush1.bf16.msra.mxu0 %v1807
  %2627 = vmatprep.subr.bf16.mxu0 %v1817
  %2628 = vmatpush1.bf16.msra.mxu0 %v1816
  %2629 = vmatprep.subr.bf16.mxu0 %v1826
  %2630 = vmatpush1.bf16.msra.mxu0 %v1825
  %2631 = vmatprep.subr.bf16.mxu0 %v1835
  %2632 = vmatpush1.bf16.msra.mxu0 %v1834
  %2633 = vmatprep.subr.bf16.mxu0 %v1844
  %2634 = vmatpush1.bf16.msra.mxu0 %v1843
  %2635 = vmatprep.subr.bf16.mxu0 %v1853
  %2636 = vmatpush1.bf16.msra.mxu0 %v1852
  %2637 = vmatprep.mubr.bf16.mxu0 %v488
  %2638 = vmatmul.mubr.bf16.gmra.mrb[0].mxu0 %v487
  %v2639 = vpop.f32.mrb[0].mxu0
  %v2640 = vadd.f32 0.0, %v2639
  %v2641 = vpop.f32.mrb[0].mxu0
  %v2642 = vadd.f32 0.0, %v2641
  %v2643 = vpop.f32.mrb[0].mxu0
  %v2644 = vadd.f32 0.0, %v2643
  %v2645 = vpop.f32.mrb[0].mxu0
  %v2646 = vadd.f32 0.0, %v2645
  %2647 = vmatprep.mubr.bf16.mxu0 %v492
  %2648 = vmatmul.mubr.bf16.gmra.mrb[0].mxu0 %v491
  %v2649 = vpop.f32.mrb[0].mxu0
  %v2650 = vadd.f32 0.0, %v2649
  %v2651 = vpop.f32.mrb[0].mxu0
  %v2652 = vadd.f32 0.0, %v2651
  %v2653 = vpop.f32.mrb[0].mxu0
  %v2654 = vadd.f32 0.0, %v2653
  %v2655 = vpop.f32.mrb[0].mxu0
  %v2656 = vadd.f32 0.0, %v2655
  %2657 = vdwg.mxu0
  %2658 = vmatprep.subr.bf16.mxu0 %v1862
  %2659 = vmatpush1.bf16.msra.mxu0 %v1861
  %2660 = vmatprep.subr.bf16.mxu0 %v1871
  %2661 = vmatpush1.bf16.msra.mxu0 %v1870
  %2662 = vmatprep.subr.bf16.mxu0 %v1880
  %2663 = vmatpush1.bf16.msra.mxu0 %v1879
  %2664 = vmatprep.subr.bf16.mxu0 %v1889
  %2665 = vmatpush1.bf16.msra.mxu0 %v1888
  %2666 = vmatprep.subr.bf16.mxu0 %v1898
  %2667 = vmatpush1.bf16.msra.mxu0 %v1897
  %2668 = vmatprep.subr.bf16.mxu0 %v1907
  %2669 = vmatpush1.bf16.msra.mxu0 %v1906
  %2670 = vmatprep.subr.bf16.mxu0 %v1916
  %2671 = vmatpush1.bf16.msra.mxu0 %v1915
  %2672 = vmatprep.subr.bf16.mxu0 %v1925
  %2673 = vmatpush1.bf16.msra.mxu0 %v1924
  %2674 = vmatprep.subr.bf16.mxu0 %v1934
  %2675 = vmatpush1.bf16.msra.mxu0 %v1933
  %2676 = vmatprep.subr.bf16.mxu0 %v1943
  %2677 = vmatpush1.bf16.msra.mxu0 %v1942
  %2678 = vmatprep.subr.bf16.mxu0 %v1952
  %2679 = vmatpush1.bf16.msra.mxu0 %v1951
  %2680 = vmatprep.subr.bf16.mxu0 %v1961
  %2681 = vmatpush1.bf16.msra.mxu0 %v1960
  %2682 = vmatprep.subr.bf16.mxu0 %v1970
  %2683 = vmatpush1.bf16.msra.mxu0 %v1969
  %2684 = vmatprep.subr.bf16.mxu0 %v1979
  %2685 = vmatpush1.bf16.msra.mxu0 %v1978
  %2686 = vmatprep.subr.bf16.mxu0 %v1988
  %2687 = vmatpush1.bf16.msra.mxu0 %v1987
  %2688 = vmatprep.subr.bf16.mxu0 %v1997
  %2689 = vmatpush1.bf16.msra.mxu0 %v1996
  %2690 = vmatprep.mubr.bf16.mxu0 %v490
  %2691 = vmatmul.mubr.bf16.gmra.mrb[0].mxu0 %v489
  %v2692 = vpop.f32.mrb[0].mxu0
  %v2693 = vadd.f32 %v2640, %v2692
  %v2694 = vpop.f32.mrb[0].mxu0
  %v2695 = vadd.f32 %v2642, %v2694
  %v2696 = vpop.f32.mrb[0].mxu0
  %v2697 = vadd.f32 %v2644, %v2696
  %v2698 = vpop.f32.mrb[0].mxu0
  %v2699 = vadd.f32 %v2646, %v2698
  %2700 = vmatprep.mubr.bf16.mxu0 %v494
  %2701 = vmatmul.mubr.bf16.gmra.mrb[0].mxu0 %v493
  %v2702 = vpop.f32.mrb[0].mxu0
  %v2703 = vadd.f32 %v2650, %v2702
  %v2704 = vpop.f32.mrb[0].mxu0
  %v2705 = vadd.f32 %v2652, %v2704
  %v2706 = vpop.f32.mrb[0].mxu0
  %v2707 = vadd.f32 %v2654, %v2706
  %v2708 = vpop.f32.mrb[0].mxu0
  %v2709 = vadd.f32 %v2656, %v2708
  %2710 = vdwg.mxu0
  %2711 = vmatprep.subr.bf16.mxu0 0
  %2712 = vmatpush1.bf16.msra.mxu0 %v1719
  %2713 = vmatprep.subr.bf16.mxu0 0
  %2714 = vmatpush1.bf16.msra.mxu0 %v1728
  %2715 = vmatprep.subr.bf16.mxu0 0
  %2716 = vmatpush1.bf16.msra.mxu0 %v1737
  %2717 = vmatprep.subr.bf16.mxu0 0
  %2718 = vmatpush1.bf16.msra.mxu0 %v1746
  %2719 = vmatprep.subr.bf16.mxu0 0
  %2720 = vmatpush1.bf16.msra.mxu0 %v1755
  %2721 = vmatprep.subr.bf16.mxu0 0
  %2722 = vmatpush1.bf16.msra.mxu0 %v1764
  %2723 = vmatprep.subr.bf16.mxu0 0
  %2724 = vmatpush1.bf16.msra.mxu0 %v1773
  %2725 = vmatprep.subr.bf16.mxu0 0
  %2726 = vmatpush1.bf16.msra.mxu0 %v1782
  %2727 = vmatprep.subr.bf16.mxu0 0
  %2728 = vmatpush1.bf16.msra.mxu0 %v1791
  %2729 = vmatprep.subr.bf16.mxu0 0
  %2730 = vmatpush1.bf16.msra.mxu0 %v1800
  %2731 = vmatprep.subr.bf16.mxu0 0
  %2732 = vmatpush1.bf16.msra.mxu0 %v1809
  %2733 = vmatprep.subr.bf16.mxu0 0
  %2734 = vmatpush1.bf16.msra.mxu0 %v1818
  %2735 = vmatprep.subr.bf16.mxu0 0
  %2736 = vmatpush1.bf16.msra.mxu0 %v1827
  %2737 = vmatprep.subr.bf16.mxu0 0
  %2738 = vmatpush1.bf16.msra.mxu0 %v1836
  %2739 = vmatprep.subr.bf16.mxu0 0
  %2740 = vmatpush1.bf16.msra.mxu0 %v1845
  %2741 = vmatprep.subr.bf16.mxu0 0
  %2742 = vmatpush1.bf16.msra.mxu0 %v1854
  %2743 = vmatprep.mubr.bf16.mxu0 %v488
  %2744 = vmatmul.mubr.bf16.gmra.mrb[0].mxu0 %v487
  %v2745 = vpop.f32.mrb[0].mxu0
  %v2746 = vadd.f32 0.0, %v2745
  %v2747 = vpop.f32.mrb[0].mxu0
  %v2748 = vpop.f32.mrb[0].mxu0
  %v2749 = vadd.f32 0.0, %v2748
  %v2750 = vpop.f32.mrb[0].mxu0
  %2751 = vmatprep.mubr.bf16.mxu0 %v492
  %2752 = vmatmul.mubr.bf16.gmra.mrb[0].mxu0 %v491
  %v2753 = vpop.f32.mrb[0].mxu0
  %v2754 = vadd.f32 0.0, %v2753
  %v2755 = vpop.f32.mrb[0].mxu0
  %v2756 = vpop.f32.mrb[0].mxu0
  %v2757 = vadd.f32 0.0, %v2756
  %v2758 = vpop.f32.mrb[0].mxu0
  %2759 = vdwg.mxu0
  %2760 = vmatprep.subr.bf16.mxu0 0
  %2761 = vmatpush1.bf16.msra.mxu0 %v1863
  %2762 = vmatprep.subr.bf16.mxu0 0
  %2763 = vmatpush1.bf16.msra.mxu0 %v1872
  %2764 = vmatprep.subr.bf16.mxu0 0
  %2765 = vmatpush1.bf16.msra.mxu0 %v1881
  %2766 = vmatprep.subr.bf16.mxu0 0
  %2767 = vmatpush1.bf16.msra.mxu0 %v1890
  %2768 = vmatprep.subr.bf16.mxu0 0
  %2769 = vmatpush1.bf16.msra.mxu0 %v1899
  %2770 = vmatprep.subr.bf16.mxu0 0
  %2771 = vmatpush1.bf16.msra.mxu0 %v1908
  %2772 = vmatprep.subr.bf16.mxu0 0
  %2773 = vmatpush1.bf16.msra.mxu0 %v1917
  %2774 = vmatprep.subr.bf16.mxu0 0
  %2775 = vmatpush1.bf16.msra.mxu0 %v1926
  %2776 = vmatprep.subr.bf16.mxu0 0
  %2777 = vmatpush1.bf16.msra.mxu0 %v1935
  %2778 = vmatprep.subr.bf16.mxu0 0
  %2779 = vmatpush1.bf16.msra.mxu0 %v1944
  %2780 = vmatprep.subr.bf16.mxu0 0
  %2781 = vmatpush1.bf16.msra.mxu0 %v1953
  %2782 = vmatprep.subr.bf16.mxu0 0
  %2783 = vmatpush1.bf16.msra.mxu0 %v1962
  %2784 = vmatprep.subr.bf16.mxu0 0
  %2785 = vmatpush1.bf16.msra.mxu0 %v1971
  %2786 = vmatprep.subr.bf16.mxu0 0
  %2787 = vmatpush1.bf16.msra.mxu0 %v1980
  %2788 = vmatprep.subr.bf16.mxu0 0
  %2789 = vmatpush1.bf16.msra.mxu0 %v1989
  %2790 = vmatprep.subr.bf16.mxu0 0
  %2791 = vmatpush1.bf16.msra.mxu0 %v1998
  %2792 = vmatprep.mubr.bf16.mxu0 %v490
  %2793 = vmatmul.mubr.bf16.gmra.mrb[0].mxu0 %v489
  %v2794 = vpop.f32.mrb[0].mxu0
  %v2795 = vadd.f32 %v2746, %v2794
  %v2796 = vpop.f32.mrb[0].mxu0
  %v2797 = vpop.f32.mrb[0].mxu0
  %v2798 = vadd.f32 %v2749, %v2797
  %v2799 = vpop.f32.mrb[0].mxu0
  %2800 = vmatprep.mubr.bf16.mxu0 %v494
  %2801 = vmatmul.mubr.bf16.gmra.mrb[0].mxu0 %v493
  %v2802 = vpop.f32.mrb[0].mxu0
  %v2803 = vadd.f32 %v2754, %v2802
  %v2804 = vpop.f32.mrb[0].mxu0
  %v2805 = vpop.f32.mrb[0].mxu0
  %v2806 = vadd.f32 %v2757, %v2805
  %v2807 = vpop.f32.mrb[0].mxu0
  %2808 = vdwg.mxu0
  %v2809 = vpack.c.bf16 %v2379, %v2375
  %v2810 = vpack.c.bf16 %v2381, %v2377
  %v2811 = vpack.c.bf16 %v2485, %v2481
  %v2812 = vpack.c.bf16 %v2487, %v2483
  %v2813 = vpack.c.bf16 %v2591, %v2587
  %v2814 = vpack.c.bf16 %v2593, %v2589
  %v2815 = vpack.c.bf16 %v2697, %v2693
  %v2816 = vpack.c.bf16 %v2699, %v2695
  %v2817 = vpack.c.bf16 %v2798, %v2795
  %v2818 = vpack.c.bf16 %v2389, %v2385
  %v2819 = vpack.c.bf16 %v2391, %v2387
  %v2820 = vpack.c.bf16 %v2495, %v2491
  %v2821 = vpack.c.bf16 %v2497, %v2493
  %v2822 = vpack.c.bf16 %v2601, %v2597
  %v2823 = vpack.c.bf16 %v2603, %v2599
  %v2824 = vpack.c.bf16 %v2707, %v2703
  %v2825 = vpack.c.bf16 %v2709, %v2705
  %v2826 = vpack.c.bf16 %v2806, %v2803
  %v2827 = vld [vmem:[%s6] sm:$0xf]
  %v2828 = vld [vmem:[%s6 + $0x4] sm:$0xf]
  %v2829 = vld [vmem:[%s6 + $0x8] sm:$0xf]
  %v2830 = vld [vmem:[%s6 + $0xc] sm:$0xf]
  %v2831 = vld [vmem:[%s6 + $0x10] sm:$0xf]
  %v2832 = vld [vmem:[%s6 + $0x14] sm:$0xf]
  %v2833 = vld [vmem:[%s6 + $0x18] sm:$0xf]
  %v2834 = vld [vmem:[%s6 + $0x1c] sm:$0xf]
  %v2839 = vunpack.c.l.b16 %v2831
  %v2840 = vunpack.c.l.b16 %v2832
  %v2841 = vunpack.c.l.b16 %v2833
  %v2842 = vunpack.c.l.b16 %v2834
  %v2843 = vpack.c.b16 %v2840, %v2839
  %v2844 = vpack.c.b16 %v2842, %v2841
  %vm2845 = vcmask 261120
  %v2847 = vsel %vm2845, %v2843, 0
  %v2850 = vsel %vm2845, %v2844, 0
  %2852 = vmatprep.subr.bf16.mxu0 0
  %2853 = vmatpush1.bf16.msra.mxu0 %v2810
  %2854 = vmatprep.subr.bf16.mxu0 0
  %2855 = vmatpush1.bf16.msra.mxu0 %v2819
  %2856 = vmatprep.subr.bf16.mxu0 0
  %2857 = vmatpush1.bf16.msra.mxu0 0
  %2858 = vmatprep.subr.bf16.mxu0 0
  %2859 = vmatpush1.bf16.msra.mxu0 0
  %2860 = vmatprep.subr.bf16.mxu0 0
  %2861 = vmatpush1.bf16.msra.mxu0 0
  %2862 = vmatprep.subr.bf16.mxu0 0
  %2863 = vmatpush1.bf16.msra.mxu0 0
  %2864 = vmatprep.subr.bf16.mxu0 0
  %2865 = vmatpush1.bf16.msra.mxu0 0
  %2866 = vmatprep.subr.bf16.mxu0 0
  %2867 = vmatpush1.bf16.msra.mxu0 0
  %2868 = vmatprep.subr.bf16.mxu0 0
  %2869 = vmatpush1.bf16.msra.mxu0 0
  %2870 = vmatprep.subr.bf16.mxu0 0
  %2871 = vmatpush1.bf16.msra.mxu0 0
  %2872 = vmatprep.subr.bf16.mxu0 0
  %2873 = vmatpush1.bf16.msra.mxu0 0
  %2874 = vmatprep.subr.bf16.mxu0 0
  %2875 = vmatpush1.bf16.msra.mxu0 0
  %2876 = vmatprep.subr.bf16.mxu0 0
  %2877 = vmatpush1.bf16.msra.mxu0 0
  %2878 = vmatprep.subr.bf16.mxu0 0
  %2879 = vmatpush1.bf16.msra.mxu0 0
  %2880 = vmatprep.subr.bf16.mxu0 0
  %2881 = vmatpush1.bf16.msra.mxu0 0
  %2882 = vmatprep.subr.bf16.mxu0 0
  %2883 = vmatpush1.bf16.msra.mxu0 0
  %2884 = vmatprep.mubr.bf16.mxu0 0
  %2885 = vmatmul.mubr.bf16.gmra.mrb[0].mxu0 %v2847
  %v2886 = vpop.f32.mrb[0].mxu0
  %v2887 = vadd.f32 0.0, %v2886
  %v2888 = vpop.f32.mrb[0].mxu0
  %v2889 = vpop.f32.mrb[0].mxu0
  %v2890 = vadd.f32 0.0, %v2889
  %v2891 = vpop.f32.mrb[0].mxu0
  %2892 = vmatprep.mubr.bf16.mxu0 0
  %2893 = vmatmul.mubr.bf16.gmra.mrb[0].mxu0 %v2850
  %v2894 = vpop.f32.mrb[0].mxu0
  %v2895 = vadd.f32 0.0, %v2894
  %v2896 = vpop.f32.mrb[0].mxu0
  %v2897 = vpop.f32.mrb[0].mxu0
  %v2898 = vadd.f32 0.0, %v2897
  %v2899 = vpop.f32.mrb[0].mxu0
  %2900 = vdwg.mxu0
  %v2905 = vunpack.c.l.b16 %v2827
  %v2906 = vunpack.c.l.b16 %v2828
  %v2907 = vunpack.c.l.b16 %v2829
  %v2908 = vunpack.c.l.b16 %v2830
  %v2909 = vpack.c.b16 %v2906, %v2905
  %v2910 = vpack.c.b16 %v2908, %v2907
  %v2912 = vsel %vm2845, %v2909, 0
  %v2915 = vsel %vm2845, %v2910, 0
  %2917 = vmatprep.subr.bf16.mxu0 0
  %2918 = vmatpush1.bf16.msra.mxu0 %v2809
  %2919 = vmatprep.subr.bf16.mxu0 0
  %2920 = vmatpush1.bf16.msra.mxu0 %v2818
  %2921 = vmatprep.subr.bf16.mxu0 0
  %2922 = vmatpush1.bf16.msra.mxu0 0
  %2923 = vmatprep.subr.bf16.mxu0 0
  %2924 = vmatpush1.bf16.msra.mxu0 0
  %2925 = vmatprep.subr.bf16.mxu0 0
  %2926 = vmatpush1.bf16.msra.mxu0 0
  %2927 = vmatprep.subr.bf16.mxu0 0
  %2928 = vmatpush1.bf16.msra.mxu0 0
  %2929 = vmatprep.subr.bf16.mxu0 0
  %2930 = vmatpush1.bf16.msra.mxu0 0
  %2931 = vmatprep.subr.bf16.mxu0 0
  %2932 = vmatpush1.bf16.msra.mxu0 0
  %2933 = vmatprep.subr.bf16.mxu0 0
  %2934 = vmatpush1.bf16.msra.mxu0 0
  %2935 = vmatprep.subr.bf16.mxu0 0
  %2936 = vmatpush1.bf16.msra.mxu0 0
  %2937 = vmatprep.subr.bf16.mxu0 0
  %2938 = vmatpush1.bf16.msra.mxu0 0
  %2939 = vmatprep.subr.bf16.mxu0 0
  %2940 = vmatpush1.bf16.msra.mxu0 0
  %2941 = vmatprep.subr.bf16.mxu0 0
  %2942 = vmatpush1.bf16.msra.mxu0 0
  %2943 = vmatprep.subr.bf16.mxu0 0
  %2944 = vmatpush1.bf16.msra.mxu0 0
  %2945 = vmatprep.subr.bf16.mxu0 0
  %2946 = vmatpush1.bf16.msra.mxu0 0
  %2947 = vmatprep.subr.bf16.mxu0 0
  %2948 = vmatpush1.bf16.msra.mxu0 0
  %2949 = vmatprep.mubr.bf16.mxu0 0
  %2950 = vmatmul.mubr.bf16.gmra.mrb[0].mxu0 %v2912
  %v2951 = vpop.f32.mrb[0].mxu0
  %v2952 = vadd.f32 %v2887, %v2951
  %v2953 = vpop.f32.mrb[0].mxu0
  %v2954 = vpop.f32.mrb[0].mxu0
  %v2955 = vadd.f32 %v2890, %v2954
  %v2956 = vpop.f32.mrb[0].mxu0
  %2957 = vmatprep.mubr.bf16.mxu0 0
  %2958 = vmatmul.mubr.bf16.gmra.mrb[0].mxu0 %v2915
  %v2959 = vpop.f32.mrb[0].mxu0
  %v2960 = vadd.f32 %v2895, %v2959
  %v2961 = vpop.f32.mrb[0].mxu0
  %v2962 = vpop.f32.mrb[0].mxu0
  %v2963 = vadd.f32 %v2898, %v2962
  %v2964 = vpop.f32.mrb[0].mxu0
  %2965 = vdwg.mxu0
  %v2966 = vld [vmem:[%s6 + $0x20] sm:$0xf]
  %v2967 = vld [vmem:[%s6 + $0x24] sm:$0xf]
  %v2968 = vld [vmem:[%s6 + $0x28] sm:$0xf]
  %v2969 = vld [vmem:[%s6 + $0x2c] sm:$0xf]
  %v2974 = vunpack.c.l.b16 %v2966
  %v2975 = vunpack.c.l.b16 %v2967
  %v2976 = vunpack.c.l.b16 %v2968
  %v2977 = vunpack.c.l.b16 %v2969
  %v2978 = vpack.c.b16 %v2975, %v2974
  %v2979 = vpack.c.b16 %v2977, %v2976
  %v2981 = vsel %vm2845, %v2978, 0
  %v2984 = vsel %vm2845, %v2979, 0
  %2986 = vmatprep.subr.bf16.mxu0 0
  %2987 = vmatpush1.bf16.msra.mxu0 %v2811
  %2988 = vmatprep.subr.bf16.mxu0 0
  %2989 = vmatpush1.bf16.msra.mxu0 %v2820
  %2990 = vmatprep.subr.bf16.mxu0 0
  %2991 = vmatpush1.bf16.msra.mxu0 0
  %2992 = vmatprep.subr.bf16.mxu0 0
  %2993 = vmatpush1.bf16.msra.mxu0 0
  %2994 = vmatprep.subr.bf16.mxu0 0
  %2995 = vmatpush1.bf16.msra.mxu0 0
  %2996 = vmatprep.subr.bf16.mxu0 0
  %2997 = vmatpush1.bf16.msra.mxu0 0
  %2998 = vmatprep.subr.bf16.mxu0 0
  %2999 = vmatpush1.bf16.msra.mxu0 0
  %3000 = vmatprep.subr.bf16.mxu0 0
  %3001 = vmatpush1.bf16.msra.mxu0 0
  %3002 = vmatprep.subr.bf16.mxu0 0
  %3003 = vmatpush1.bf16.msra.mxu0 0
  %3004 = vmatprep.subr.bf16.mxu0 0
  %3005 = vmatpush1.bf16.msra.mxu0 0
  %3006 = vmatprep.subr.bf16.mxu0 0
  %3007 = vmatpush1.bf16.msra.mxu0 0
  %3008 = vmatprep.subr.bf16.mxu0 0
  %3009 = vmatpush1.bf16.msra.mxu0 0
  %3010 = vmatprep.subr.bf16.mxu0 0
  %3011 = vmatpush1.bf16.msra.mxu0 0
  %3012 = vmatprep.subr.bf16.mxu0 0
  %3013 = vmatpush1.bf16.msra.mxu0 0
  %3014 = vmatprep.subr.bf16.mxu0 0
  %3015 = vmatpush1.bf16.msra.mxu0 0
  %3016 = vmatprep.subr.bf16.mxu0 0
  %3017 = vmatpush1.bf16.msra.mxu0 0
  %3018 = vmatprep.mubr.bf16.mxu0 0
  %3019 = vmatmul.mubr.bf16.gmra.mrb[0].mxu0 %v2981
  %v3020 = vpop.f32.mrb[0].mxu0
  %v3021 = vadd.f32 0.0, %v3020
  %v3022 = vpop.f32.mrb[0].mxu0
  %v3023 = vpop.f32.mrb[0].mxu0
  %v3024 = vadd.f32 0.0, %v3023
  %v3025 = vpop.f32.mrb[0].mxu0
  %3026 = vmatprep.mubr.bf16.mxu0 0
  %3027 = vmatmul.mubr.bf16.gmra.mrb[0].mxu0 %v2984
  %v3028 = vpop.f32.mrb[0].mxu0
  %v3029 = vadd.f32 0.0, %v3028
  %v3030 = vpop.f32.mrb[0].mxu0
  %v3031 = vpop.f32.mrb[0].mxu0
  %v3032 = vadd.f32 0.0, %v3031
  %v3033 = vpop.f32.mrb[0].mxu0
  %3034 = vdwg.mxu0
  %v3035 = vadd.f32 %v2952, %v3021
  %v3036 = vadd.f32 %v2955, %v3024
  %v3037 = vadd.f32 %v2960, %v3029
  %v3038 = vadd.f32 %v2963, %v3032
  %v3039 = vld [vmem:[%s6 + $0x30] sm:$0xf]
  %v3040 = vld [vmem:[%s6 + $0x34] sm:$0xf]
  %v3041 = vld [vmem:[%s6 + $0x38] sm:$0xf]
  %v3042 = vld [vmem:[%s6 + $0x3c] sm:$0xf]
  %v3047 = vunpack.c.l.b16 %v3039
  %v3048 = vunpack.c.l.b16 %v3040
  %v3049 = vunpack.c.l.b16 %v3041
  %v3050 = vunpack.c.l.b16 %v3042
  %v3051 = vpack.c.b16 %v3048, %v3047
  %v3052 = vpack.c.b16 %v3050, %v3049
  %v3054 = vsel %vm2845, %v3051, 0
  %v3057 = vsel %vm2845, %v3052, 0
  %3059 = vmatprep.subr.bf16.mxu0 0
  %3060 = vmatpush1.bf16.msra.mxu0 %v2812
  %3061 = vmatprep.subr.bf16.mxu0 0
  %3062 = vmatpush1.bf16.msra.mxu0 %v2821
  %3063 = vmatprep.subr.bf16.mxu0 0
  %3064 = vmatpush1.bf16.msra.mxu0 0
  %3065 = vmatprep.subr.bf16.mxu0 0
  %3066 = vmatpush1.bf16.msra.mxu0 0
  %3067 = vmatprep.subr.bf16.mxu0 0
  %3068 = vmatpush1.bf16.msra.mxu0 0
  %3069 = vmatprep.subr.bf16.mxu0 0
  %3070 = vmatpush1.bf16.msra.mxu0 0
  %3071 = vmatprep.subr.bf16.mxu0 0
  %3072 = vmatpush1.bf16.msra.mxu0 0
  %3073 = vmatprep.subr.bf16.mxu0 0
  %3074 = vmatpush1.bf16.msra.mxu0 0
  %3075 = vmatprep.subr.bf16.mxu0 0
  %3076 = vmatpush1.bf16.msra.mxu0 0
  %3077 = vmatprep.subr.bf16.mxu0 0
  %3078 = vmatpush1.bf16.msra.mxu0 0
  %3079 = vmatprep.subr.bf16.mxu0 0
  %3080 = vmatpush1.bf16.msra.mxu0 0
  %3081 = vmatprep.subr.bf16.mxu0 0
  %3082 = vmatpush1.bf16.msra.mxu0 0
  %3083 = vmatprep.subr.bf16.mxu0 0
  %3084 = vmatpush1.bf16.msra.mxu0 0
  %3085 = vmatprep.subr.bf16.mxu0 0
  %3086 = vmatpush1.bf16.msra.mxu0 0
  %3087 = vmatprep.subr.bf16.mxu0 0
  %3088 = vmatpush1.bf16.msra.mxu0 0
  %3089 = vmatprep.subr.bf16.mxu0 0
  %3090 = vmatpush1.bf16.msra.mxu0 0
  %3091 = vmatprep.mubr.bf16.mxu0 0
  %3092 = vmatmul.mubr.bf16.gmra.mrb[0].mxu0 %v3054
  %v3093 = vpop.f32.mrb[0].mxu0
  %v3094 = vadd.f32 0.0, %v3093
  %v3095 = vpop.f32.mrb[0].mxu0
  %v3096 = vpop.f32.mrb[0].mxu0
  %v3097 = vadd.f32 0.0, %v3096
  %v3098 = vpop.f32.mrb[0].mxu0
  %3099 = vmatprep.mubr.bf16.mxu0 0
  %3100 = vmatmul.mubr.bf16.gmra.mrb[0].mxu0 %v3057
  %v3101 = vpop.f32.mrb[0].mxu0
  %v3102 = vadd.f32 0.0, %v3101
  %v3103 = vpop.f32.mrb[0].mxu0
  %v3104 = vpop.f32.mrb[0].mxu0
  %v3105 = vadd.f32 0.0, %v3104
  %v3106 = vpop.f32.mrb[0].mxu0
  %3107 = vdwg.mxu0
  %v3108 = vadd.f32 %v3035, %v3094
  %v3109 = vadd.f32 %v3036, %v3097
  %v3110 = vadd.f32 %v3037, %v3102
  %v3111 = vadd.f32 %v3038, %v3105
  %v3112 = vld [vmem:[%s6 + $0x40] sm:$0xf]
  %v3113 = vld [vmem:[%s6 + $0x44] sm:$0xf]
  %v3114 = vld [vmem:[%s6 + $0x48] sm:$0xf]
  %v3115 = vld [vmem:[%s6 + $0x4c] sm:$0xf]
  %v3120 = vunpack.c.l.b16 %v3112
  %v3121 = vunpack.c.l.b16 %v3113
  %v3122 = vunpack.c.l.b16 %v3114
  %v3123 = vunpack.c.l.b16 %v3115
  %v3124 = vpack.c.b16 %v3121, %v3120
  %v3125 = vpack.c.b16 %v3123, %v3122
  %v3127 = vsel %vm2845, %v3124, 0
  %v3130 = vsel %vm2845, %v3125, 0
  %3132 = vmatprep.subr.bf16.mxu0 0
  %3133 = vmatpush1.bf16.msra.mxu0 %v2813
  %3134 = vmatprep.subr.bf16.mxu0 0
  %3135 = vmatpush1.bf16.msra.mxu0 %v2822
  %3136 = vmatprep.subr.bf16.mxu0 0
  %3137 = vmatpush1.bf16.msra.mxu0 0
  %3138 = vmatprep.subr.bf16.mxu0 0
  %3139 = vmatpush1.bf16.msra.mxu0 0
  %3140 = vmatprep.subr.bf16.mxu0 0
  %3141 = vmatpush1.bf16.msra.mxu0 0
  %3142 = vmatprep.subr.bf16.mxu0 0
  %3143 = vmatpush1.bf16.msra.mxu0 0
  %3144 = vmatprep.subr.bf16.mxu0 0
  %3145 = vmatpush1.bf16.msra.mxu0 0
  %3146 = vmatprep.subr.bf16.mxu0 0
  %3147 = vmatpush1.bf16.msra.mxu0 0
  %3148 = vmatprep.subr.bf16.mxu0 0
  %3149 = vmatpush1.bf16.msra.mxu0 0
  %3150 = vmatprep.subr.bf16.mxu0 0
  %3151 = vmatpush1.bf16.msra.mxu0 0
  %3152 = vmatprep.subr.bf16.mxu0 0
  %3153 = vmatpush1.bf16.msra.mxu0 0
  %3154 = vmatprep.subr.bf16.mxu0 0
  %3155 = vmatpush1.bf16.msra.mxu0 0
  %3156 = vmatprep.subr.bf16.mxu0 0
  %3157 = vmatpush1.bf16.msra.mxu0 0
  %3158 = vmatprep.subr.bf16.mxu0 0
  %3159 = vmatpush1.bf16.msra.mxu0 0
  %3160 = vmatprep.subr.bf16.mxu0 0
  %3161 = vmatpush1.bf16.msra.mxu0 0
  %3162 = vmatprep.subr.bf16.mxu0 0
  %3163 = vmatpush1.bf16.msra.mxu0 0
  %3164 = vmatprep.mubr.bf16.mxu0 0
  %3165 = vmatmul.mubr.bf16.gmra.mrb[0].mxu0 %v3127
  %v3166 = vpop.f32.mrb[0].mxu0
  %v3167 = vadd.f32 0.0, %v3166
  %v3168 = vpop.f32.mrb[0].mxu0
  %v3169 = vpop.f32.mrb[0].mxu0
  %v3170 = vadd.f32 0.0, %v3169
  %v3171 = vpop.f32.mrb[0].mxu0
  %3172 = vmatprep.mubr.bf16.mxu0 0
  %3173 = vmatmul.mubr.bf16.gmra.mrb[0].mxu0 %v3130
  %v3174 = vpop.f32.mrb[0].mxu0
  %v3175 = vadd.f32 0.0, %v3174
  %v3176 = vpop.f32.mrb[0].mxu0
  %v3177 = vpop.f32.mrb[0].mxu0
  %v3178 = vadd.f32 0.0, %v3177
  %v3179 = vpop.f32.mrb[0].mxu0
  %3180 = vdwg.mxu0
  %v3181 = vadd.f32 %v3108, %v3167
  %v3182 = vadd.f32 %v3109, %v3170
  %v3183 = vadd.f32 %v3110, %v3175
  %v3184 = vadd.f32 %v3111, %v3178
  %v3185 = vld [vmem:[%s6 + $0x50] sm:$0xf]
  %v3186 = vld [vmem:[%s6 + $0x54] sm:$0xf]
  %v3187 = vld [vmem:[%s6 + $0x58] sm:$0xf]
  %v3188 = vld [vmem:[%s6 + $0x5c] sm:$0xf]
  %v3193 = vunpack.c.l.b16 %v3185
  %v3194 = vunpack.c.l.b16 %v3186
  %v3195 = vunpack.c.l.b16 %v3187
  %v3196 = vunpack.c.l.b16 %v3188
  %v3197 = vpack.c.b16 %v3194, %v3193
  %v3198 = vpack.c.b16 %v3196, %v3195
  %v3200 = vsel %vm2845, %v3197, 0
  %v3203 = vsel %vm2845, %v3198, 0
  %3205 = vmatprep.subr.bf16.mxu0 0
  %3206 = vmatpush1.bf16.msra.mxu0 %v2814
  %3207 = vmatprep.subr.bf16.mxu0 0
  %3208 = vmatpush1.bf16.msra.mxu0 %v2823
  %3209 = vmatprep.subr.bf16.mxu0 0
  %3210 = vmatpush1.bf16.msra.mxu0 0
  %3211 = vmatprep.subr.bf16.mxu0 0
  %3212 = vmatpush1.bf16.msra.mxu0 0
  %3213 = vmatprep.subr.bf16.mxu0 0
  %3214 = vmatpush1.bf16.msra.mxu0 0
  %3215 = vmatprep.subr.bf16.mxu0 0
  %3216 = vmatpush1.bf16.msra.mxu0 0
  %3217 = vmatprep.subr.bf16.mxu0 0
  %3218 = vmatpush1.bf16.msra.mxu0 0
  %3219 = vmatprep.subr.bf16.mxu0 0
  %3220 = vmatpush1.bf16.msra.mxu0 0
  %3221 = vmatprep.subr.bf16.mxu0 0
  %3222 = vmatpush1.bf16.msra.mxu0 0
  %3223 = vmatprep.subr.bf16.mxu0 0
  %3224 = vmatpush1.bf16.msra.mxu0 0
  %3225 = vmatprep.subr.bf16.mxu0 0
  %3226 = vmatpush1.bf16.msra.mxu0 0
  %3227 = vmatprep.subr.bf16.mxu0 0
  %3228 = vmatpush1.bf16.msra.mxu0 0
  %3229 = vmatprep.subr.bf16.mxu0 0
  %3230 = vmatpush1.bf16.msra.mxu0 0
  %3231 = vmatprep.subr.bf16.mxu0 0
  %3232 = vmatpush1.bf16.msra.mxu0 0
  %3233 = vmatprep.subr.bf16.mxu0 0
  %3234 = vmatpush1.bf16.msra.mxu0 0
  %3235 = vmatprep.subr.bf16.mxu0 0
  %3236 = vmatpush1.bf16.msra.mxu0 0
  %3237 = vmatprep.mubr.bf16.mxu0 0
  %3238 = vmatmul.mubr.bf16.gmra.mrb[0].mxu0 %v3200
  %v3239 = vpop.f32.mrb[0].mxu0
  %v3240 = vadd.f32 0.0, %v3239
  %v3241 = vpop.f32.mrb[0].mxu0
  %v3242 = vpop.f32.mrb[0].mxu0
  %v3243 = vadd.f32 0.0, %v3242
  %v3244 = vpop.f32.mrb[0].mxu0
  %3245 = vmatprep.mubr.bf16.mxu0 0
  %3246 = vmatmul.mubr.bf16.gmra.mrb[0].mxu0 %v3203
  %v3247 = vpop.f32.mrb[0].mxu0
  %v3248 = vadd.f32 0.0, %v3247
  %v3249 = vpop.f32.mrb[0].mxu0
  %v3250 = vpop.f32.mrb[0].mxu0
  %v3251 = vadd.f32 0.0, %v3250
  %v3252 = vpop.f32.mrb[0].mxu0
  %3253 = vdwg.mxu0
  %v3254 = vadd.f32 %v3181, %v3240
  %v3255 = vadd.f32 %v3182, %v3243
  %v3256 = vadd.f32 %v3183, %v3248
  %v3257 = vadd.f32 %v3184, %v3251
  %v3258 = vld [vmem:[%s6 + $0x60] sm:$0xf]
  %v3259 = vld [vmem:[%s6 + $0x64] sm:$0xf]
  %v3260 = vld [vmem:[%s6 + $0x68] sm:$0xf]
  %v3261 = vld [vmem:[%s6 + $0x6c] sm:$0xf]
  %v3266 = vunpack.c.l.b16 %v3258
  %v3267 = vunpack.c.l.b16 %v3259
  %v3268 = vunpack.c.l.b16 %v3260
  %v3269 = vunpack.c.l.b16 %v3261
  %v3270 = vpack.c.b16 %v3267, %v3266
  %v3271 = vpack.c.b16 %v3269, %v3268
  %v3273 = vsel %vm2845, %v3270, 0
  %v3276 = vsel %vm2845, %v3271, 0
  %3278 = vmatprep.subr.bf16.mxu0 0
  %3279 = vmatpush1.bf16.msra.mxu0 %v2815
  %3280 = vmatprep.subr.bf16.mxu0 0
  %3281 = vmatpush1.bf16.msra.mxu0 %v2824
  %3282 = vmatprep.subr.bf16.mxu0 0
  %3283 = vmatpush1.bf16.msra.mxu0 0
  %3284 = vmatprep.subr.bf16.mxu0 0
  %3285 = vmatpush1.bf16.msra.mxu0 0
  %3286 = vmatprep.subr.bf16.mxu0 0
  %3287 = vmatpush1.bf16.msra.mxu0 0
  %3288 = vmatprep.subr.bf16.mxu0 0
  %3289 = vmatpush1.bf16.msra.mxu0 0
  %3290 = vmatprep.subr.bf16.mxu0 0
  %3291 = vmatpush1.bf16.msra.mxu0 0
  %3292 = vmatprep.subr.bf16.mxu0 0
  %3293 = vmatpush1.bf16.msra.mxu0 0
  %3294 = vmatprep.subr.bf16.mxu0 0
  %3295 = vmatpush1.bf16.msra.mxu0 0
  %3296 = vmatprep.subr.bf16.mxu0 0
  %3297 = vmatpush1.bf16.msra.mxu0 0
  %3298 = vmatprep.subr.bf16.mxu0 0
  %3299 = vmatpush1.bf16.msra.mxu0 0
  %3300 = vmatprep.subr.bf16.mxu0 0
  %3301 = vmatpush1.bf16.msra.mxu0 0
  %3302 = vmatprep.subr.bf16.mxu0 0
  %3303 = vmatpush1.bf16.msra.mxu0 0
  %3304 = vmatprep.subr.bf16.mxu0 0
  %3305 = vmatpush1.bf16.msra.mxu0 0
  %3306 = vmatprep.subr.bf16.mxu0 0
  %3307 = vmatpush1.bf16.msra.mxu0 0
  %3308 = vmatprep.subr.bf16.mxu0 0
  %3309 = vmatpush1.bf16.msra.mxu0 0
  %3310 = vmatprep.mubr.bf16.mxu0 0
  %3311 = vmatmul.mubr.bf16.gmra.mrb[0].mxu0 %v3273
  %v3312 = vpop.f32.mrb[0].mxu0
  %v3313 = vadd.f32 0.0, %v3312
  %v3314 = vpop.f32.mrb[0].mxu0
  %v3315 = vpop.f32.mrb[0].mxu0
  %v3316 = vadd.f32 0.0, %v3315
  %v3317 = vpop.f32.mrb[0].mxu0
  %3318 = vmatprep.mubr.bf16.mxu0 0
  %3319 = vmatmul.mubr.bf16.gmra.mrb[0].mxu0 %v3276
  %v3320 = vpop.f32.mrb[0].mxu0
  %v3321 = vadd.f32 0.0, %v3320
  %v3322 = vpop.f32.mrb[0].mxu0
  %v3323 = vpop.f32.mrb[0].mxu0
  %v3324 = vadd.f32 0.0, %v3323
  %v3325 = vpop.f32.mrb[0].mxu0
  %3326 = vdwg.mxu0
  %v3327 = vadd.f32 %v3254, %v3313
  %v3328 = vadd.f32 %v3255, %v3316
  %v3329 = vadd.f32 %v3256, %v3321
  %v3330 = vadd.f32 %v3257, %v3324
  %v3331 = vld [vmem:[%s6 + $0x70] sm:$0xf]
  %v3332 = vld [vmem:[%s6 + $0x74] sm:$0xf]
  %v3333 = vld [vmem:[%s6 + $0x78] sm:$0xf]
  %v3334 = vld [vmem:[%s6 + $0x7c] sm:$0xf]
  %v3339 = vunpack.c.l.b16 %v3331
  %v3340 = vunpack.c.l.b16 %v3332
  %v3341 = vunpack.c.l.b16 %v3333
  %v3342 = vunpack.c.l.b16 %v3334
  %v3343 = vpack.c.b16 %v3340, %v3339
  %v3344 = vpack.c.b16 %v3342, %v3341
  %v3346 = vsel %vm2845, %v3343, 0
  %v3349 = vsel %vm2845, %v3344, 0
  %3351 = vmatprep.subr.bf16.mxu0 0
  %3352 = vmatpush1.bf16.msra.mxu0 %v2816
  %3353 = vmatprep.subr.bf16.mxu0 0
  %3354 = vmatpush1.bf16.msra.mxu0 %v2825
  %3355 = vmatprep.subr.bf16.mxu0 0
  %3356 = vmatpush1.bf16.msra.mxu0 0
  %3357 = vmatprep.subr.bf16.mxu0 0
  %3358 = vmatpush1.bf16.msra.mxu0 0
  %3359 = vmatprep.subr.bf16.mxu0 0
  %3360 = vmatpush1.bf16.msra.mxu0 0
  %3361 = vmatprep.subr.bf16.mxu0 0
  %3362 = vmatpush1.bf16.msra.mxu0 0
  %3363 = vmatprep.subr.bf16.mxu0 0
  %3364 = vmatpush1.bf16.msra.mxu0 0
  %3365 = vmatprep.subr.bf16.mxu0 0
  %3366 = vmatpush1.bf16.msra.mxu0 0
  %3367 = vmatprep.subr.bf16.mxu0 0
  %3368 = vmatpush1.bf16.msra.mxu0 0
  %3369 = vmatprep.subr.bf16.mxu0 0
  %3370 = vmatpush1.bf16.msra.mxu0 0
  %3371 = vmatprep.subr.bf16.mxu0 0
  %3372 = vmatpush1.bf16.msra.mxu0 0
  %3373 = vmatprep.subr.bf16.mxu0 0
  %3374 = vmatpush1.bf16.msra.mxu0 0
  %3375 = vmatprep.subr.bf16.mxu0 0
  %3376 = vmatpush1.bf16.msra.mxu0 0
  %3377 = vmatprep.subr.bf16.mxu0 0
  %3378 = vmatpush1.bf16.msra.mxu0 0
  %3379 = vmatprep.subr.bf16.mxu0 0
  %3380 = vmatpush1.bf16.msra.mxu0 0
  %3381 = vmatprep.subr.bf16.mxu0 0
  %3382 = vmatpush1.bf16.msra.mxu0 0
  %3383 = vmatprep.mubr.bf16.mxu0 0
  %3384 = vmatmul.mubr.bf16.gmra.mrb[0].mxu0 %v3346
  %v3385 = vpop.f32.mrb[0].mxu0
  %v3386 = vadd.f32 0.0, %v3385
  %v3387 = vpop.f32.mrb[0].mxu0
  %v3388 = vpop.f32.mrb[0].mxu0
  %v3389 = vadd.f32 0.0, %v3388
  %v3390 = vpop.f32.mrb[0].mxu0
  %3391 = vmatprep.mubr.bf16.mxu0 0
  %3392 = vmatmul.mubr.bf16.gmra.mrb[0].mxu0 %v3349
  %v3393 = vpop.f32.mrb[0].mxu0
  %v3394 = vadd.f32 0.0, %v3393
  %v3395 = vpop.f32.mrb[0].mxu0
  %v3396 = vpop.f32.mrb[0].mxu0
  %v3397 = vadd.f32 0.0, %v3396
  %v3398 = vpop.f32.mrb[0].mxu0
  %3399 = vdwg.mxu0
  %v3400 = vadd.f32 %v3327, %v3386
  %v3401 = vadd.f32 %v3328, %v3389
  %v3402 = vadd.f32 %v3329, %v3394
  %v3403 = vadd.f32 %v3330, %v3397
  %v3404 = vld [vmem:[%s6 + $0x80] sm:$0xf]
  %v3405 = vld [vmem:[%s6 + $0x84] sm:$0xf]
  %v3406 = vld [vmem:[%s6 + $0x88] sm:$0xf]
  %v3407 = vld [vmem:[%s6 + $0x8c] sm:$0xf]
  %v3412 = vunpack.c.l.b16 %v3404
  %v3413 = vunpack.c.l.b16 %v3405
  %v3414 = vunpack.c.l.b16 %v3406
  %v3415 = vunpack.c.l.b16 %v3407
  %v3416 = vpack.c.b16 %v3413, %v3412
  %v3417 = vpack.c.b16 %v3415, %v3414
  %v3419 = vsel %vm2845, %v3416, 0
  %v3422 = vsel %vm2845, %v3417, 0
  %3424 = vmatprep.subr.bf16.mxu0 0
  %3425 = vmatpush1.bf16.msra.mxu0 %v2817
  %3426 = vmatprep.subr.bf16.mxu0 0
  %3427 = vmatpush1.bf16.msra.mxu0 %v2826
  %3428 = vmatprep.subr.bf16.mxu0 0
  %3429 = vmatpush1.bf16.msra.mxu0 0
  %3430 = vmatprep.subr.bf16.mxu0 0
  %3431 = vmatpush1.bf16.msra.mxu0 0
  %3432 = vmatprep.subr.bf16.mxu0 0
  %3433 = vmatpush1.bf16.msra.mxu0 0
  %3434 = vmatprep.subr.bf16.mxu0 0
  %3435 = vmatpush1.bf16.msra.mxu0 0
  %3436 = vmatprep.subr.bf16.mxu0 0
  %3437 = vmatpush1.bf16.msra.mxu0 0
  %3438 = vmatprep.subr.bf16.mxu0 0
  %3439 = vmatpush1.bf16.msra.mxu0 0
  %3440 = vmatprep.subr.bf16.mxu0 0
  %3441 = vmatpush1.bf16.msra.mxu0 0
  %3442 = vmatprep.subr.bf16.mxu0 0
  %3443 = vmatpush1.bf16.msra.mxu0 0
  %3444 = vmatprep.subr.bf16.mxu0 0
  %3445 = vmatpush1.bf16.msra.mxu0 0
  %3446 = vmatprep.subr.bf16.mxu0 0
  %3447 = vmatpush1.bf16.msra.mxu0 0
  %3448 = vmatprep.subr.bf16.mxu0 0
  %3449 = vmatpush1.bf16.msra.mxu0 0
  %3450 = vmatprep.subr.bf16.mxu0 0
  %3451 = vmatpush1.bf16.msra.mxu0 0
  %3452 = vmatprep.subr.bf16.mxu0 0
  %3453 = vmatpush1.bf16.msra.mxu0 0
  %3454 = vmatprep.subr.bf16.mxu0 0
  %3455 = vmatpush1.bf16.msra.mxu0 0
  %3456 = vmatprep.mubr.bf16.mxu0 0
  %3457 = vmatmul.mubr.bf16.gmra.mrb[0].mxu0 %v3419
  %v3458 = vpop.f32.mrb[0].mxu0
  %v3459 = vadd.f32 0.0, %v3458
  %v3460 = vpop.f32.mrb[0].mxu0
  %v3461 = vpop.f32.mrb[0].mxu0
  %v3462 = vadd.f32 0.0, %v3461
  %v3463 = vpop.f32.mrb[0].mxu0
  %3464 = vmatprep.mubr.bf16.mxu0 0
  %3465 = vmatmul.mubr.bf16.gmra.mrb[0].mxu0 %v3422
  %v3466 = vpop.f32.mrb[0].mxu0
  %v3467 = vadd.f32 0.0, %v3466
  %v3468 = vpop.f32.mrb[0].mxu0
  %v3469 = vpop.f32.mrb[0].mxu0
  %v3470 = vadd.f32 0.0, %v3469
  %v3471 = vpop.f32.mrb[0].mxu0
  %3472 = vdwg.mxu0
  %v3473 = vadd.f32 %v3400, %v3459
  %v3474 = vadd.f32 %v3401, %v3462
  %v3475 = vadd.f32 %v3402, %v3467
  %v3476 = vadd.f32 %v3403, %v3470
  %v3477 = vld [vmem:[%s7] sm:$0xff]
  %v3478 = vld [vmem:[%s7 + $0x8] sm:$0xff]
  %v3479 = vld [vmem:[%s7 + $0x10] sm:$0xff]
  %v3480 = vld [vmem:[%s7 + $0x18] sm:$0xff]
  %3482 = vset.pattern.permute.xlu0 0
  %3483 = vperm.xlu0 %3482, %v3477
  %v3484 = vpop.permute.xlu0 %3483
  %3487 = vset.pattern.permute.xlu0 0
  %3488 = vperm.xlu0 %3487, %v3478
  %v3489 = vpop.permute.xlu0 %3488
  %3492 = vset.pattern.permute.xlu0 0
  %3493 = vperm.xlu0 %3492, %v3479
  %v3494 = vpop.permute.xlu0 %3493
  %3497 = vset.pattern.permute.xlu0 0
  %3498 = vperm.xlu0 %3497, %v3480
  %v3499 = vpop.permute.xlu0 %3498
  %v3501 = vadd.f32 %v3473, %v3484
  %v3502 = vadd.f32 %v3474, %v3489
  %v3503 = vadd.f32 %v3475, %v3494
  %v3504 = vadd.f32 %v3476, %v3499
  %3505 = vadd.xlane.f32.xlu0 %v3501
  %v3506 = vpop.xlane.xlu0 %3505
  %3507 = vadd.xlane.f32.xlu0 %v3502
  %v3508 = vpop.xlane.xlu0 %3507
  %3509 = vadd.xlane.f32.xlu0 %v3503
  %v3510 = vpop.xlane.xlu0 %3509
  %3511 = vadd.xlane.f32.xlu0 %v3504
  %v3512 = vpop.xlane.xlu0 %3511
  %v3513 = vrcp.pop 128.0
  %v3514 = vmul.f32 %v3506, %v3513
  %v3515 = vmul.f32 %v3508, %v3513
  %v3516 = vmul.f32 %v3510, %v3513
  %v3517 = vmul.f32 %v3512, %v3513
  %v3518 = vsub.f32 %v3501, %v3514
  %v3519 = vsub.f32 %v3502, %v3515
  %v3520 = vsub.f32 %v3503, %v3516
  %v3521 = vsub.f32 %v3504, %v3517
  %v3522 = vmul.f32 %v3518, %v3518
  %v3523 = vmul.f32 %v3519, %v3519
  %v3524 = vmul.f32 %v3520, %v3520
  %v3525 = vmul.f32 %v3521, %v3521
  %3526 = vadd.xlane.f32.xlu0 %v3522
  %v3527 = vpop.xlane.xlu0 %3526
  %3528 = vadd.xlane.f32.xlu0 %v3523
  %v3529 = vpop.xlane.xlu0 %3528
  %3530 = vadd.xlane.f32.xlu0 %v3524
  %v3531 = vpop.xlane.xlu0 %3530
  %3532 = vadd.xlane.f32.xlu0 %v3525
  %v3533 = vpop.xlane.xlu0 %3532
  %v3534 = vmul.f32 %v3527, %v3513
  %v3535 = vmul.f32 %v3529, %v3513
  %v3536 = vmul.f32 %v3531, %v3513
  %v3537 = vmul.f32 %v3533, %v3513
  %v3538 = vld [vmem:[%s8] sm:$0xff]
  %v3539 = vld [vmem:[%s8 + $0x8] sm:$0xff]
  %v3540 = vld [vmem:[%s8 + $0x10] sm:$0xff]
  %v3541 = vld [vmem:[%s8 + $0x18] sm:$0xff]
  %v3542 = vadd.f32 %v3534, 1e-05
  %v3543 = vadd.f32 %v3535, 1e-05
  %v3544 = vadd.f32 %v3536, 1e-05
  %v3545 = vadd.f32 %v3537, 1e-05
  %v3546 = vrsqrt.pop %v3542
  %v3547 = vrsqrt.pop %v3543
  %v3548 = vrsqrt.pop %v3544
  %v3549 = vrsqrt.pop %v3545
  %v3550 = vmul.f32 %v3538, %v3546
  %v3551 = vmul.f32 %v3539, %v3547
  %v3552 = vmul.f32 %v3540, %v3548
  %v3553 = vmul.f32 %v3541, %v3549
  %v3554 = vld [vmem:[%s9] sm:$0xff]
  %v3555 = vld [vmem:[%s9 + $0x8] sm:$0xff]
  %v3556 = vld [vmem:[%s9 + $0x10] sm:$0xff]
  %v3557 = vld [vmem:[%s9 + $0x18] sm:$0xff]
  %v3558 = vmul.f32 %v3514, %v3550
  %v3559 = vmul.f32 %v3515, %v3551
  %v3560 = vmul.f32 %v3516, %v3552
  %v3561 = vmul.f32 %v3517, %v3553
  %v3562 = vsub.f32 %v3554, %v3558
  %v3563 = vsub.f32 %v3555, %v3559
  %v3564 = vsub.f32 %v3556, %v3560
  %v3565 = vsub.f32 %v3557, %v3561
  %3567 = vset.pattern.permute.xlu0 0
  %3568 = vperm.xlu0 %3567, %v3550
  %v3569 = vpop.permute.xlu0 %3568
  %3572 = vset.pattern.permute.xlu0 0
  %3573 = vperm.xlu0 %3572, %v3551
  %v3574 = vpop.permute.xlu0 %3573
  %3577 = vset.pattern.permute.xlu0 0
  %3578 = vperm.xlu0 %3577, %v3552
  %v3579 = vpop.permute.xlu0 %3578
  %3582 = vset.pattern.permute.xlu0 0
  %3583 = vperm.xlu0 %3582, %v3553
  %v3584 = vpop.permute.xlu0 %3583
  %v3586 = vmul.f32 %v3501, %v3569
  %v3587 = vmul.f32 %v3502, %v3574
  %v3588 = vmul.f32 %v3503, %v3579
  %v3589 = vmul.f32 %v3504, %v3584
  %3591 = vset.pattern.permute.xlu0 0
  %3592 = vperm.xlu0 %3591, %v3562
  %v3593 = vpop.permute.xlu0 %3592
  %3596 = vset.pattern.permute.xlu0 0
  %3597 = vperm.xlu0 %3596, %v3563
  %v3598 = vpop.permute.xlu0 %3597
  %3601 = vset.pattern.permute.xlu0 0
  %3602 = vperm.xlu0 %3601, %v3564
  %v3603 = vpop.permute.xlu0 %3602
  %3606 = vset.pattern.permute.xlu0 0
  %3607 = vperm.xlu0 %3606, %v3565
  %v3608 = vpop.permute.xlu0 %3607
  %v3610 = vadd.f32 %v3586, %v3593
  %v3611 = vadd.f32 %v3587, %v3598
  %v3612 = vadd.f32 %v3588, %v3603
  %v3613 = vadd.f32 %v3589, %v3608
  %v3614 = vmax.f32 %v3610, 0.0
  %v3615 = vmax.f32 %v3611, 0.0
  %v3616 = vmax.f32 %v3612, 0.0
  %v3617 = vmax.f32 %v3613, 0.0
  %v3618 = vpack.c.bf16 %v3615, %v3614
  %v3619 = vpack.c.bf16 %v3617, %v3616
  %v3620 = vld [vmem:[%s10] sm:$0xff]
  %v3621 = vld [vmem:[%s10 + $0x8] sm:$0xff]
  %v3622 = vld [vmem:[%s10 + $0x10] sm:$0xff]
  %v3623 = vld [vmem:[%s10 + $0x18] sm:$0xff]
  %v3624 = vld [vmem:[%s10 + $0x20] sm:$0xf]
  %v3625 = vld [vmem:[%s10 + $0x24] sm:$0xff]
  %v3626 = vld [vmem:[%s10 + $0x2c] sm:$0xff]
  %v3627 = vld [vmem:[%s10 + $0x34] sm:$0xff]
  %v3628 = vld [vmem:[%s10 + $0x3c] sm:$0xff]
  %v3629 = vld [vmem:[%s10 + $0x44] sm:$0xf]
  %v3630 = vld [vmem:[%s10 + $0x48] sm:$0xff]
  %v3631 = vld [vmem:[%s10 + $0x50] sm:$0xff]
  %v3632 = vld [vmem:[%s10 + $0x58] sm:$0xff]
  %v3633 = vld [vmem:[%s10 + $0x60] sm:$0xff]
  %v3634 = vld [vmem:[%s10 + $0x68] sm:$0xf]
  %v3635 = vld [vmem:[%s10 + $0x6c] sm:$0xff]
  %v3636 = vld [vmem:[%s10 + $0x74] sm:$0xff]
  %v3637 = vld [vmem:[%s10 + $0x7c] sm:$0xff]
  %v3638 = vld [vmem:[%s10 + $0x84] sm:$0xff]
  %v3639 = vld [vmem:[%s10 + $0x8c] sm:$0xf]
  %v3640 = vld [vmem:[%s10 + $0x90] sm:$0xff]
  %v3641 = vld [vmem:[%s10 + $0x98] sm:$0xff]
  %v3642 = vld [vmem:[%s10 + $0xa0] sm:$0xff]
  %v3643 = vld [vmem:[%s10 + $0xa8] sm:$0xff]
  %v3644 = vld [vmem:[%s10 + $0xb0] sm:$0xf]
  %v3645 = vld [vmem:[%s10 + $0xb4] sm:$0xff]
  %v3646 = vld [vmem:[%s10 + $0xbc] sm:$0xff]
  %v3647 = vld [vmem:[%s10 + $0xc4] sm:$0xff]
  %v3648 = vld [vmem:[%s10 + $0xcc] sm:$0xff]
  %v3649 = vld [vmem:[%s10 + $0xd4] sm:$0xf]
  %v3650 = vld [vmem:[%s10 + $0xd8] sm:$0xff]
  %v3651 = vld [vmem:[%s10 + $0xe0] sm:$0xff]
  %v3652 = vld [vmem:[%s10 + $0xe8] sm:$0xff]
  %v3653 = vld [vmem:[%s10 + $0xf0] sm:$0xff]
  %v3654 = vld [vmem:[%s10 + $0xf8] sm:$0xf]
  %v3655 = vld [vmem:[%s10 + $0xfc] sm:$0xff]
  %v3656 = vld [vmem:[%s10 + $0x104] sm:$0xff]
  %v3657 = vld [vmem:[%s10 + $0x10c] sm:$0xff]
  %v3658 = vld [vmem:[%s10 + $0x114] sm:$0xff]
  %v3659 = vld [vmem:[%s10 + $0x11c] sm:$0xf]
  %v3660 = vld [vmem:[%s10 + $0x120] sm:$0xff]
  %v3661 = vld [vmem:[%s10 + $0x128] sm:$0xff]
  %v3662 = vld [vmem:[%s10 + $0x130] sm:$0xff]
  %v3663 = vld [vmem:[%s10 + $0x138] sm:$0xff]
  %v3664 = vld [vmem:[%s10 + $0x140] sm:$0xf]
  %v3665 = vld [vmem:[%s10 + $0x144] sm:$0xff]
  %v3666 = vld [vmem:[%s10 + $0x14c] sm:$0xff]
  %v3667 = vld [vmem:[%s10 + $0x154] sm:$0xff]
  %v3668 = vld [vmem:[%s10 + $0x15c] sm:$0xff]
  %v3669 = vld [vmem:[%s10 + $0x164] sm:$0xf]
  %v3670 = vld [vmem:[%s10 + $0x168] sm:$0xff]
  %v3671 = vld [vmem:[%s10 + $0x170] sm:$0xff]
  %v3672 = vld [vmem:[%s10 + $0x178] sm:$0xff]
  %v3673 = vld [vmem:[%s10 + $0x180] sm:$0xff]
  %v3674 = vld [vmem:[%s10 + $0x188] sm:$0xf]
  %v3675 = vld [vmem:[%s10 + $0x18c] sm:$0xff]
  %v3676 = vld [vmem:[%s10 + $0x194] sm:$0xff]
  %v3677 = vld [vmem:[%s10 + $0x19c] sm:$0xff]
  %v3678 = vld [vmem:[%s10 + $0x1a4] sm:$0xff]
  %v3679 = vld [vmem:[%s10 + $0x1ac] sm:$0xf]
  %v3680 = vld [vmem:[%s10 + $0x1b0] sm:$0xff]
  %v3681 = vld [vmem:[%s10 + $0x1b8] sm:$0xff]
  %v3682 = vld [vmem:[%s10 + $0x1c0] sm:$0xff]
  %v3683 = vld [vmem:[%s10 + $0x1c8] sm:$0xff]
  %v3684 = vld [vmem:[%s10 + $0x1d0] sm:$0xf]
  %v3685 = vld [vmem:[%s10 + $0x1d4] sm:$0xff]
  %v3686 = vld [vmem:[%s10 + $0x1dc] sm:$0xff]
  %v3687 = vld [vmem:[%s10 + $0x1e4] sm:$0xff]
  %v3688 = vld [vmem:[%s10 + $0x1ec] sm:$0xff]
  %v3689 = vld [vmem:[%s10 + $0x1f4] sm:$0xf]
  %v3690 = vld [vmem:[%s10 + $0x1f8] sm:$0xff]
  %v3691 = vld [vmem:[%s10 + $0x200] sm:$0xff]
  %v3692 = vld [vmem:[%s10 + $0x208] sm:$0xff]
  %v3693 = vld [vmem:[%s10 + $0x210] sm:$0xff]
  %v3694 = vld [vmem:[%s10 + $0x218] sm:$0xf]
  %v3695 = vld [vmem:[%s10 + $0x21c] sm:$0xff]
  %v3696 = vld [vmem:[%s10 + $0x224] sm:$0xff]
  %v3697 = vld [vmem:[%s10 + $0x22c] sm:$0xff]
  %v3698 = vld [vmem:[%s10 + $0x234] sm:$0xff]
  %v3699 = vld [vmem:[%s10 + $0x23c] sm:$0xf]
  %v3780 = vunpack.c.l.b16 %v3620
  %v3781 = vunpack.c.h.b16 %v3620
  %v3782 = vunpack.c.l.b16 %v3621
  %v3783 = vunpack.c.h.b16 %v3621
  %v3784 = vunpack.c.l.b16 %v3622
  %v3785 = vunpack.c.h.b16 %v3622
  %v3786 = vunpack.c.l.b16 %v3623
  %v3787 = vunpack.c.h.b16 %v3623
  %v3788 = vunpack.c.l.b16 %v3624
  %v3789 = vunpack.c.l.b16 %v3625
  %v3790 = vunpack.c.h.b16 %v3625
  %v3791 = vunpack.c.l.b16 %v3626
  %v3792 = vunpack.c.h.b16 %v3626
  %v3793 = vunpack.c.l.b16 %v3627
  %v3794 = vunpack.c.h.b16 %v3627
  %v3795 = vunpack.c.l.b16 %v3628
  %v3796 = vunpack.c.h.b16 %v3628
  %v3797 = vunpack.c.l.b16 %v3629
  %v3798 = vunpack.c.l.b16 %v3630
  %v3799 = vunpack.c.h.b16 %v3630
  %v3800 = vunpack.c.l.b16 %v3631
  %v3801 = vunpack.c.h.b16 %v3631
  %v3802 = vunpack.c.l.b16 %v3632
  %v3803 = vunpack.c.h.b16 %v3632
  %v3804 = vunpack.c.l.b16 %v3633
  %v3805 = vunpack.c.h.b16 %v3633
  %v3806 = vunpack.c.l.b16 %v3634
  %v3807 = vunpack.c.l.b16 %v3635
  %v3808 = vunpack.c.h.b16 %v3635
  %v3809 = vunpack.c.l.b16 %v3636
  %v3810 = vunpack.c.h.b16 %v3636
  %v3811 = vunpack.c.l.b16 %v3637
  %v3812 = vunpack.c.h.b16 %v3637
  %v3813 = vunpack.c.l.b16 %v3638
  %v3814 = vunpack.c.h.b16 %v3638
  %v3815 = vunpack.c.l.b16 %v3639
  %v3816 = vunpack.c.l.b16 %v3640
  %v3817 = vunpack.c.h.b16 %v3640
  %v3818 = vunpack.c.l.b16 %v3641
  %v3819 = vunpack.c.h.b16 %v3641
  %v3820 = vunpack.c.l.b16 %v3642
  %v3821 = vunpack.c.h.b16 %v3642
  %v3822 = vunpack.c.l.b16 %v3643
  %v3823 = vunpack.c.h.b16 %v3643
  %v3824 = vunpack.c.l.b16 %v3644
  %v3825 = vunpack.c.l.b16 %v3645
  %v3826 = vunpack.c.h.b16 %v3645
  %v3827 = vunpack.c.l.b16 %v3646
  %v3828 = vunpack.c.h.b16 %v3646
  %v3829 = vunpack.c.l.b16 %v3647
  %v3830 = vunpack.c.h.b16 %v3647
  %v3831 = vunpack.c.l.b16 %v3648
  %v3832 = vunpack.c.h.b16 %v3648
  %v3833 = vunpack.c.l.b16 %v3649
  %v3834 = vunpack.c.l.b16 %v3650
  %v3835 = vunpack.c.h.b16 %v3650
  %v3836 = vunpack.c.l.b16 %v3651
  %v3837 = vunpack.c.h.b16 %v3651
  %v3838 = vunpack.c.l.b16 %v3652
  %v3839 = vunpack.c.h.b16 %v3652
  %v3840 = vunpack.c.l.b16 %v3653
  %v3841 = vunpack.c.h.b16 %v3653
  %v3842 = vunpack.c.l.b16 %v3654
  %v3843 = vunpack.c.l.b16 %v3655
  %v3844 = vunpack.c.h.b16 %v3655
  %v3845 = vunpack.c.l.b16 %v3656
  %v3846 = vunpack.c.h.b16 %v3656
  %v3847 = vunpack.c.l.b16 %v3657
  %v3848 = vunpack.c.h.b16 %v3657
  %v3849 = vunpack.c.l.b16 %v3658
  %v3850 = vunpack.c.h.b16 %v3658
  %v3851 = vunpack.c.l.b16 %v3659
  %v3852 = vunpack.c.l.b16 %v3660
  %v3853 = vunpack.c.h.b16 %v3660
  %v3854 = vunpack.c.l.b16 %v3661
  %v3855 = vunpack.c.h.b16 %v3661
  %v3856 = vunpack.c.l.b16 %v3662
  %v3857 = vunpack.c.h.b16 %v3662
  %v3858 = vunpack.c.l.b16 %v3663
  %v3859 = vunpack.c.h.b16 %v3663
  %v3860 = vunpack.c.l.b16 %v3664
  %v3861 = vunpack.c.l.b16 %v3665
  %v3862 = vunpack.c.h.b16 %v3665
  %v3863 = vunpack.c.l.b16 %v3666
  %v3864 = vunpack.c.h.b16 %v3666
  %v3865 = vunpack.c.l.b16 %v3667
  %v3866 = vunpack.c.h.b16 %v3667
  %v3867 = vunpack.c.l.b16 %v3668
  %v3868 = vunpack.c.h.b16 %v3668
  %v3869 = vunpack.c.l.b16 %v3669
  %v3870 = vunpack.c.l.b16 %v3670
  %v3871 = vunpack.c.h.b16 %v3670
  %v3872 = vunpack.c.l.b16 %v3671
  %v3873 = vunpack.c.h.b16 %v3671
  %v3874 = vunpack.c.l.b16 %v3672
  %v3875 = vunpack.c.h.b16 %v3672
  %v3876 = vunpack.c.l.b16 %v3673
  %v3877 = vunpack.c.h.b16 %v3673
  %v3878 = vunpack.c.l.b16 %v3674
  %v3879 = vunpack.c.l.b16 %v3675
  %v3880 = vunpack.c.h.b16 %v3675
  %v3881 = vunpack.c.l.b16 %v3676
  %v3882 = vunpack.c.h.b16 %v3676
  %v3883 = vunpack.c.l.b16 %v3677
  %v3884 = vunpack.c.h.b16 %v3677
  %v3885 = vunpack.c.l.b16 %v3678
  %v3886 = vunpack.c.h.b16 %v3678
  %v3887 = vunpack.c.l.b16 %v3679
  %v3888 = vunpack.c.l.b16 %v3680
  %v3889 = vunpack.c.h.b16 %v3680
  %v3890 = vunpack.c.l.b16 %v3681
  %v3891 = vunpack.c.h.b16 %v3681
  %v3892 = vunpack.c.l.b16 %v3682
  %v3893 = vunpack.c.h.b16 %v3682
  %v3894 = vunpack.c.l.b16 %v3683
  %v3895 = vunpack.c.h.b16 %v3683
  %v3896 = vunpack.c.l.b16 %v3684
  %v3897 = vunpack.c.l.b16 %v3685
  %v3898 = vunpack.c.h.b16 %v3685
  %v3899 = vunpack.c.l.b16 %v3686
  %v3900 = vunpack.c.h.b16 %v3686
  %v3901 = vunpack.c.l.b16 %v3687
  %v3902 = vunpack.c.h.b16 %v3687
  %v3903 = vunpack.c.l.b16 %v3688
  %v3904 = vunpack.c.h.b16 %v3688
  %v3905 = vunpack.c.l.b16 %v3689
  %v3906 = vunpack.c.l.b16 %v3690
  %v3907 = vunpack.c.h.b16 %v3690
  %v3908 = vunpack.c.l.b16 %v3691
  %v3909 = vunpack.c.h.b16 %v3691
  %v3910 = vunpack.c.l.b16 %v3692
  %v3911 = vunpack.c.h.b16 %v3692
  %v3912 = vunpack.c.l.b16 %v3693
  %v3913 = vunpack.c.h.b16 %v3693
  %v3914 = vunpack.c.l.b16 %v3694
  %v3915 = vunpack.c.l.b16 %v3695
  %v3916 = vunpack.c.h.b16 %v3695
  %v3917 = vunpack.c.l.b16 %v3696
  %v3918 = vunpack.c.h.b16 %v3696
  %v3919 = vunpack.c.l.b16 %v3697
  %v3920 = vunpack.c.h.b16 %v3697
  %v3921 = vunpack.c.l.b16 %v3698
  %v3922 = vunpack.c.h.b16 %v3698
  %v3923 = vunpack.c.l.b16 %v3699
  %v3924 = vpack.c.b16 %v3789, %v3780
  %v3925 = vpack.c.b16 %v3790, %v3781
  %v3926 = vpack.c.b16 %v3791, %v3782
  %v3927 = vpack.c.b16 %v3792, %v3783
  %v3928 = vpack.c.b16 %v3793, %v3784
  %v3929 = vpack.c.b16 %v3794, %v3785
  %v3930 = vpack.c.b16 %v3795, %v3786
  %v3931 = vpack.c.b16 %v3796, %v3787
  %v3932 = vpack.c.b16 %v3797, %v3788
  %v3933 = vpack.c.b16 %v3807, %v3798
  %v3934 = vpack.c.b16 %v3808, %v3799
  %v3935 = vpack.c.b16 %v3809, %v3800
  %v3936 = vpack.c.b16 %v3810, %v3801
  %v3937 = vpack.c.b16 %v3811, %v3802
  %v3938 = vpack.c.b16 %v3812, %v3803
  %v3939 = vpack.c.b16 %v3813, %v3804
  %v3940 = vpack.c.b16 %v3814, %v3805
  %v3941 = vpack.c.b16 %v3815, %v3806
  %v3942 = vpack.c.b16 %v3825, %v3816
  %v3943 = vpack.c.b16 %v3826, %v3817
  %v3944 = vpack.c.b16 %v3827, %v3818
  %v3945 = vpack.c.b16 %v3828, %v3819
  %v3946 = vpack.c.b16 %v3829, %v3820
  %v3947 = vpack.c.b16 %v3830, %v3821
  %v3948 = vpack.c.b16 %v3831, %v3822
  %v3949 = vpack.c.b16 %v3832, %v3823
  %v3950 = vpack.c.b16 %v3833, %v3824
  %v3951 = vpack.c.b16 %v3843, %v3834
  %v3952 = vpack.c.b16 %v3844, %v3835
  %v3953 = vpack.c.b16 %v3845, %v3836
  %v3954 = vpack.c.b16 %v3846, %v3837
  %v3955 = vpack.c.b16 %v3847, %v3838
  %v3956 = vpack.c.b16 %v3848, %v3839
  %v3957 = vpack.c.b16 %v3849, %v3840
  %v3958 = vpack.c.b16 %v3850, %v3841
  %v3959 = vpack.c.b16 %v3851, %v3842
  %v3960 = vpack.c.b16 %v3861, %v3852
  %v3961 = vpack.c.b16 %v3862, %v3853
  %v3962 = vpack.c.b16 %v3863, %v3854
  %v3963 = vpack.c.b16 %v3864, %v3855
  %v3964 = vpack.c.b16 %v3865, %v3856
  %v3965 = vpack.c.b16 %v3866, %v3857
  %v3966 = vpack.c.b16 %v3867, %v3858
  %v3967 = vpack.c.b16 %v3868, %v3859
  %v3968 = vpack.c.b16 %v3869, %v3860
  %v3969 = vpack.c.b16 %v3879, %v3870
  %v3970 = vpack.c.b16 %v3880, %v3871
  %v3971 = vpack.c.b16 %v3881, %v3872
  %v3972 = vpack.c.b16 %v3882, %v3873
  %v3973 = vpack.c.b16 %v3883, %v3874
  %v3974 = vpack.c.b16 %v3884, %v3875
  %v3975 = vpack.c.b16 %v3885, %v3876
  %v3976 = vpack.c.b16 %v3886, %v3877
  %v3977 = vpack.c.b16 %v3887, %v3878
  %v3978 = vpack.c.b16 %v3897, %v3888
  %v3979 = vpack.c.b16 %v3898, %v3889
  %v3980 = vpack.c.b16 %v3899, %v3890
  %v3981 = vpack.c.b16 %v3900, %v3891
  %v3982 = vpack.c.b16 %v3901, %v3892
  %v3983 = vpack.c.b16 %v3902, %v3893
  %v3984 = vpack.c.b16 %v3903, %v3894
  %v3985 = vpack.c.b16 %v3904, %v3895
  %v3986 = vpack.c.b16 %v3905, %v3896
  %v3987 = vpack.c.b16 %v3915, %v3906
  %v3988 = vpack.c.b16 %v3916, %v3907
  %v3989 = vpack.c.b16 %v3917, %v3908
  %v3990 = vpack.c.b16 %v3918, %v3909
  %v3991 = vpack.c.b16 %v3919, %v3910
  %v3992 = vpack.c.b16 %v3920, %v3911
  %v3993 = vpack.c.b16 %v3921, %v3912
  %v3994 = vpack.c.b16 %v3922, %v3913
  %v3995 = vpack.c.b16 %v3923, %v3914
  %4068 = vmatprep.subr.bf16.mxu0 %v3925
  %4069 = vmatpush1.bf16.msra.mxu0 %v3924
  %4070 = vmatprep.subr.bf16.mxu0 %v3934
  %4071 = vmatpush1.bf16.msra.mxu0 %v3933
  %4072 = vmatprep.subr.bf16.mxu0 %v3943
  %4073 = vmatpush1.bf16.msra.mxu0 %v3942
  %4074 = vmatprep.subr.bf16.mxu0 %v3952
  %4075 = vmatpush1.bf16.msra.mxu0 %v3951
  %4076 = vmatprep.subr.bf16.mxu0 %v3961
  %4077 = vmatpush1.bf16.msra.mxu0 %v3960
  %4078 = vmatprep.subr.bf16.mxu0 %v3970
  %4079 = vmatpush1.bf16.msra.mxu0 %v3969
  %4080 = vmatprep.subr.bf16.mxu0 %v3979
  %4081 = vmatpush1.bf16.msra.mxu0 %v3978
  %4082 = vmatprep.subr.bf16.mxu0 %v3988
  %4083 = vmatpush1.bf16.msra.mxu0 %v3987
  %4084 = vmatprep.subr.bf16.mxu0 0
  %4085 = vmatpush1.bf16.msra.mxu0 0
  %4086 = vmatprep.subr.bf16.mxu0 0
  %4087 = vmatpush1.bf16.msra.mxu0 0
  %4088 = vmatprep.subr.bf16.mxu0 0
  %4089 = vmatpush1.bf16.msra.mxu0 0
  %4090 = vmatprep.subr.bf16.mxu0 0
  %4091 = vmatpush1.bf16.msra.mxu0 0
  %4092 = vmatprep.subr.bf16.mxu0 0
  %4093 = vmatpush1.bf16.msra.mxu0 0
  %4094 = vmatprep.subr.bf16.mxu0 0
  %4095 = vmatpush1.bf16.msra.mxu0 0
  %4096 = vmatprep.subr.bf16.mxu0 0
  %4097 = vmatpush1.bf16.msra.mxu0 0
  %4098 = vmatprep.subr.bf16.mxu0 0
  %4099 = vmatpush1.bf16.msra.mxu0 0
  %4100 = vmatprep.mubr.bf16.mxu0 0
  %4101 = vmatmul.mubr.bf16.gmra.mrb[0].mxu0 %v3618
  %v4102 = vpop.f32.mrb[0].mxu0
  %v4103 = vadd.f32 0.0, %v4102
  %v4104 = vpop.f32.mrb[0].mxu0
  %v4105 = vadd.f32 0.0, %v4104
  %v4106 = vpop.f32.mrb[0].mxu0
  %v4107 = vadd.f32 0.0, %v4106
  %v4108 = vpop.f32.mrb[0].mxu0
  %v4109 = vadd.f32 0.0, %v4108
  %4110 = vmatprep.mubr.bf16.mxu0 0
  %4111 = vmatmul.mubr.bf16.gmra.mrb[0].mxu0 %v3619
  %v4112 = vpop.f32.mrb[0].mxu0
  %v4113 = vadd.f32 0.0, %v4112
  %v4114 = vpop.f32.mrb[0].mxu0
  %v4115 = vadd.f32 0.0, %v4114
  %v4116 = vpop.f32.mrb[0].mxu0
  %v4117 = vadd.f32 0.0, %v4116
  %v4118 = vpop.f32.mrb[0].mxu0
  %v4119 = vadd.f32 0.0, %v4118
  %4120 = vdwg.mxu0
  %4121 = vmatprep.subr.bf16.mxu0 %v3927
  %4122 = vmatpush1.bf16.msra.mxu0 %v3926
  %4123 = vmatprep.subr.bf16.mxu0 %v3936
  %4124 = vmatpush1.bf16.msra.mxu0 %v3935
  %4125 = vmatprep.subr.bf16.mxu0 %v3945
  %4126 = vmatpush1.bf16.msra.mxu0 %v3944
  %4127 = vmatprep.subr.bf16.mxu0 %v3954
  %4128 = vmatpush1.bf16.msra.mxu0 %v3953
  %4129 = vmatprep.subr.bf16.mxu0 %v3963
  %4130 = vmatpush1.bf16.msra.mxu0 %v3962
  %4131 = vmatprep.subr.bf16.mxu0 %v3972
  %4132 = vmatpush1.bf16.msra.mxu0 %v3971
  %4133 = vmatprep.subr.bf16.mxu0 %v3981
  %4134 = vmatpush1.bf16.msra.mxu0 %v3980
  %4135 = vmatprep.subr.bf16.mxu0 %v3990
  %4136 = vmatpush1.bf16.msra.mxu0 %v3989
  %4137 = vmatprep.subr.bf16.mxu0 0
  %4138 = vmatpush1.bf16.msra.mxu0 0
  %4139 = vmatprep.subr.bf16.mxu0 0
  %4140 = vmatpush1.bf16.msra.mxu0 0
  %4141 = vmatprep.subr.bf16.mxu0 0
  %4142 = vmatpush1.bf16.msra.mxu0 0
  %4143 = vmatprep.subr.bf16.mxu0 0
  %4144 = vmatpush1.bf16.msra.mxu0 0
  %4145 = vmatprep.subr.bf16.mxu0 0
  %4146 = vmatpush1.bf16.msra.mxu0 0
  %4147 = vmatprep.subr.bf16.mxu0 0
  %4148 = vmatpush1.bf16.msra.mxu0 0
  %4149 = vmatprep.subr.bf16.mxu0 0
  %4150 = vmatpush1.bf16.msra.mxu0 0
  %4151 = vmatprep.subr.bf16.mxu0 0
  %4152 = vmatpush1.bf16.msra.mxu0 0
  %4153 = vmatprep.mubr.bf16.mxu0 0
  %4154 = vmatmul.mubr.bf16.gmra.mrb[0].mxu0 %v3618
  %v4155 = vpop.f32.mrb[0].mxu0
  %v4156 = vadd.f32 0.0, %v4155
  %v4157 = vpop.f32.mrb[0].mxu0
  %v4158 = vadd.f32 0.0, %v4157
  %v4159 = vpop.f32.mrb[0].mxu0
  %v4160 = vadd.f32 0.0, %v4159
  %v4161 = vpop.f32.mrb[0].mxu0
  %v4162 = vadd.f32 0.0, %v4161
  %4163 = vmatprep.mubr.bf16.mxu0 0
  %4164 = vmatmul.mubr.bf16.gmra.mrb[0].mxu0 %v3619
  %v4165 = vpop.f32.mrb[0].mxu0
  %v4166 = vadd.f32 0.0, %v4165
  %v4167 = vpop.f32.mrb[0].mxu0
  %v4168 = vadd.f32 0.0, %v4167
  %v4169 = vpop.f32.mrb[0].mxu0
  %v4170 = vadd.f32 0.0, %v4169
  %v4171 = vpop.f32.mrb[0].mxu0
  %v4172 = vadd.f32 0.0, %v4171
  %4173 = vdwg.mxu0
  %4174 = vmatprep.subr.bf16.mxu0 %v3929
  %4175 = vmatpush1.bf16.msra.mxu0 %v3928
  %4176 = vmatprep.subr.bf16.mxu0 %v3938
  %4177 = vmatpush1.bf16.msra.mxu0 %v3937
  %4178 = vmatprep.subr.bf16.mxu0 %v3947
  %4179 = vmatpush1.bf16.msra.mxu0 %v3946
  %4180 = vmatprep.subr.bf16.mxu0 %v3956
  %4181 = vmatpush1.bf16.msra.mxu0 %v3955
  %4182 = vmatprep.subr.bf16.mxu0 %v3965
  %4183 = vmatpush1.bf16.msra.mxu0 %v3964
  %4184 = vmatprep.subr.bf16.mxu0 %v3974
  %4185 = vmatpush1.bf16.msra.mxu0 %v3973
  %4186 = vmatprep.subr.bf16.mxu0 %v3983
  %4187 = vmatpush1.bf16.msra.mxu0 %v3982
  %4188 = vmatprep.subr.bf16.mxu0 %v3992
  %4189 = vmatpush1.bf16.msra.mxu0 %v3991
  %4190 = vmatprep.subr.bf16.mxu0 0
  %4191 = vmatpush1.bf16.msra.mxu0 0
  %4192 = vmatprep.subr.bf16.mxu0 0
  %4193 = vmatpush1.bf16.msra.mxu0 0
  %4194 = vmatprep.subr.bf16.mxu0 0
  %4195 = vmatpush1.bf16.msra.mxu0 0
  %4196 = vmatprep.subr.bf16.mxu0 0
  %4197 = vmatpush1.bf16.msra.mxu0 0
  %4198 = vmatprep.subr.bf16.mxu0 0
  %4199 = vmatpush1.bf16.msra.mxu0 0
  %4200 = vmatprep.subr.bf16.mxu0 0
  %4201 = vmatpush1.bf16.msra.mxu0 0
  %4202 = vmatprep.subr.bf16.mxu0 0
  %4203 = vmatpush1.bf16.msra.mxu0 0
  %4204 = vmatprep.subr.bf16.mxu0 0
  %4205 = vmatpush1.bf16.msra.mxu0 0
  %4206 = vmatprep.mubr.bf16.mxu0 0
  %4207 = vmatmul.mubr.bf16.gmra.mrb[0].mxu0 %v3618
  %v4208 = vpop.f32.mrb[0].mxu0
  %v4209 = vadd.f32 0.0, %v4208
  %v4210 = vpop.f32.mrb[0].mxu0
  %v4211 = vadd.f32 0.0, %v4210
  %v4212 = vpop.f32.mrb[0].mxu0
  %v4213 = vadd.f32 0.0, %v4212
  %v4214 = vpop.f32.mrb[0].mxu0
  %v4215 = vadd.f32 0.0, %v4214
  %4216 = vmatprep.mubr.bf16.mxu0 0
  %4217 = vmatmul.mubr.bf16.gmra.mrb[0].mxu0 %v3619
  %v4218 = vpop.f32.mrb[0].mxu0
  %v4219 = vadd.f32 0.0, %v4218
  %v4220 = vpop.f32.mrb[0].mxu0
  %v4221 = vadd.f32 0.0, %v4220
  %v4222 = vpop.f32.mrb[0].mxu0
  %v4223 = vadd.f32 0.0, %v4222
  %v4224 = vpop.f32.mrb[0].mxu0
  %v4225 = vadd.f32 0.0, %v4224
  %4226 = vdwg.mxu0
  %4227 = vmatprep.subr.bf16.mxu0 %v3931
  %4228 = vmatpush1.bf16.msra.mxu0 %v3930
  %4229 = vmatprep.subr.bf16.mxu0 %v3940
  %4230 = vmatpush1.bf16.msra.mxu0 %v3939
  %4231 = vmatprep.subr.bf16.mxu0 %v3949
  %4232 = vmatpush1.bf16.msra.mxu0 %v3948
  %4233 = vmatprep.subr.bf16.mxu0 %v3958
  %4234 = vmatpush1.bf16.msra.mxu0 %v3957
  %4235 = vmatprep.subr.bf16.mxu0 %v3967
  %4236 = vmatpush1.bf16.msra.mxu0 %v3966
  %4237 = vmatprep.subr.bf16.mxu0 %v3976
  %4238 = vmatpush1.bf16.msra.mxu0 %v3975
  %4239 = vmatprep.subr.bf16.mxu0 %v3985
  %4240 = vmatpush1.bf16.msra.mxu0 %v3984
  %4241 = vmatprep.subr.bf16.mxu0 %v3994
  %4242 = vmatpush1.bf16.msra.mxu0 %v3993
  %4243 = vmatprep.subr.bf16.mxu0 0
  %4244 = vmatpush1.bf16.msra.mxu0 0
  %4245 = vmatprep.subr.bf16.mxu0 0
  %4246 = vmatpush1.bf16.msra.mxu0 0
  %4247 = vmatprep.subr.bf16.mxu0 0
  %4248 = vmatpush1.bf16.msra.mxu0 0
  %4249 = vmatprep.subr.bf16.mxu0 0
  %4250 = vmatpush1.bf16.msra.mxu0 0
  %4251 = vmatprep.subr.bf16.mxu0 0
  %4252 = vmatpush1.bf16.msra.mxu0 0
  %4253 = vmatprep.subr.bf16.mxu0 0
  %4254 = vmatpush1.bf16.msra.mxu0 0
  %4255 = vmatprep.subr.bf16.mxu0 0
  %4256 = vmatpush1.bf16.msra.mxu0 0
  %4257 = vmatprep.subr.bf16.mxu0 0
  %4258 = vmatpush1.bf16.msra.mxu0 0
  %4259 = vmatprep.mubr.bf16.mxu0 0
  %4260 = vmatmul.mubr.bf16.gmra.mrb[0].mxu0 %v3618
  %v4261 = vpop.f32.mrb[0].mxu0
  %v4262 = vadd.f32 0.0, %v4261
  %v4263 = vpop.f32.mrb[0].mxu0
  %v4264 = vadd.f32 0.0, %v4263
  %v4265 = vpop.f32.mrb[0].mxu0
  %v4266 = vadd.f32 0.0, %v4265
  %v4267 = vpop.f32.mrb[0].mxu0
  %v4268 = vadd.f32 0.0, %v4267
  %4269 = vmatprep.mubr.bf16.mxu0 0
  %4270 = vmatmul.mubr.bf16.gmra.mrb[0].mxu0 %v3619
  %v4271 = vpop.f32.mrb[0].mxu0
  %v4272 = vadd.f32 0.0, %v4271
  %v4273 = vpop.f32.mrb[0].mxu0
  %v4274 = vadd.f32 0.0, %v4273
  %v4275 = vpop.f32.mrb[0].mxu0
  %v4276 = vadd.f32 0.0, %v4275
  %v4277 = vpop.f32.mrb[0].mxu0
  %v4278 = vadd.f32 0.0, %v4277
  %4279 = vdwg.mxu0
  %4280 = vmatprep.subr.bf16.mxu0 0
  %4281 = vmatpush1.bf16.msra.mxu0 %v3932
  %4282 = vmatprep.subr.bf16.mxu0 0
  %4283 = vmatpush1.bf16.msra.mxu0 %v3941
  %4284 = vmatprep.subr.bf16.mxu0 0
  %4285 = vmatpush1.bf16.msra.mxu0 %v3950
  %4286 = vmatprep.subr.bf16.mxu0 0
  %4287 = vmatpush1.bf16.msra.mxu0 %v3959
  %4288 = vmatprep.subr.bf16.mxu0 0
  %4289 = vmatpush1.bf16.msra.mxu0 %v3968
  %4290 = vmatprep.subr.bf16.mxu0 0
  %4291 = vmatpush1.bf16.msra.mxu0 %v3977
  %4292 = vmatprep.subr.bf16.mxu0 0
  %4293 = vmatpush1.bf16.msra.mxu0 %v3986
  %4294 = vmatprep.subr.bf16.mxu0 0
  %4295 = vmatpush1.bf16.msra.mxu0 %v3995
  %4296 = vmatprep.subr.bf16.mxu0 0
  %4297 = vmatpush1.bf16.msra.mxu0 0
  %4298 = vmatprep.subr.bf16.mxu0 0
  %4299 = vmatpush1.bf16.msra.mxu0 0
  %4300 = vmatprep.subr.bf16.mxu0 0
  %4301 = vmatpush1.bf16.msra.mxu0 0
  %4302 = vmatprep.subr.bf16.mxu0 0
  %4303 = vmatpush1.bf16.msra.mxu0 0
  %4304 = vmatprep.subr.bf16.mxu0 0
  %4305 = vmatpush1.bf16.msra.mxu0 0
  %4306 = vmatprep.subr.bf16.mxu0 0
  %4307 = vmatpush1.bf16.msra.mxu0 0
  %4308 = vmatprep.subr.bf16.mxu0 0
  %4309 = vmatpush1.bf16.msra.mxu0 0
  %4310 = vmatprep.subr.bf16.mxu0 0
  %4311 = vmatpush1.bf16.msra.mxu0 0
  %4312 = vmatprep.mubr.bf16.mxu0 0
  %4313 = vmatmul.mubr.bf16.gmra.mrb[0].mxu0 %v3618
  %v4314 = vpop.f32.mrb[0].mxu0
  %v4315 = vadd.f32 0.0, %v4314
  %v4316 = vpop.f32.mrb[0].mxu0
  %v4317 = vpop.f32.mrb[0].mxu0
  %v4318 = vadd.f32 0.0, %v4317
  %v4319 = vpop.f32.mrb[0].mxu0
  %4320 = vmatprep.mubr.bf16.mxu0 0
  %4321 = vmatmul.mubr.bf16.gmra.mrb[0].mxu0 %v3619
  %v4322 = vpop.f32.mrb[0].mxu0
  %v4323 = vadd.f32 0.0, %v4322
  %v4324 = vpop.f32.mrb[0].mxu0
  %v4325 = vpop.f32.mrb[0].mxu0
  %v4326 = vadd.f32 0.0, %v4325
  %v4327 = vpop.f32.mrb[0].mxu0
  %4328 = vdwg.mxu0
  %v4329 = vpack.c.bf16 %v4107, %v4103
  %v4330 = vpack.c.bf16 %v4109, %v4105
  %v4331 = vpack.c.bf16 %v4160, %v4156
  %v4332 = vpack.c.bf16 %v4162, %v4158
  %v4333 = vpack.c.bf16 %v4213, %v4209
  %v4334 = vpack.c.bf16 %v4215, %v4211
  %v4335 = vpack.c.bf16 %v4266, %v4262
  %v4336 = vpack.c.bf16 %v4268, %v4264
  %v4337 = vpack.c.bf16 %v4318, %v4315
  %v4338 = vpack.c.bf16 %v4117, %v4113
  %v4339 = vpack.c.bf16 %v4119, %v4115
  %v4340 = vpack.c.bf16 %v4170, %v4166
  %v4341 = vpack.c.bf16 %v4172, %v4168
  %v4342 = vpack.c.bf16 %v4223, %v4219
  %v4343 = vpack.c.bf16 %v4225, %v4221
  %v4344 = vpack.c.bf16 %v4276, %v4272
  %v4345 = vpack.c.bf16 %v4278, %v4274
  %v4346 = vpack.c.bf16 %v4326, %v4323
  %v4347 = vld [vmem:[%s11] sm:$0xf]
  %v4348 = vld [vmem:[%s11 + $0x4] sm:$0xf]
  %v4349 = vld [vmem:[%s11 + $0x8] sm:$0xf]
  %v4350 = vld [vmem:[%s11 + $0xc] sm:$0xf]
  %v4351 = vld [vmem:[%s11 + $0x10] sm:$0xf]
  %v4352 = vld [vmem:[%s11 + $0x14] sm:$0xf]
  %v4353 = vld [vmem:[%s11 + $0x18] sm:$0xf]
  %v4354 = vld [vmem:[%s11 + $0x1c] sm:$0xf]
  %v4359 = vunpack.c.l.b16 %v4351
  %v4360 = vunpack.c.l.b16 %v4352
  %v4361 = vunpack.c.l.b16 %v4353
  %v4362 = vunpack.c.l.b16 %v4354
  %v4363 = vpack.c.b16 %v4360, %v4359
  %v4364 = vpack.c.b16 %v4362, %v4361
  %v4366 = vsel %vm2845, %v4363, 0
  %v4369 = vsel %vm2845, %v4364, 0
  %4371 = vmatprep.subr.bf16.mxu0 0
  %4372 = vmatpush1.bf16.msra.mxu0 %v4330
  %4373 = vmatprep.subr.bf16.mxu0 0
  %4374 = vmatpush1.bf16.msra.mxu0 %v4339
  %4375 = vmatprep.subr.bf16.mxu0 0
  %4376 = vmatpush1.bf16.msra.mxu0 0
  %4377 = vmatprep.subr.bf16.mxu0 0
  %4378 = vmatpush1.bf16.msra.mxu0 0
  %4379 = vmatprep.subr.bf16.mxu0 0
  %4380 = vmatpush1.bf16.msra.mxu0 0
  %4381 = vmatprep.subr.bf16.mxu0 0
  %4382 = vmatpush1.bf16.msra.mxu0 0
  %4383 = vmatprep.subr.bf16.mxu0 0
  %4384 = vmatpush1.bf16.msra.mxu0 0
  %4385 = vmatprep.subr.bf16.mxu0 0
  %4386 = vmatpush1.bf16.msra.mxu0 0
  %4387 = vmatprep.subr.bf16.mxu0 0
  %4388 = vmatpush1.bf16.msra.mxu0 0
  %4389 = vmatprep.subr.bf16.mxu0 0
  %4390 = vmatpush1.bf16.msra.mxu0 0
  %4391 = vmatprep.subr.bf16.mxu0 0
  %4392 = vmatpush1.bf16.msra.mxu0 0
  %4393 = vmatprep.subr.bf16.mxu0 0
  %4394 = vmatpush1.bf16.msra.mxu0 0
  %4395 = vmatprep.subr.bf16.mxu0 0
  %4396 = vmatpush1.bf16.msra.mxu0 0
  %4397 = vmatprep.subr.bf16.mxu0 0
  %4398 = vmatpush1.bf16.msra.mxu0 0
  %4399 = vmatprep.subr.bf16.mxu0 0
  %4400 = vmatpush1.bf16.msra.mxu0 0
  %4401 = vmatprep.subr.bf16.mxu0 0
  %4402 = vmatpush1.bf16.msra.mxu0 0
  %4403 = vmatprep.mubr.bf16.mxu0 0
  %4404 = vmatmul.mubr.bf16.gmra.mrb[0].mxu0 %v4366
  %v4405 = vpop.f32.mrb[0].mxu0
  %v4406 = vadd.f32 0.0, %v4405
  %v4407 = vpop.f32.mrb[0].mxu0
  %v4408 = vpop.f32.mrb[0].mxu0
  %v4409 = vadd.f32 0.0, %v4408
  %v4410 = vpop.f32.mrb[0].mxu0
  %4411 = vmatprep.mubr.bf16.mxu0 0
  %4412 = vmatmul.mubr.bf16.gmra.mrb[0].mxu0 %v4369
  %v4413 = vpop.f32.mrb[0].mxu0
  %v4414 = vadd.f32 0.0, %v4413
  %v4415 = vpop.f32.mrb[0].mxu0
  %v4416 = vpop.f32.mrb[0].mxu0
  %v4417 = vadd.f32 0.0, %v4416
  %v4418 = vpop.f32.mrb[0].mxu0
  %4419 = vdwg.mxu0
  %v4424 = vunpack.c.l.b16 %v4347
  %v4425 = vunpack.c.l.b16 %v4348
  %v4426 = vunpack.c.l.b16 %v4349
  %v4427 = vunpack.c.l.b16 %v4350
  %v4428 = vpack.c.b16 %v4425, %v4424
  %v4429 = vpack.c.b16 %v4427, %v4426
  %v4431 = vsel %vm2845, %v4428, 0
  %v4434 = vsel %vm2845, %v4429, 0
  %4436 = vmatprep.subr.bf16.mxu0 0
  %4437 = vmatpush1.bf16.msra.mxu0 %v4329
  %4438 = vmatprep.subr.bf16.mxu0 0
  %4439 = vmatpush1.bf16.msra.mxu0 %v4338
  %4440 = vmatprep.subr.bf16.mxu0 0
  %4441 = vmatpush1.bf16.msra.mxu0 0
  %4442 = vmatprep.subr.bf16.mxu0 0
  %4443 = vmatpush1.bf16.msra.mxu0 0
  %4444 = vmatprep.subr.bf16.mxu0 0
  %4445 = vmatpush1.bf16.msra.mxu0 0
  %4446 = vmatprep.subr.bf16.mxu0 0
  %4447 = vmatpush1.bf16.msra.mxu0 0
  %4448 = vmatprep.subr.bf16.mxu0 0
  %4449 = vmatpush1.bf16.msra.mxu0 0
  %4450 = vmatprep.subr.bf16.mxu0 0
  %4451 = vmatpush1.bf16.msra.mxu0 0
  %4452 = vmatprep.subr.bf16.mxu0 0
  %4453 = vmatpush1.bf16.msra.mxu0 0
  %4454 = vmatprep.subr.bf16.mxu0 0
  %4455 = vmatpush1.bf16.msra.mxu0 0
  %4456 = vmatprep.subr.bf16.mxu0 0
  %4457 = vmatpush1.bf16.msra.mxu0 0
  %4458 = vmatprep.subr.bf16.mxu0 0
  %4459 = vmatpush1.bf16.msra.mxu0 0
  %4460 = vmatprep.subr.bf16.mxu0 0
  %4461 = vmatpush1.bf16.msra.mxu0 0
  %4462 = vmatprep.subr.bf16.mxu0 0
  %4463 = vmatpush1.bf16.msra.mxu0 0
  %4464 = vmatprep.subr.bf16.mxu0 0
  %4465 = vmatpush1.bf16.msra.mxu0 0
  %4466 = vmatprep.subr.bf16.mxu0 0
  %4467 = vmatpush1.bf16.msra.mxu0 0
  %4468 = vmatprep.mubr.bf16.mxu0 0
  %4469 = vmatmul.mubr.bf16.gmra.mrb[0].mxu0 %v4431
  %v4470 = vpop.f32.mrb[0].mxu0
  %v4471 = vadd.f32 %v4406, %v4470
  %v4472 = vpop.f32.mrb[0].mxu0
  %v4473 = vpop.f32.mrb[0].mxu0
  %v4474 = vadd.f32 %v4409, %v4473
  %v4475 = vpop.f32.mrb[0].mxu0
  %4476 = vmatprep.mubr.bf16.mxu0 0
  %4477 = vmatmul.mubr.bf16.gmra.mrb[0].mxu0 %v4434
  %v4478 = vpop.f32.mrb[0].mxu0
  %v4479 = vadd.f32 %v4414, %v4478
  %v4480 = vpop.f32.mrb[0].mxu0
  %v4481 = vpop.f32.mrb[0].mxu0
  %v4482 = vadd.f32 %v4417, %v4481
  %v4483 = vpop.f32.mrb[0].mxu0
  %4484 = vdwg.mxu0
  %v4485 = vld [vmem:[%s11 + $0x20] sm:$0xf]
  %v4486 = vld [vmem:[%s11 + $0x24] sm:$0xf]
  %v4487 = vld [vmem:[%s11 + $0x28] sm:$0xf]
  %v4488 = vld [vmem:[%s11 + $0x2c] sm:$0xf]
  %v4493 = vunpack.c.l.b16 %v4485
  %v4494 = vunpack.c.l.b16 %v4486
  %v4495 = vunpack.c.l.b16 %v4487
  %v4496 = vunpack.c.l.b16 %v4488
  %v4497 = vpack.c.b16 %v4494, %v4493
  %v4498 = vpack.c.b16 %v4496, %v4495
  %v4500 = vsel %vm2845, %v4497, 0
  %v4503 = vsel %vm2845, %v4498, 0
  %4505 = vmatprep.subr.bf16.mxu0 0
  %4506 = vmatpush1.bf16.msra.mxu0 %v4331
  %4507 = vmatprep.subr.bf16.mxu0 0
  %4508 = vmatpush1.bf16.msra.mxu0 %v4340
  %4509 = vmatprep.subr.bf16.mxu0 0
  %4510 = vmatpush1.bf16.msra.mxu0 0
  %4511 = vmatprep.subr.bf16.mxu0 0
  %4512 = vmatpush1.bf16.msra.mxu0 0
  %4513 = vmatprep.subr.bf16.mxu0 0
  %4514 = vmatpush1.bf16.msra.mxu0 0
  %4515 = vmatprep.subr.bf16.mxu0 0
  %4516 = vmatpush1.bf16.msra.mxu0 0
  %4517 = vmatprep.subr.bf16.mxu0 0
  %4518 = vmatpush1.bf16.msra.mxu0 0
  %4519 = vmatprep.subr.bf16.mxu0 0
  %4520 = vmatpush1.bf16.msra.mxu0 0
  %4521 = vmatprep.subr.bf16.mxu0 0
  %4522 = vmatpush1.bf16.msra.mxu0 0
  %4523 = vmatprep.subr.bf16.mxu0 0
  %4524 = vmatpush1.bf16.msra.mxu0 0
  %4525 = vmatprep.subr.bf16.mxu0 0
  %4526 = vmatpush1.bf16.msra.mxu0 0
  %4527 = vmatprep.subr.bf16.mxu0 0
  %4528 = vmatpush1.bf16.msra.mxu0 0
  %4529 = vmatprep.subr.bf16.mxu0 0
  %4530 = vmatpush1.bf16.msra.mxu0 0
  %4531 = vmatprep.subr.bf16.mxu0 0
  %4532 = vmatpush1.bf16.msra.mxu0 0
  %4533 = vmatprep.subr.bf16.mxu0 0
  %4534 = vmatpush1.bf16.msra.mxu0 0
  %4535 = vmatprep.subr.bf16.mxu0 0
  %4536 = vmatpush1.bf16.msra.mxu0 0
  %4537 = vmatprep.mubr.bf16.mxu0 0
  %4538 = vmatmul.mubr.bf16.gmra.mrb[0].mxu0 %v4500
  %v4539 = vpop.f32.mrb[0].mxu0
  %v4540 = vadd.f32 0.0, %v4539
  %v4541 = vpop.f32.mrb[0].mxu0
  %v4542 = vpop.f32.mrb[0].mxu0
  %v4543 = vadd.f32 0.0, %v4542
  %v4544 = vpop.f32.mrb[0].mxu0
  %4545 = vmatprep.mubr.bf16.mxu0 0
  %4546 = vmatmul.mubr.bf16.gmra.mrb[0].mxu0 %v4503
  %v4547 = vpop.f32.mrb[0].mxu0
  %v4548 = vadd.f32 0.0, %v4547
  %v4549 = vpop.f32.mrb[0].mxu0
  %v4550 = vpop.f32.mrb[0].mxu0
  %v4551 = vadd.f32 0.0, %v4550
  %v4552 = vpop.f32.mrb[0].mxu0
  %4553 = vdwg.mxu0
  %v4554 = vadd.f32 %v4471, %v4540
  %v4555 = vadd.f32 %v4474, %v4543
  %v4556 = vadd.f32 %v4479, %v4548
  %v4557 = vadd.f32 %v4482, %v4551
  %v4558 = vld [vmem:[%s11 + $0x30] sm:$0xf]
  %v4559 = vld [vmem:[%s11 + $0x34] sm:$0xf]
  %v4560 = vld [vmem:[%s11 + $0x38] sm:$0xf]
  %v4561 = vld [vmem:[%s11 + $0x3c] sm:$0xf]
  %v4566 = vunpack.c.l.b16 %v4558
  %v4567 = vunpack.c.l.b16 %v4559
  %v4568 = vunpack.c.l.b16 %v4560
  %v4569 = vunpack.c.l.b16 %v4561
  %v4570 = vpack.c.b16 %v4567, %v4566
  %v4571 = vpack.c.b16 %v4569, %v4568
  %v4573 = vsel %vm2845, %v4570, 0
  %v4576 = vsel %vm2845, %v4571, 0
  %4578 = vmatprep.subr.bf16.mxu0 0
  %4579 = vmatpush1.bf16.msra.mxu0 %v4332
  %4580 = vmatprep.subr.bf16.mxu0 0
  %4581 = vmatpush1.bf16.msra.mxu0 %v4341
  %4582 = vmatprep.subr.bf16.mxu0 0
  %4583 = vmatpush1.bf16.msra.mxu0 0
  %4584 = vmatprep.subr.bf16.mxu0 0
  %4585 = vmatpush1.bf16.msra.mxu0 0
  %4586 = vmatprep.subr.bf16.mxu0 0
  %4587 = vmatpush1.bf16.msra.mxu0 0
  %4588 = vmatprep.subr.bf16.mxu0 0
  %4589 = vmatpush1.bf16.msra.mxu0 0
  %4590 = vmatprep.subr.bf16.mxu0 0
  %4591 = vmatpush1.bf16.msra.mxu0 0
  %4592 = vmatprep.subr.bf16.mxu0 0
  %4593 = vmatpush1.bf16.msra.mxu0 0
  %4594 = vmatprep.subr.bf16.mxu0 0
  %4595 = vmatpush1.bf16.msra.mxu0 0
  %4596 = vmatprep.subr.bf16.mxu0 0
  %4597 = vmatpush1.bf16.msra.mxu0 0
  %4598 = vmatprep.subr.bf16.mxu0 0
  %4599 = vmatpush1.bf16.msra.mxu0 0
  %4600 = vmatprep.subr.bf16.mxu0 0
  %4601 = vmatpush1.bf16.msra.mxu0 0
  %4602 = vmatprep.subr.bf16.mxu0 0
  %4603 = vmatpush1.bf16.msra.mxu0 0
  %4604 = vmatprep.subr.bf16.mxu0 0
  %4605 = vmatpush1.bf16.msra.mxu0 0
  %4606 = vmatprep.subr.bf16.mxu0 0
  %4607 = vmatpush1.bf16.msra.mxu0 0
  %4608 = vmatprep.subr.bf16.mxu0 0
  %4609 = vmatpush1.bf16.msra.mxu0 0
  %4610 = vmatprep.mubr.bf16.mxu0 0
  %4611 = vmatmul.mubr.bf16.gmra.mrb[0].mxu0 %v4573
  %v4612 = vpop.f32.mrb[0].mxu0
  %v4613 = vadd.f32 0.0, %v4612
  %v4614 = vpop.f32.mrb[0].mxu0
  %v4615 = vpop.f32.mrb[0].mxu0
  %v4616 = vadd.f32 0.0, %v4615
  %v4617 = vpop.f32.mrb[0].mxu0
  %4618 = vmatprep.mubr.bf16.mxu0 0
  %4619 = vmatmul.mubr.bf16.gmra.mrb[0].mxu0 %v4576
  %v4620 = vpop.f32.mrb[0].mxu0
  %v4621 = vadd.f32 0.0, %v4620
  %v4622 = vpop.f32.mrb[0].mxu0
  %v4623 = vpop.f32.mrb[0].mxu0
  %v4624 = vadd.f32 0.0, %v4623
  %v4625 = vpop.f32.mrb[0].mxu0
  %4626 = vdwg.mxu0
  %v4627 = vadd.f32 %v4554, %v4613
  %v4628 = vadd.f32 %v4555, %v4616
  %v4629 = vadd.f32 %v4556, %v4621
  %v4630 = vadd.f32 %v4557, %v4624
  %v4631 = vld [vmem:[%s11 + $0x40] sm:$0xf]
  %v4632 = vld [vmem:[%s11 + $0x44] sm:$0xf]
  %v4633 = vld [vmem:[%s11 + $0x48] sm:$0xf]
  %v4634 = vld [vmem:[%s11 + $0x4c] sm:$0xf]
  %v4639 = vunpack.c.l.b16 %v4631
  %v4640 = vunpack.c.l.b16 %v4632
  %v4641 = vunpack.c.l.b16 %v4633
  %v4642 = vunpack.c.l.b16 %v4634
  %v4643 = vpack.c.b16 %v4640, %v4639
  %v4644 = vpack.c.b16 %v4642, %v4641
  %v4646 = vsel %vm2845, %v4643, 0
  %v4649 = vsel %vm2845, %v4644, 0
  %4651 = vmatprep.subr.bf16.mxu0 0
  %4652 = vmatpush1.bf16.msra.mxu0 %v4333
  %4653 = vmatprep.subr.bf16.mxu0 0
  %4654 = vmatpush1.bf16.msra.mxu0 %v4342
  %4655 = vmatprep.subr.bf16.mxu0 0
  %4656 = vmatpush1.bf16.msra.mxu0 0
  %4657 = vmatprep.subr.bf16.mxu0 0
  %4658 = vmatpush1.bf16.msra.mxu0 0
  %4659 = vmatprep.subr.bf16.mxu0 0
  %4660 = vmatpush1.bf16.msra.mxu0 0
  %4661 = vmatprep.subr.bf16.mxu0 0
  %4662 = vmatpush1.bf16.msra.mxu0 0
  %4663 = vmatprep.subr.bf16.mxu0 0
  %4664 = vmatpush1.bf16.msra.mxu0 0
  %4665 = vmatprep.subr.bf16.mxu0 0
  %4666 = vmatpush1.bf16.msra.mxu0 0
  %4667 = vmatprep.subr.bf16.mxu0 0
  %4668 = vmatpush1.bf16.msra.mxu0 0
  %4669 = vmatprep.subr.bf16.mxu0 0
  %4670 = vmatpush1.bf16.msra.mxu0 0
  %4671 = vmatprep.subr.bf16.mxu0 0
  %4672 = vmatpush1.bf16.msra.mxu0 0
  %4673 = vmatprep.subr.bf16.mxu0 0
  %4674 = vmatpush1.bf16.msra.mxu0 0
  %4675 = vmatprep.subr.bf16.mxu0 0
  %4676 = vmatpush1.bf16.msra.mxu0 0
  %4677 = vmatprep.subr.bf16.mxu0 0
  %4678 = vmatpush1.bf16.msra.mxu0 0
  %4679 = vmatprep.subr.bf16.mxu0 0
  %4680 = vmatpush1.bf16.msra.mxu0 0
  %4681 = vmatprep.subr.bf16.mxu0 0
  %4682 = vmatpush1.bf16.msra.mxu0 0
  %4683 = vmatprep.mubr.bf16.mxu0 0
  %4684 = vmatmul.mubr.bf16.gmra.mrb[0].mxu0 %v4646
  %v4685 = vpop.f32.mrb[0].mxu0
  %v4686 = vadd.f32 0.0, %v4685
  %v4687 = vpop.f32.mrb[0].mxu0
  %v4688 = vpop.f32.mrb[0].mxu0
  %v4689 = vadd.f32 0.0, %v4688
  %v4690 = vpop.f32.mrb[0].mxu0
  %4691 = vmatprep.mubr.bf16.mxu0 0
  %4692 = vmatmul.mubr.bf16.gmra.mrb[0].mxu0 %v4649
  %v4693 = vpop.f32.mrb[0].mxu0
  %v4694 = vadd.f32 0.0, %v4693
  %v4695 = vpop.f32.mrb[0].mxu0
  %v4696 = vpop.f32.mrb[0].mxu0
  %v4697 = vadd.f32 0.0, %v4696
  %v4698 = vpop.f32.mrb[0].mxu0
  %4699 = vdwg.mxu0
  %v4700 = vadd.f32 %v4627, %v4686
  %v4701 = vadd.f32 %v4628, %v4689
  %v4702 = vadd.f32 %v4629, %v4694
  %v4703 = vadd.f32 %v4630, %v4697
  %v4704 = vld [vmem:[%s11 + $0x50] sm:$0xf]
  %v4705 = vld [vmem:[%s11 + $0x54] sm:$0xf]
  %v4706 = vld [vmem:[%s11 + $0x58] sm:$0xf]
  %v4707 = vld [vmem:[%s11 + $0x5c] sm:$0xf]
  %v4712 = vunpack.c.l.b16 %v4704
  %v4713 = vunpack.c.l.b16 %v4705
  %v4714 = vunpack.c.l.b16 %v4706
  %v4715 = vunpack.c.l.b16 %v4707
  %v4716 = vpack.c.b16 %v4713, %v4712
  %v4717 = vpack.c.b16 %v4715, %v4714
  %v4719 = vsel %vm2845, %v4716, 0
  %v4722 = vsel %vm2845, %v4717, 0
  %4724 = vmatprep.subr.bf16.mxu0 0
  %4725 = vmatpush1.bf16.msra.mxu0 %v4334
  %4726 = vmatprep.subr.bf16.mxu0 0
  %4727 = vmatpush1.bf16.msra.mxu0 %v4343
  %4728 = vmatprep.subr.bf16.mxu0 0
  %4729 = vmatpush1.bf16.msra.mxu0 0
  %4730 = vmatprep.subr.bf16.mxu0 0
  %4731 = vmatpush1.bf16.msra.mxu0 0
  %4732 = vmatprep.subr.bf16.mxu0 0
  %4733 = vmatpush1.bf16.msra.mxu0 0
  %4734 = vmatprep.subr.bf16.mxu0 0
  %4735 = vmatpush1.bf16.msra.mxu0 0
  %4736 = vmatprep.subr.bf16.mxu0 0
  %4737 = vmatpush1.bf16.msra.mxu0 0
  %4738 = vmatprep.subr.bf16.mxu0 0
  %4739 = vmatpush1.bf16.msra.mxu0 0
  %4740 = vmatprep.subr.bf16.mxu0 0
  %4741 = vmatpush1.bf16.msra.mxu0 0
  %4742 = vmatprep.subr.bf16.mxu0 0
  %4743 = vmatpush1.bf16.msra.mxu0 0
  %4744 = vmatprep.subr.bf16.mxu0 0
  %4745 = vmatpush1.bf16.msra.mxu0 0
  %4746 = vmatprep.subr.bf16.mxu0 0
  %4747 = vmatpush1.bf16.msra.mxu0 0
  %4748 = vmatprep.subr.bf16.mxu0 0
  %4749 = vmatpush1.bf16.msra.mxu0 0
  %4750 = vmatprep.subr.bf16.mxu0 0
  %4751 = vmatpush1.bf16.msra.mxu0 0
  %4752 = vmatprep.subr.bf16.mxu0 0
  %4753 = vmatpush1.bf16.msra.mxu0 0
  %4754 = vmatprep.subr.bf16.mxu0 0
  %4755 = vmatpush1.bf16.msra.mxu0 0
  %4756 = vmatprep.mubr.bf16.mxu0 0
  %4757 = vmatmul.mubr.bf16.gmra.mrb[0].mxu0 %v4719
  %v4758 = vpop.f32.mrb[0].mxu0
  %v4759 = vadd.f32 0.0, %v4758
  %v4760 = vpop.f32.mrb[0].mxu0
  %v4761 = vpop.f32.mrb[0].mxu0
  %v4762 = vadd.f32 0.0, %v4761
  %v4763 = vpop.f32.mrb[0].mxu0
  %4764 = vmatprep.mubr.bf16.mxu0 0
  %4765 = vmatmul.mubr.bf16.gmra.mrb[0].mxu0 %v4722
  %v4766 = vpop.f32.mrb[0].mxu0
  %v4767 = vadd.f32 0.0, %v4766
  %v4768 = vpop.f32.mrb[0].mxu0
  %v4769 = vpop.f32.mrb[0].mxu0
  %v4770 = vadd.f32 0.0, %v4769
  %v4771 = vpop.f32.mrb[0].mxu0
  %4772 = vdwg.mxu0
  %v4773 = vadd.f32 %v4700, %v4759
  %v4774 = vadd.f32 %v4701, %v4762
  %v4775 = vadd.f32 %v4702, %v4767
  %v4776 = vadd.f32 %v4703, %v4770
  %v4777 = vld [vmem:[%s11 + $0x60] sm:$0xf]
  %v4778 = vld [vmem:[%s11 + $0x64] sm:$0xf]
  %v4779 = vld [vmem:[%s11 + $0x68] sm:$0xf]
  %v4780 = vld [vmem:[%s11 + $0x6c] sm:$0xf]
  %v4785 = vunpack.c.l.b16 %v4777
  %v4786 = vunpack.c.l.b16 %v4778
  %v4787 = vunpack.c.l.b16 %v4779
  %v4788 = vunpack.c.l.b16 %v4780
  %v4789 = vpack.c.b16 %v4786, %v4785
  %v4790 = vpack.c.b16 %v4788, %v4787
  %v4792 = vsel %vm2845, %v4789, 0
  %v4795 = vsel %vm2845, %v4790, 0
  %4797 = vmatprep.subr.bf16.mxu0 0
  %4798 = vmatpush1.bf16.msra.mxu0 %v4335
  %4799 = vmatprep.subr.bf16.mxu0 0
  %4800 = vmatpush1.bf16.msra.mxu0 %v4344
  %4801 = vmatprep.subr.bf16.mxu0 0
  %4802 = vmatpush1.bf16.msra.mxu0 0
  %4803 = vmatprep.subr.bf16.mxu0 0
  %4804 = vmatpush1.bf16.msra.mxu0 0
  %4805 = vmatprep.subr.bf16.mxu0 0
  %4806 = vmatpush1.bf16.msra.mxu0 0
  %4807 = vmatprep.subr.bf16.mxu0 0
  %4808 = vmatpush1.bf16.msra.mxu0 0
  %4809 = vmatprep.subr.bf16.mxu0 0
  %4810 = vmatpush1.bf16.msra.mxu0 0
  %4811 = vmatprep.subr.bf16.mxu0 0
  %4812 = vmatpush1.bf16.msra.mxu0 0
  %4813 = vmatprep.subr.bf16.mxu0 0
  %4814 = vmatpush1.bf16.msra.mxu0 0
  %4815 = vmatprep.subr.bf16.mxu0 0
  %4816 = vmatpush1.bf16.msra.mxu0 0
  %4817 = vmatprep.subr.bf16.mxu0 0
  %4818 = vmatpush1.bf16.msra.mxu0 0
  %4819 = vmatprep.subr.bf16.mxu0 0
  %4820 = vmatpush1.bf16.msra.mxu0 0
  %4821 = vmatprep.subr.bf16.mxu0 0
  %4822 = vmatpush1.bf16.msra.mxu0 0
  %4823 = vmatprep.subr.bf16.mxu0 0
  %4824 = vmatpush1.bf16.msra.mxu0 0
  %4825 = vmatprep.subr.bf16.mxu0 0
  %4826 = vmatpush1.bf16.msra.mxu0 0
  %4827 = vmatprep.subr.bf16.mxu0 0
  %4828 = vmatpush1.bf16.msra.mxu0 0
  %4829 = vmatprep.mubr.bf16.mxu0 0
  %4830 = vmatmul.mubr.bf16.gmra.mrb[0].mxu0 %v4792
  %v4831 = vpop.f32.mrb[0].mxu0
  %v4832 = vadd.f32 0.0, %v4831
  %v4833 = vpop.f32.mrb[0].mxu0
  %v4834 = vpop.f32.mrb[0].mxu0
  %v4835 = vadd.f32 0.0, %v4834
  %v4836 = vpop.f32.mrb[0].mxu0
  %4837 = vmatprep.mubr.bf16.mxu0 0
  %4838 = vmatmul.mubr.bf16.gmra.mrb[0].mxu0 %v4795
  %v4839 = vpop.f32.mrb[0].mxu0
  %v4840 = vadd.f32 0.0, %v4839
  %v4841 = vpop.f32.mrb[0].mxu0
  %v4842 = vpop.f32.mrb[0].mxu0
  %v4843 = vadd.f32 0.0, %v4842
  %v4844 = vpop.f32.mrb[0].mxu0
  %4845 = vdwg.mxu0
  %v4846 = vadd.f32 %v4773, %v4832
  %v4847 = vadd.f32 %v4774, %v4835
  %v4848 = vadd.f32 %v4775, %v4840
  %v4849 = vadd.f32 %v4776, %v4843
  %v4850 = vld [vmem:[%s11 + $0x70] sm:$0xf]
  %v4851 = vld [vmem:[%s11 + $0x74] sm:$0xf]
  %v4852 = vld [vmem:[%s11 + $0x78] sm:$0xf]
  %v4853 = vld [vmem:[%s11 + $0x7c] sm:$0xf]
  %v4858 = vunpack.c.l.b16 %v4850
  %v4859 = vunpack.c.l.b16 %v4851
  %v4860 = vunpack.c.l.b16 %v4852
  %v4861 = vunpack.c.l.b16 %v4853
  %v4862 = vpack.c.b16 %v4859, %v4858
  %v4863 = vpack.c.b16 %v4861, %v4860
  %v4865 = vsel %vm2845, %v4862, 0
  %v4868 = vsel %vm2845, %v4863, 0
  %4870 = vmatprep.subr.bf16.mxu0 0
  %4871 = vmatpush1.bf16.msra.mxu0 %v4336
  %4872 = vmatprep.subr.bf16.mxu0 0
  %4873 = vmatpush1.bf16.msra.mxu0 %v4345
  %4874 = vmatprep.subr.bf16.mxu0 0
  %4875 = vmatpush1.bf16.msra.mxu0 0
  %4876 = vmatprep.subr.bf16.mxu0 0
  %4877 = vmatpush1.bf16.msra.mxu0 0
  %4878 = vmatprep.subr.bf16.mxu0 0
  %4879 = vmatpush1.bf16.msra.mxu0 0
  %4880 = vmatprep.subr.bf16.mxu0 0
  %4881 = vmatpush1.bf16.msra.mxu0 0
  %4882 = vmatprep.subr.bf16.mxu0 0
  %4883 = vmatpush1.bf16.msra.mxu0 0
  %4884 = vmatprep.subr.bf16.mxu0 0
  %4885 = vmatpush1.bf16.msra.mxu0 0
  %4886 = vmatprep.subr.bf16.mxu0 0
  %4887 = vmatpush1.bf16.msra.mxu0 0
  %4888 = vmatprep.subr.bf16.mxu0 0
  %4889 = vmatpush1.bf16.msra.mxu0 0
  %4890 = vmatprep.subr.bf16.mxu0 0
  %4891 = vmatpush1.bf16.msra.mxu0 0
  %4892 = vmatprep.subr.bf16.mxu0 0
  %4893 = vmatpush1.bf16.msra.mxu0 0
  %4894 = vmatprep.subr.bf16.mxu0 0
  %4895 = vmatpush1.bf16.msra.mxu0 0
  %4896 = vmatprep.subr.bf16.mxu0 0
  %4897 = vmatpush1.bf16.msra.mxu0 0
  %4898 = vmatprep.subr.bf16.mxu0 0
  %4899 = vmatpush1.bf16.msra.mxu0 0
  %4900 = vmatprep.subr.bf16.mxu0 0
  %4901 = vmatpush1.bf16.msra.mxu0 0
  %4902 = vmatprep.mubr.bf16.mxu0 0
  %4903 = vmatmul.mubr.bf16.gmra.mrb[0].mxu0 %v4865
  %v4904 = vpop.f32.mrb[0].mxu0
  %v4905 = vadd.f32 0.0, %v4904
  %v4906 = vpop.f32.mrb[0].mxu0
  %v4907 = vpop.f32.mrb[0].mxu0
  %v4908 = vadd.f32 0.0, %v4907
  %v4909 = vpop.f32.mrb[0].mxu0
  %4910 = vmatprep.mubr.bf16.mxu0 0
  %4911 = vmatmul.mubr.bf16.gmra.mrb[0].mxu0 %v4868
  %v4912 = vpop.f32.mrb[0].mxu0
  %v4913 = vadd.f32 0.0, %v4912
  %v4914 = vpop.f32.mrb[0].mxu0
  %v4915 = vpop.f32.mrb[0].mxu0
  %v4916 = vadd.f32 0.0, %v4915
  %v4917 = vpop.f32.mrb[0].mxu0
  %4918 = vdwg.mxu0
  %v4919 = vadd.f32 %v4846, %v4905
  %v4920 = vadd.f32 %v4847, %v4908
  %v4921 = vadd.f32 %v4848, %v4913
  %v4922 = vadd.f32 %v4849, %v4916
  %v4923 = vld [vmem:[%s11 + $0x80] sm:$0xf]
  %v4924 = vld [vmem:[%s11 + $0x84] sm:$0xf]
  %v4925 = vld [vmem:[%s11 + $0x88] sm:$0xf]
  %v4926 = vld [vmem:[%s11 + $0x8c] sm:$0xf]
  %v4931 = vunpack.c.l.b16 %v4923
  %v4932 = vunpack.c.l.b16 %v4924
  %v4933 = vunpack.c.l.b16 %v4925
  %v4934 = vunpack.c.l.b16 %v4926
  %v4935 = vpack.c.b16 %v4932, %v4931
  %v4936 = vpack.c.b16 %v4934, %v4933
  %v4938 = vsel %vm2845, %v4935, 0
  %v4941 = vsel %vm2845, %v4936, 0
  %4943 = vmatprep.subr.bf16.mxu0 0
  %4944 = vmatpush1.bf16.msra.mxu0 %v4337
  %4945 = vmatprep.subr.bf16.mxu0 0
  %4946 = vmatpush1.bf16.msra.mxu0 %v4346
  %4947 = vmatprep.subr.bf16.mxu0 0
  %4948 = vmatpush1.bf16.msra.mxu0 0
  %4949 = vmatprep.subr.bf16.mxu0 0
  %4950 = vmatpush1.bf16.msra.mxu0 0
  %4951 = vmatprep.subr.bf16.mxu0 0
  %4952 = vmatpush1.bf16.msra.mxu0 0
  %4953 = vmatprep.subr.bf16.mxu0 0
  %4954 = vmatpush1.bf16.msra.mxu0 0
  %4955 = vmatprep.subr.bf16.mxu0 0
  %4956 = vmatpush1.bf16.msra.mxu0 0
  %4957 = vmatprep.subr.bf16.mxu0 0
  %4958 = vmatpush1.bf16.msra.mxu0 0
  %4959 = vmatprep.subr.bf16.mxu0 0
  %4960 = vmatpush1.bf16.msra.mxu0 0
  %4961 = vmatprep.subr.bf16.mxu0 0
  %4962 = vmatpush1.bf16.msra.mxu0 0
  %4963 = vmatprep.subr.bf16.mxu0 0
  %4964 = vmatpush1.bf16.msra.mxu0 0
  %4965 = vmatprep.subr.bf16.mxu0 0
  %4966 = vmatpush1.bf16.msra.mxu0 0
  %4967 = vmatprep.subr.bf16.mxu0 0
  %4968 = vmatpush1.bf16.msra.mxu0 0
  %4969 = vmatprep.subr.bf16.mxu0 0
  %4970 = vmatpush1.bf16.msra.mxu0 0
  %4971 = vmatprep.subr.bf16.mxu0 0
  %4972 = vmatpush1.bf16.msra.mxu0 0
  %4973 = vmatprep.subr.bf16.mxu0 0
  %4974 = vmatpush1.bf16.msra.mxu0 0
  %4975 = vmatprep.mubr.bf16.mxu0 0
  %4976 = vmatmul.mubr.bf16.gmra.mrb[0].mxu0 %v4938
  %v4977 = vpop.f32.mrb[0].mxu0
  %v4978 = vadd.f32 0.0, %v4977
  %v4979 = vpop.f32.mrb[0].mxu0
  %v4980 = vpop.f32.mrb[0].mxu0
  %v4981 = vadd.f32 0.0, %v4980
  %v4982 = vpop.f32.mrb[0].mxu0
  %4983 = vmatprep.mubr.bf16.mxu0 0
  %4984 = vmatmul.mubr.bf16.gmra.mrb[0].mxu0 %v4941
  %v4985 = vpop.f32.mrb[0].mxu0
  %v4986 = vadd.f32 0.0, %v4985
  %v4987 = vpop.f32.mrb[0].mxu0
  %v4988 = vpop.f32.mrb[0].mxu0
  %v4989 = vadd.f32 0.0, %v4988
  %v4990 = vpop.f32.mrb[0].mxu0
  %4991 = vdwg.mxu0
  %v4992 = vadd.f32 %v4919, %v4978
  %v4993 = vadd.f32 %v4920, %v4981
  %v4994 = vadd.f32 %v4921, %v4986
  %v4995 = vadd.f32 %v4922, %v4989
  %v4996 = vld [vmem:[%s12] sm:$0xff]
  %v4997 = vld [vmem:[%s12 + $0x8] sm:$0xff]
  %v4998 = vld [vmem:[%s12 + $0x10] sm:$0xff]
  %v4999 = vld [vmem:[%s12 + $0x18] sm:$0xff]
  %5001 = vset.pattern.permute.xlu0 0
  %5002 = vperm.xlu0 %5001, %v4996
  %v5003 = vpop.permute.xlu0 %5002
  %5006 = vset.pattern.permute.xlu0 0
  %5007 = vperm.xlu0 %5006, %v4997
  %v5008 = vpop.permute.xlu0 %5007
  %5011 = vset.pattern.permute.xlu0 0
  %5012 = vperm.xlu0 %5011, %v4998
  %v5013 = vpop.permute.xlu0 %5012
  %5016 = vset.pattern.permute.xlu0 0
  %5017 = vperm.xlu0 %5016, %v4999
  %v5018 = vpop.permute.xlu0 %5017
  %v5020 = vadd.f32 %v4992, %v5003
  %v5021 = vadd.f32 %v4993, %v5008
  %v5022 = vadd.f32 %v4994, %v5013
  %v5023 = vadd.f32 %v4995, %v5018
  %v5024 = vsel %vm2845, %v5020, 0.0
  %5025 = vadd.xlane.f32.xlu0 %v5024
  %v5026 = vpop.xlane.xlu0 %5025
  %v5027 = vsel %vm2845, %v5021, 0.0
  %5028 = vadd.xlane.f32.xlu0 %v5027
  %v5029 = vpop.xlane.xlu0 %5028
  %v5030 = vsel %vm2845, %v5022, 0.0
  %5031 = vadd.xlane.f32.xlu0 %v5030
  %v5032 = vpop.xlane.xlu0 %5031
  %v5033 = vsel %vm2845, %v5023, 0.0
  %5034 = vadd.xlane.f32.xlu0 %v5033
  %v5035 = vpop.xlane.xlu0 %5034
  %v5036 = vrcp.pop 32.0
  %v5037 = vmul.f32 %v5026, %v5036
  %v5038 = vmul.f32 %v5029, %v5036
  %v5039 = vmul.f32 %v5032, %v5036
  %v5040 = vmul.f32 %v5035, %v5036
  %v5041 = vsub.f32 %v5020, %v5037
  %v5042 = vsub.f32 %v5021, %v5038
  %v5043 = vsub.f32 %v5022, %v5039
  %v5044 = vsub.f32 %v5023, %v5040
  %v5045 = vmul.f32 %v5041, %v5041
  %v5046 = vmul.f32 %v5042, %v5042
  %v5047 = vmul.f32 %v5043, %v5043
  %v5048 = vmul.f32 %v5044, %v5044
  %v5049 = vsel %vm2845, %v5045, 0.0
  %5050 = vadd.xlane.f32.xlu0 %v5049
  %v5051 = vpop.xlane.xlu0 %5050
  %v5052 = vsel %vm2845, %v5046, 0.0
  %5053 = vadd.xlane.f32.xlu0 %v5052
  %v5054 = vpop.xlane.xlu0 %5053
  %v5055 = vsel %vm2845, %v5047, 0.0
  %5056 = vadd.xlane.f32.xlu0 %v5055
  %v5057 = vpop.xlane.xlu0 %5056
  %v5058 = vsel %vm2845, %v5048, 0.0
  %5059 = vadd.xlane.f32.xlu0 %v5058
  %v5060 = vpop.xlane.xlu0 %5059
  %v5061 = vmul.f32 %v5051, %v5036
  %v5062 = vmul.f32 %v5054, %v5036
  %v5063 = vmul.f32 %v5057, %v5036
  %v5064 = vmul.f32 %v5060, %v5036
  %v5065 = vld [vmem:[%s13] sm:$0xff]
  %v5066 = vld [vmem:[%s13 + $0x8] sm:$0xff]
  %v5067 = vld [vmem:[%s13 + $0x10] sm:$0xff]
  %v5068 = vld [vmem:[%s13 + $0x18] sm:$0xff]
  %v5069 = vadd.f32 %v5061, 1e-05
  %v5070 = vadd.f32 %v5062, 1e-05
  %v5071 = vadd.f32 %v5063, 1e-05
  %v5072 = vadd.f32 %v5064, 1e-05
  %v5073 = vrsqrt.pop %v5069
  %v5074 = vrsqrt.pop %v5070
  %v5075 = vrsqrt.pop %v5071
  %v5076 = vrsqrt.pop %v5072
  %v5077 = vmul.f32 %v5065, %v5073
  %v5078 = vmul.f32 %v5066, %v5074
  %v5079 = vmul.f32 %v5067, %v5075
  %v5080 = vmul.f32 %v5068, %v5076
  %v5081 = vld [vmem:[%s14] sm:$0xff]
  %v5082 = vld [vmem:[%s14 + $0x8] sm:$0xff]
  %v5083 = vld [vmem:[%s14 + $0x10] sm:$0xff]
  %v5084 = vld [vmem:[%s14 + $0x18] sm:$0xff]
  %v5085 = vmul.f32 %v5037, %v5077
  %v5086 = vmul.f32 %v5038, %v5078
  %v5087 = vmul.f32 %v5039, %v5079
  %v5088 = vmul.f32 %v5040, %v5080
  %v5089 = vsub.f32 %v5081, %v5085
  %v5090 = vsub.f32 %v5082, %v5086
  %v5091 = vsub.f32 %v5083, %v5087
  %v5092 = vsub.f32 %v5084, %v5088
  %5094 = vset.pattern.permute.xlu0 0
  %5095 = vperm.xlu0 %5094, %v5077
  %v5096 = vpop.permute.xlu0 %5095
  %5099 = vset.pattern.permute.xlu0 0
  %5100 = vperm.xlu0 %5099, %v5078
  %v5101 = vpop.permute.xlu0 %5100
  %5104 = vset.pattern.permute.xlu0 0
  %5105 = vperm.xlu0 %5104, %v5079
  %v5106 = vpop.permute.xlu0 %5105
  %5109 = vset.pattern.permute.xlu0 0
  %5110 = vperm.xlu0 %5109, %v5080
  %v5111 = vpop.permute.xlu0 %5110
  %v5113 = vmul.f32 %v5020, %v5096
  %v5114 = vmul.f32 %v5021, %v5101
  %v5115 = vmul.f32 %v5022, %v5106
  %v5116 = vmul.f32 %v5023, %v5111
  %5118 = vset.pattern.permute.xlu0 0
  %5119 = vperm.xlu0 %5118, %v5089
  %v5120 = vpop.permute.xlu0 %5119
  %5123 = vset.pattern.permute.xlu0 0
  %5124 = vperm.xlu0 %5123, %v5090
  %v5125 = vpop.permute.xlu0 %5124
  %5128 = vset.pattern.permute.xlu0 0
  %5129 = vperm.xlu0 %5128, %v5091
  %v5130 = vpop.permute.xlu0 %5129
  %5133 = vset.pattern.permute.xlu0 0
  %5134 = vperm.xlu0 %5133, %v5092
  %v5135 = vpop.permute.xlu0 %5134
  %v5137 = vadd.f32 %v5113, %v5120
  %v5138 = vadd.f32 %v5114, %v5125
  %v5139 = vadd.f32 %v5115, %v5130
  %v5140 = vadd.f32 %v5116, %v5135
  %v5141 = vmax.f32 %v5137, 0.0
  %v5142 = vmax.f32 %v5138, 0.0
  %v5143 = vmax.f32 %v5139, 0.0
  %v5144 = vmax.f32 %v5140, 0.0
  %v5145 = vpack.c.bf16 %v5142, %v5141
  %v5146 = vpack.c.bf16 %v5144, %v5143
  %v5147 = vld [vmem:[%s15] sm:$0xf]
  %v5148 = vld [vmem:[%s15 + $0x4] sm:$0xf]
  %v5149 = vld [vmem:[%s15 + $0x8] sm:$0xf]
  %v5150 = vld [vmem:[%s15 + $0xc] sm:$0xf]
  %v5155 = vunpack.c.l.b16 %v5147
  %v5156 = vunpack.c.l.b16 %v5148
  %v5157 = vunpack.c.l.b16 %v5149
  %v5158 = vunpack.c.l.b16 %v5150
  %v5159 = vpack.c.b16 %v5156, %v5155
  %v5160 = vpack.c.b16 %v5158, %v5157
  %v5164 = vsel %vm2845, %v5145, 0
  %v5167 = vsel %vm2845, %v5146, 0
  %5169 = vmatprep.subr.bf16.mxu0 0
  %5170 = vmatpush1.bf16.msra.mxu0 %v5159
  %5171 = vmatprep.subr.bf16.mxu0 0
  %5172 = vmatpush1.bf16.msra.mxu0 %v5160
  %5173 = vmatprep.subr.bf16.mxu0 0
  %5174 = vmatpush1.bf16.msra.mxu0 0
  %5175 = vmatprep.subr.bf16.mxu0 0
  %5176 = vmatpush1.bf16.msra.mxu0 0
  %5177 = vmatprep.subr.bf16.mxu0 0
  %5178 = vmatpush1.bf16.msra.mxu0 0
  %5179 = vmatprep.subr.bf16.mxu0 0
  %5180 = vmatpush1.bf16.msra.mxu0 0
  %5181 = vmatprep.subr.bf16.mxu0 0
  %5182 = vmatpush1.bf16.msra.mxu0 0
  %5183 = vmatprep.subr.bf16.mxu0 0
  %5184 = vmatpush1.bf16.msra.mxu0 0
  %5185 = vmatprep.subr.bf16.mxu0 0
  %5186 = vmatpush1.bf16.msra.mxu0 0
  %5187 = vmatprep.subr.bf16.mxu0 0
  %5188 = vmatpush1.bf16.msra.mxu0 0
  %5189 = vmatprep.subr.bf16.mxu0 0
  %5190 = vmatpush1.bf16.msra.mxu0 0
  %5191 = vmatprep.subr.bf16.mxu0 0
  %5192 = vmatpush1.bf16.msra.mxu0 0
  %5193 = vmatprep.subr.bf16.mxu0 0
  %5194 = vmatpush1.bf16.msra.mxu0 0
  %5195 = vmatprep.subr.bf16.mxu0 0
  %5196 = vmatpush1.bf16.msra.mxu0 0
  %5197 = vmatprep.subr.bf16.mxu0 0
  %5198 = vmatpush1.bf16.msra.mxu0 0
  %5199 = vmatprep.subr.bf16.mxu0 0
  %5200 = vmatpush1.bf16.msra.mxu0 0
  %5201 = vmatprep.mubr.bf16.mxu0 0
  %5202 = vmatmul.mubr.bf16.gmra.mrb[0].mxu0 %v5164
  %v5203 = vpop.f32.mrb[0].mxu0
  %v5204 = vadd.f32 0.0, %v5203
  %v5205 = vpop.f32.mrb[0].mxu0
  %v5206 = vpop.f32.mrb[0].mxu0
  %v5207 = vadd.f32 0.0, %v5206
  %v5208 = vpop.f32.mrb[0].mxu0
  %5209 = vmatprep.mubr.bf16.mxu0 0
  %5210 = vmatmul.mubr.bf16.gmra.mrb[0].mxu0 %v5167
  %v5211 = vpop.f32.mrb[0].mxu0
  %v5212 = vadd.f32 0.0, %v5211
  %v5213 = vpop.f32.mrb[0].mxu0
  %v5214 = vpop.f32.mrb[0].mxu0
  %v5215 = vadd.f32 0.0, %v5214
  %v5216 = vpop.f32.mrb[0].mxu0
  %5217 = vdwg.mxu0
  %v5218 = vpack.c.bf16 %v5207, %v5204
  %v5219 = vpack.c.bf16 %v5215, %v5212
  %v5220 = vld [vmem:[%s16] sm:$0xf]
  %v5221 = vld [vmem:[%s16 + $0x4] sm:$0xf]
  %v5222 = vld [vmem:[%s16 + $0x8] sm:$0xf]
  %v5223 = vld [vmem:[%s16 + $0xc] sm:$0xf]
  %v5224 = vld [vmem:[%s15 + $0x10] sm:$0xf]
  %v5225 = vld [vmem:[%s15 + $0x14] sm:$0xf]
  %v5226 = vld [vmem:[%s15 + $0x18] sm:$0xf]
  %v5227 = vld [vmem:[%s15 + $0x1c] sm:$0xf]
  %v5232 = vunpack.c.l.b16 %v5224
  %v5233 = vunpack.c.l.b16 %v5225
  %v5234 = vunpack.c.l.b16 %v5226
  %v5235 = vunpack.c.l.b16 %v5227
  %v5236 = vpack.c.b16 %v5233, %v5232
  %v5237 = vpack.c.b16 %v5235, %v5234
  %5240 = vmatprep.subr.bf16.mxu0 0
  %5241 = vmatpush1.bf16.msra.mxu0 %v5236
  %5242 = vmatprep.subr.bf16.mxu0 0
  %5243 = vmatpush1.bf16.msra.mxu0 %v5237
  %5244 = vmatprep.subr.bf16.mxu0 0
  %5245 = vmatpush1.bf16.msra.mxu0 0
  %5246 = vmatprep.subr.bf16.mxu0 0
  %5247 = vmatpush1.bf16.msra.mxu0 0
  %5248 = vmatprep.subr.bf16.mxu0 0
  %5249 = vmatpush1.bf16.msra.mxu0 0
  %5250 = vmatprep.subr.bf16.mxu0 0
  %5251 = vmatpush1.bf16.msra.mxu0 0
  %5252 = vmatprep.subr.bf16.mxu0 0
  %5253 = vmatpush1.bf16.msra.mxu0 0
  %5254 = vmatprep.subr.bf16.mxu0 0
  %5255 = vmatpush1.bf16.msra.mxu0 0
  %5256 = vmatprep.subr.bf16.mxu0 0
  %5257 = vmatpush1.bf16.msra.mxu0 0
  %5258 = vmatprep.subr.bf16.mxu0 0
  %5259 = vmatpush1.bf16.msra.mxu0 0
  %5260 = vmatprep.subr.bf16.mxu0 0
  %5261 = vmatpush1.bf16.msra.mxu0 0
  %5262 = vmatprep.subr.bf16.mxu0 0
  %5263 = vmatpush1.bf16.msra.mxu0 0
  %5264 = vmatprep.subr.bf16.mxu0 0
  %5265 = vmatpush1.bf16.msra.mxu0 0
  %5266 = vmatprep.subr.bf16.mxu0 0
  %5267 = vmatpush1.bf16.msra.mxu0 0
  %5268 = vmatprep.subr.bf16.mxu0 0
  %5269 = vmatpush1.bf16.msra.mxu0 0
  %5270 = vmatprep.subr.bf16.mxu0 0
  %5271 = vmatpush1.bf16.msra.mxu0 0
  %5272 = vmatprep.mubr.bf16.mxu0 0
  %5273 = vmatmul.mubr.bf16.gmra.mrb[0].mxu0 %v5164
  %v5274 = vpop.f32.mrb[0].mxu0
  %v5275 = vadd.f32 0.0, %v5274
  %v5276 = vpop.f32.mrb[0].mxu0
  %v5277 = vpop.f32.mrb[0].mxu0
  %v5278 = vadd.f32 0.0, %v5277
  %v5279 = vpop.f32.mrb[0].mxu0
  %5280 = vmatprep.mubr.bf16.mxu0 0
  %5281 = vmatmul.mubr.bf16.gmra.mrb[0].mxu0 %v5167
  %v5282 = vpop.f32.mrb[0].mxu0
  %v5283 = vadd.f32 0.0, %v5282
  %v5284 = vpop.f32.mrb[0].mxu0
  %v5285 = vpop.f32.mrb[0].mxu0
  %v5286 = vadd.f32 0.0, %v5285
  %v5287 = vpop.f32.mrb[0].mxu0
  %5288 = vdwg.mxu0
  %v5289 = vpack.c.bf16 %v5278, %v5275
  %v5290 = vpack.c.bf16 %v5286, %v5283
  %v5291 = vld [vmem:[%s16 + $0x10] sm:$0xf]
  %v5292 = vld [vmem:[%s16 + $0x14] sm:$0xf]
  %v5293 = vld [vmem:[%s16 + $0x18] sm:$0xf]
  %v5294 = vld [vmem:[%s16 + $0x1c] sm:$0xf]
  %v5299 = vunpack.c.l.b16 %v5291
  %v5300 = vunpack.c.l.b16 %v5292
  %v5301 = vunpack.c.l.b16 %v5293
  %v5302 = vunpack.c.l.b16 %v5294
  %v5303 = vpack.c.b16 %v5300, %v5299
  %v5304 = vpack.c.b16 %v5302, %v5301
  %v5306 = vsel %vm2845, %v5303, 0
  %v5309 = vsel %vm2845, %v5304, 0
  %5311 = vmatprep.subr.bf16.mxu0 0
  %5312 = vmatpush1.bf16.msra.mxu0 %v5289
  %5313 = vmatprep.subr.bf16.mxu0 0
  %5314 = vmatpush1.bf16.msra.mxu0 %v5290
  %5315 = vmatprep.subr.bf16.mxu0 0
  %5316 = vmatpush1.bf16.msra.mxu0 0
  %5317 = vmatprep.subr.bf16.mxu0 0
  %5318 = vmatpush1.bf16.msra.mxu0 0
  %5319 = vmatprep.subr.bf16.mxu0 0
  %5320 = vmatpush1.bf16.msra.mxu0 0
  %5321 = vmatprep.subr.bf16.mxu0 0
  %5322 = vmatpush1.bf16.msra.mxu0 0
  %5323 = vmatprep.subr.bf16.mxu0 0
  %5324 = vmatpush1.bf16.msra.mxu0 0
  %5325 = vmatprep.subr.bf16.mxu0 0
  %5326 = vmatpush1.bf16.msra.mxu0 0
  %5327 = vmatprep.subr.bf16.mxu0 0
  %5328 = vmatpush1.bf16.msra.mxu0 0
  %5329 = vmatprep.subr.bf16.mxu0 0
  %5330 = vmatpush1.bf16.msra.mxu0 0
  %5331 = vmatprep.subr.bf16.mxu0 0
  %5332 = vmatpush1.bf16.msra.mxu0 0
  %5333 = vmatprep.subr.bf16.mxu0 0
  %5334 = vmatpush1.bf16.msra.mxu0 0
  %5335 = vmatprep.subr.bf16.mxu0 0
  %5336 = vmatpush1.bf16.msra.mxu0 0
  %5337 = vmatprep.subr.bf16.mxu0 0
  %5338 = vmatpush1.bf16.msra.mxu0 0
  %5339 = vmatprep.subr.bf16.mxu0 0
  %5340 = vmatpush1.bf16.msra.mxu0 0
  %5341 = vmatprep.subr.bf16.mxu0 0
  %5342 = vmatpush1.bf16.msra.mxu0 0
  %5343 = vmatprep.mubr.bf16.mxu0 0
  %5344 = vmatmul.mubr.bf16.gmra.mrb[0].mxu0 %v5306
  %v5345 = vpop.f32.mrb[0].mxu0
  %v5346 = vadd.f32 0.0, %v5345
  %v5347 = vpop.f32.mrb[0].mxu0
  %v5348 = vpop.f32.mrb[0].mxu0
  %v5349 = vadd.f32 0.0, %v5348
  %v5350 = vpop.f32.mrb[0].mxu0
  %5351 = vmatprep.mubr.bf16.mxu0 0
  %5352 = vmatmul.mubr.bf16.gmra.mrb[0].mxu0 %v5309
  %v5353 = vpop.f32.mrb[0].mxu0
  %v5354 = vadd.f32 0.0, %v5353
  %v5355 = vpop.f32.mrb[0].mxu0
  %v5356 = vpop.f32.mrb[0].mxu0
  %v5357 = vadd.f32 0.0, %v5356
  %v5358 = vpop.f32.mrb[0].mxu0
  %5359 = vdwg.mxu0
  %v5364 = vunpack.c.l.b16 %v5220
  %v5365 = vunpack.c.l.b16 %v5221
  %v5366 = vunpack.c.l.b16 %v5222
  %v5367 = vunpack.c.l.b16 %v5223
  %v5368 = vpack.c.b16 %v5365, %v5364
  %v5369 = vpack.c.b16 %v5367, %v5366
  %v5371 = vsel %vm2845, %v5368, 0
  %v5374 = vsel %vm2845, %v5369, 0
  %5376 = vmatprep.subr.bf16.mxu0 0
  %5377 = vmatpush1.bf16.msra.mxu0 %v5218
  %5378 = vmatprep.subr.bf16.mxu0 0
  %5379 = vmatpush1.bf16.msra.mxu0 %v5219
  %5380 = vmatprep.subr.bf16.mxu0 0
  %5381 = vmatpush1.bf16.msra.mxu0 0
  %5382 = vmatprep.subr.bf16.mxu0 0
  %5383 = vmatpush1.bf16.msra.mxu0 0
  %5384 = vmatprep.subr.bf16.mxu0 0
  %5385 = vmatpush1.bf16.msra.mxu0 0
  %5386 = vmatprep.subr.bf16.mxu0 0
  %5387 = vmatpush1.bf16.msra.mxu0 0
  %5388 = vmatprep.subr.bf16.mxu0 0
  %5389 = vmatpush1.bf16.msra.mxu0 0
  %5390 = vmatprep.subr.bf16.mxu0 0
  %5391 = vmatpush1.bf16.msra.mxu0 0
  %5392 = vmatprep.subr.bf16.mxu0 0
  %5393 = vmatpush1.bf16.msra.mxu0 0
  %5394 = vmatprep.subr.bf16.mxu0 0
  %5395 = vmatpush1.bf16.msra.mxu0 0
  %5396 = vmatprep.subr.bf16.mxu0 0
  %5397 = vmatpush1.bf16.msra.mxu0 0
  %5398 = vmatprep.subr.bf16.mxu0 0
  %5399 = vmatpush1.bf16.msra.mxu0 0
  %5400 = vmatprep.subr.bf16.mxu0 0
  %5401 = vmatpush1.bf16.msra.mxu0 0
  %5402 = vmatprep.subr.bf16.mxu0 0
  %5403 = vmatpush1.bf16.msra.mxu0 0
  %5404 = vmatprep.subr.bf16.mxu0 0
  %5405 = vmatpush1.bf16.msra.mxu0 0
  %5406 = vmatprep.subr.bf16.mxu0 0
  %5407 = vmatpush1.bf16.msra.mxu0 0
  %5408 = vmatprep.mubr.bf16.mxu0 0
  %5409 = vmatmul.mubr.bf16.gmra.mrb[0].mxu0 %v5371
  %v5410 = vpop.f32.mrb[0].mxu0
  %v5411 = vadd.f32 %v5346, %v5410
  %v5412 = vpop.f32.mrb[0].mxu0
  %v5413 = vpop.f32.mrb[0].mxu0
  %v5414 = vadd.f32 %v5349, %v5413
  %v5415 = vpop.f32.mrb[0].mxu0
  %5416 = vmatprep.mubr.bf16.mxu0 0
  %5417 = vmatmul.mubr.bf16.gmra.mrb[0].mxu0 %v5374
  %v5418 = vpop.f32.mrb[0].mxu0
  %v5419 = vadd.f32 %v5354, %v5418
  %v5420 = vpop.f32.mrb[0].mxu0
  %v5421 = vpop.f32.mrb[0].mxu0
  %v5422 = vadd.f32 %v5357, %v5421
  %v5423 = vpop.f32.mrb[0].mxu0
  %5424 = vdwg.mxu0
  %v5425 = vld [vmem:[%s15 + $0x20] sm:$0xf]
  %v5426 = vld [vmem:[%s15 + $0x24] sm:$0xf]
  %v5427 = vld [vmem:[%s15 + $0x28] sm:$0xf]
  %v5428 = vld [vmem:[%s15 + $0x2c] sm:$0xf]
  %v5433 = vunpack.c.l.b16 %v5425
  %v5434 = vunpack.c.l.b16 %v5426
  %v5435 = vunpack.c.l.b16 %v5427
  %v5436 = vunpack.c.l.b16 %v5428
  %v5437 = vpack.c.b16 %v5434, %v5433
  %v5438 = vpack.c.b16 %v5436, %v5435
  %5441 = vmatprep.subr.bf16.mxu0 0
  %5442 = vmatpush1.bf16.msra.mxu0 %v5437
  %5443 = vmatprep.subr.bf16.mxu0 0
  %5444 = vmatpush1.bf16.msra.mxu0 %v5438
  %5445 = vmatprep.subr.bf16.mxu0 0
  %5446 = vmatpush1.bf16.msra.mxu0 0
  %5447 = vmatprep.subr.bf16.mxu0 0
  %5448 = vmatpush1.bf16.msra.mxu0 0
  %5449 = vmatprep.subr.bf16.mxu0 0
  %5450 = vmatpush1.bf16.msra.mxu0 0
  %5451 = vmatprep.subr.bf16.mxu0 0
  %5452 = vmatpush1.bf16.msra.mxu0 0
  %5453 = vmatprep.subr.bf16.mxu0 0
  %5454 = vmatpush1.bf16.msra.mxu0 0
  %5455 = vmatprep.subr.bf16.mxu0 0
  %5456 = vmatpush1.bf16.msra.mxu0 0
  %5457 = vmatprep.subr.bf16.mxu0 0
  %5458 = vmatpush1.bf16.msra.mxu0 0
  %5459 = vmatprep.subr.bf16.mxu0 0
  %5460 = vmatpush1.bf16.msra.mxu0 0
  %5461 = vmatprep.subr.bf16.mxu0 0
  %5462 = vmatpush1.bf16.msra.mxu0 0
  %5463 = vmatprep.subr.bf16.mxu0 0
  %5464 = vmatpush1.bf16.msra.mxu0 0
  %5465 = vmatprep.subr.bf16.mxu0 0
  %5466 = vmatpush1.bf16.msra.mxu0 0
  %5467 = vmatprep.subr.bf16.mxu0 0
  %5468 = vmatpush1.bf16.msra.mxu0 0
  %5469 = vmatprep.subr.bf16.mxu0 0
  %5470 = vmatpush1.bf16.msra.mxu0 0
  %5471 = vmatprep.subr.bf16.mxu0 0
  %5472 = vmatpush1.bf16.msra.mxu0 0
  %5473 = vmatprep.mubr.bf16.mxu0 0
  %5474 = vmatmul.mubr.bf16.gmra.mrb[0].mxu0 %v5164
  %v5475 = vpop.f32.mrb[0].mxu0
  %v5476 = vadd.f32 0.0, %v5475
  %v5477 = vpop.f32.mrb[0].mxu0
  %v5478 = vpop.f32.mrb[0].mxu0
  %v5479 = vadd.f32 0.0, %v5478
  %v5480 = vpop.f32.mrb[0].mxu0
  %5481 = vmatprep.mubr.bf16.mxu0 0
  %5482 = vmatmul.mubr.bf16.gmra.mrb[0].mxu0 %v5167
  %v5483 = vpop.f32.mrb[0].mxu0
  %v5484 = vadd.f32 0.0, %v5483
  %v5485 = vpop.f32.mrb[0].mxu0
  %v5486 = vpop.f32.mrb[0].mxu0
  %v5487 = vadd.f32 0.0, %v5486
  %v5488 = vpop.f32.mrb[0].mxu0
  %5489 = vdwg.mxu0
  %v5490 = vpack.c.bf16 %v5479, %v5476
  %v5491 = vpack.c.bf16 %v5487, %v5484
  %v5492 = vld [vmem:[%s16 + $0x20] sm:$0xf]
  %v5493 = vld [vmem:[%s16 + $0x24] sm:$0xf]
  %v5494 = vld [vmem:[%s16 + $0x28] sm:$0xf]
  %v5495 = vld [vmem:[%s16 + $0x2c] sm:$0xf]
  %v5500 = vunpack.c.l.b16 %v5492
  %v5501 = vunpack.c.l.b16 %v5493
  %v5502 = vunpack.c.l.b16 %v5494
  %v5503 = vunpack.c.l.b16 %v5495
  %v5504 = vpack.c.b16 %v5501, %v5500
  %v5505 = vpack.c.b16 %v5503, %v5502
  %v5507 = vsel %vm2845, %v5504, 0
  %v5510 = vsel %vm2845, %v5505, 0
  %5512 = vmatprep.subr.bf16.mxu0 0
  %5513 = vmatpush1.bf16.msra.mxu0 %v5490
  %5514 = vmatprep.subr.bf16.mxu0 0
  %5515 = vmatpush1.bf16.msra.mxu0 %v5491
  %5516 = vmatprep.subr.bf16.mxu0 0
  %5517 = vmatpush1.bf16.msra.mxu0 0
  %5518 = vmatprep.subr.bf16.mxu0 0
  %5519 = vmatpush1.bf16.msra.mxu0 0
  %5520 = vmatprep.subr.bf16.mxu0 0
  %5521 = vmatpush1.bf16.msra.mxu0 0
  %5522 = vmatprep.subr.bf16.mxu0 0
  %5523 = vmatpush1.bf16.msra.mxu0 0
  %5524 = vmatprep.subr.bf16.mxu0 0
  %5525 = vmatpush1.bf16.msra.mxu0 0
  %5526 = vmatprep.subr.bf16.mxu0 0
  %5527 = vmatpush1.bf16.msra.mxu0 0
  %5528 = vmatprep.subr.bf16.mxu0 0
  %5529 = vmatpush1.bf16.msra.mxu0 0
  %5530 = vmatprep.subr.bf16.mxu0 0
  %5531 = vmatpush1.bf16.msra.mxu0 0
  %5532 = vmatprep.subr.bf16.mxu0 0
  %5533 = vmatpush1.bf16.msra.mxu0 0
  %5534 = vmatprep.subr.bf16.mxu0 0
  %5535 = vmatpush1.bf16.msra.mxu0 0
  %5536 = vmatprep.subr.bf16.mxu0 0
  %5537 = vmatpush1.bf16.msra.mxu0 0
  %5538 = vmatprep.subr.bf16.mxu0 0
  %5539 = vmatpush1.bf16.msra.mxu0 0
  %5540 = vmatprep.subr.bf16.mxu0 0
  %5541 = vmatpush1.bf16.msra.mxu0 0
  %5542 = vmatprep.subr.bf16.mxu0 0
  %5543 = vmatpush1.bf16.msra.mxu0 0
  %5544 = vmatprep.mubr.bf16.mxu0 0
  %5545 = vmatmul.mubr.bf16.gmra.mrb[0].mxu0 %v5507
  %v5546 = vpop.f32.mrb[0].mxu0
  %v5547 = vadd.f32 0.0, %v5546
  %v5548 = vpop.f32.mrb[0].mxu0
  %v5549 = vpop.f32.mrb[0].mxu0
  %v5550 = vadd.f32 0.0, %v5549
  %v5551 = vpop.f32.mrb[0].mxu0
  %5552 = vmatprep.mubr.bf16.mxu0 0
  %5553 = vmatmul.mubr.bf16.gmra.mrb[0].mxu0 %v5510
  %v5554 = vpop.f32.mrb[0].mxu0
  %v5555 = vadd.f32 0.0, %v5554
  %v5556 = vpop.f32.mrb[0].mxu0
  %v5557 = vpop.f32.mrb[0].mxu0
  %v5558 = vadd.f32 0.0, %v5557
  %v5559 = vpop.f32.mrb[0].mxu0
  %5560 = vdwg.mxu0
  %v5561 = vadd.f32 %v5411, %v5547
  %v5562 = vadd.f32 %v5414, %v5550
  %v5563 = vadd.f32 %v5419, %v5555
  %v5564 = vadd.f32 %v5422, %v5558
  %v5565 = vld [vmem:[%s15 + $0x30] sm:$0xf]
  %v5566 = vld [vmem:[%s15 + $0x34] sm:$0xf]
  %v5567 = vld [vmem:[%s15 + $0x38] sm:$0xf]
  %v5568 = vld [vmem:[%s15 + $0x3c] sm:$0xf]
  %v5573 = vunpack.c.l.b16 %v5565
  %v5574 = vunpack.c.l.b16 %v5566
  %v5575 = vunpack.c.l.b16 %v5567
  %v5576 = vunpack.c.l.b16 %v5568
  %v5577 = vpack.c.b16 %v5574, %v5573
  %v5578 = vpack.c.b16 %v5576, %v5575
  %5581 = vmatprep.subr.bf16.mxu0 0
  %5582 = vmatpush1.bf16.msra.mxu0 %v5577
  %5583 = vmatprep.subr.bf16.mxu0 0
  %5584 = vmatpush1.bf16.msra.mxu0 %v5578
  %5585 = vmatprep.subr.bf16.mxu0 0
  %5586 = vmatpush1.bf16.msra.mxu0 0
  %5587 = vmatprep.subr.bf16.mxu0 0
  %5588 = vmatpush1.bf16.msra.mxu0 0
  %5589 = vmatprep.subr.bf16.mxu0 0
  %5590 = vmatpush1.bf16.msra.mxu0 0
  %5591 = vmatprep.subr.bf16.mxu0 0
  %5592 = vmatpush1.bf16.msra.mxu0 0
  %5593 = vmatprep.subr.bf16.mxu0 0
  %5594 = vmatpush1.bf16.msra.mxu0 0
  %5595 = vmatprep.subr.bf16.mxu0 0
  %5596 = vmatpush1.bf16.msra.mxu0 0
  %5597 = vmatprep.subr.bf16.mxu0 0
  %5598 = vmatpush1.bf16.msra.mxu0 0
  %5599 = vmatprep.subr.bf16.mxu0 0
  %5600 = vmatpush1.bf16.msra.mxu0 0
  %5601 = vmatprep.subr.bf16.mxu0 0
  %5602 = vmatpush1.bf16.msra.mxu0 0
  %5603 = vmatprep.subr.bf16.mxu0 0
  %5604 = vmatpush1.bf16.msra.mxu0 0
  %5605 = vmatprep.subr.bf16.mxu0 0
  %5606 = vmatpush1.bf16.msra.mxu0 0
  %5607 = vmatprep.subr.bf16.mxu0 0
  %5608 = vmatpush1.bf16.msra.mxu0 0
  %5609 = vmatprep.subr.bf16.mxu0 0
  %5610 = vmatpush1.bf16.msra.mxu0 0
  %5611 = vmatprep.subr.bf16.mxu0 0
  %5612 = vmatpush1.bf16.msra.mxu0 0
  %5613 = vmatprep.mubr.bf16.mxu0 0
  %5614 = vmatmul.mubr.bf16.gmra.mrb[0].mxu0 %v5164
  %v5615 = vpop.f32.mrb[0].mxu0
  %v5616 = vadd.f32 0.0, %v5615
  %v5617 = vpop.f32.mrb[0].mxu0
  %v5618 = vpop.f32.mrb[0].mxu0
  %v5619 = vadd.f32 0.0, %v5618
  %v5620 = vpop.f32.mrb[0].mxu0
  %5621 = vmatprep.mubr.bf16.mxu0 0
  %5622 = vmatmul.mubr.bf16.gmra.mrb[0].mxu0 %v5167
  %v5623 = vpop.f32.mrb[0].mxu0
  %v5624 = vadd.f32 0.0, %v5623
  %v5625 = vpop.f32.mrb[0].mxu0
  %v5626 = vpop.f32.mrb[0].mxu0
  %v5627 = vadd.f32 0.0, %v5626
  %v5628 = vpop.f32.mrb[0].mxu0
  %5629 = vdwg.mxu0
  %v5630 = vpack.c.bf16 %v5619, %v5616
  %v5631 = vpack.c.bf16 %v5627, %v5624
  %v5632 = vld [vmem:[%s16 + $0x30] sm:$0xf]
  %v5633 = vld [vmem:[%s16 + $0x34] sm:$0xf]
  %v5634 = vld [vmem:[%s16 + $0x38] sm:$0xf]
  %v5635 = vld [vmem:[%s16 + $0x3c] sm:$0xf]
  %v5640 = vunpack.c.l.b16 %v5632
  %v5641 = vunpack.c.l.b16 %v5633
  %v5642 = vunpack.c.l.b16 %v5634
  %v5643 = vunpack.c.l.b16 %v5635
  %v5644 = vpack.c.b16 %v5641, %v5640
  %v5645 = vpack.c.b16 %v5643, %v5642
  %v5647 = vsel %vm2845, %v5644, 0
  %v5650 = vsel %vm2845, %v5645, 0
  %5652 = vmatprep.subr.bf16.mxu0 0
  %5653 = vmatpush1.bf16.msra.mxu0 %v5630
  %5654 = vmatprep.subr.bf16.mxu0 0
  %5655 = vmatpush1.bf16.msra.mxu0 %v5631
  %5656 = vmatprep.subr.bf16.mxu0 0
  %5657 = vmatpush1.bf16.msra.mxu0 0
  %5658 = vmatprep.subr.bf16.mxu0 0
  %5659 = vmatpush1.bf16.msra.mxu0 0
  %5660 = vmatprep.subr.bf16.mxu0 0
  %5661 = vmatpush1.bf16.msra.mxu0 0
  %5662 = vmatprep.subr.bf16.mxu0 0
  %5663 = vmatpush1.bf16.msra.mxu0 0
  %5664 = vmatprep.subr.bf16.mxu0 0
  %5665 = vmatpush1.bf16.msra.mxu0 0
  %5666 = vmatprep.subr.bf16.mxu0 0
  %5667 = vmatpush1.bf16.msra.mxu0 0
  %5668 = vmatprep.subr.bf16.mxu0 0
  %5669 = vmatpush1.bf16.msra.mxu0 0
  %5670 = vmatprep.subr.bf16.mxu0 0
  %5671 = vmatpush1.bf16.msra.mxu0 0
  %5672 = vmatprep.subr.bf16.mxu0 0
  %5673 = vmatpush1.bf16.msra.mxu0 0
  %5674 = vmatprep.subr.bf16.mxu0 0
  %5675 = vmatpush1.bf16.msra.mxu0 0
  %5676 = vmatprep.subr.bf16.mxu0 0
  %5677 = vmatpush1.bf16.msra.mxu0 0
  %5678 = vmatprep.subr.bf16.mxu0 0
  %5679 = vmatpush1.bf16.msra.mxu0 0
  %5680 = vmatprep.subr.bf16.mxu0 0
  %5681 = vmatpush1.bf16.msra.mxu0 0
  %5682 = vmatprep.subr.bf16.mxu0 0
  %5683 = vmatpush1.bf16.msra.mxu0 0
  %5684 = vmatprep.mubr.bf16.mxu0 0
  %5685 = vmatmul.mubr.bf16.gmra.mrb[0].mxu0 %v5647
  %v5686 = vpop.f32.mrb[0].mxu0
  %v5687 = vadd.f32 0.0, %v5686
  %v5688 = vpop.f32.mrb[0].mxu0
  %v5689 = vpop.f32.mrb[0].mxu0
  %v5690 = vadd.f32 0.0, %v5689
  %v5691 = vpop.f32.mrb[0].mxu0
  %5692 = vmatprep.mubr.bf16.mxu0 0
  %5693 = vmatmul.mubr.bf16.gmra.mrb[0].mxu0 %v5650
  %v5694 = vpop.f32.mrb[0].mxu0
  %v5695 = vadd.f32 0.0, %v5694
  %v5696 = vpop.f32.mrb[0].mxu0
  %v5697 = vpop.f32.mrb[0].mxu0
  %v5698 = vadd.f32 0.0, %v5697
  %v5699 = vpop.f32.mrb[0].mxu0
  %5700 = vdwg.mxu0
  %v5701 = vadd.f32 %v5561, %v5687
  %v5702 = vadd.f32 %v5562, %v5690
  %v5703 = vadd.f32 %v5563, %v5695
  %v5704 = vadd.f32 %v5564, %v5698
  %v5705 = vld [vmem:[%s17] sm:$0xff]
  %v5706 = vld [vmem:[%s17 + $0x8] sm:$0xff]
  %v5707 = vld [vmem:[%s17 + $0x10] sm:$0xff]
  %v5708 = vld [vmem:[%s17 + $0x18] sm:$0xff]
  %5710 = vset.pattern.permute.xlu0 0
  %5711 = vperm.xlu0 %5710, %v5705
  %v5712 = vpop.permute.xlu0 %5711
  %5715 = vset.pattern.permute.xlu0 0
  %5716 = vperm.xlu0 %5715, %v5706
  %v5717 = vpop.permute.xlu0 %5716
  %5720 = vset.pattern.permute.xlu0 0
  %5721 = vperm.xlu0 %5720, %v5707
  %v5722 = vpop.permute.xlu0 %5721
  %5725 = vset.pattern.permute.xlu0 0
  %5726 = vperm.xlu0 %5725, %v5708
  %v5727 = vpop.permute.xlu0 %5726
  %v5729 = vadd.f32 %v5701, %v5712
  %v5730 = vadd.f32 %v5702, %v5717
  %v5731 = vadd.f32 %v5703, %v5722
  %v5732 = vadd.f32 %v5704, %v5727
  %vm5733 = vcmask 15360
  %v5734 = vsel %vm5733, %v5729, 0.0
  %5735 = vadd.xlane.f32.xlu0 %v5734
  %v5736 = vpop.xlane.xlu0 %5735
  %v5737 = vsel %vm5733, %v5730, 0.0
  %5738 = vadd.xlane.f32.xlu0 %v5737
  %v5739 = vpop.xlane.xlu0 %5738
  %v5740 = vsel %vm5733, %v5731, 0.0
  %5741 = vadd.xlane.f32.xlu0 %v5740
  %v5742 = vpop.xlane.xlu0 %5741
  %v5743 = vsel %vm5733, %v5732, 0.0
  %5744 = vadd.xlane.f32.xlu0 %v5743
  %v5745 = vpop.xlane.xlu0 %5744
  %v5746 = vrcp.pop 2.0
  %v5747 = vmul.f32 %v5736, %v5746
  %v5748 = vmul.f32 %v5739, %v5746
  %v5749 = vmul.f32 %v5742, %v5746
  %v5750 = vmul.f32 %v5745, %v5746
  %v5751 = vsub.f32 %v5729, %v5747
  %v5752 = vsub.f32 %v5730, %v5748
  %v5753 = vsub.f32 %v5731, %v5749
  %v5754 = vsub.f32 %v5732, %v5750
  %v5755 = vmul.f32 %v5751, %v5751
  %v5756 = vmul.f32 %v5752, %v5752
  %v5757 = vmul.f32 %v5753, %v5753
  %v5758 = vmul.f32 %v5754, %v5754
  %v5759 = vsel %vm5733, %v5755, 0.0
  %5760 = vadd.xlane.f32.xlu0 %v5759
  %v5761 = vpop.xlane.xlu0 %5760
  %v5762 = vsel %vm5733, %v5756, 0.0
  %5763 = vadd.xlane.f32.xlu0 %v5762
  %v5764 = vpop.xlane.xlu0 %5763
  %v5765 = vsel %vm5733, %v5757, 0.0
  %5766 = vadd.xlane.f32.xlu0 %v5765
  %v5767 = vpop.xlane.xlu0 %5766
  %v5768 = vsel %vm5733, %v5758, 0.0
  %5769 = vadd.xlane.f32.xlu0 %v5768
  %v5770 = vpop.xlane.xlu0 %5769
  %v5771 = vmul.f32 %v5761, %v5746
  %v5772 = vmul.f32 %v5764, %v5746
  %v5773 = vmul.f32 %v5767, %v5746
  %v5774 = vmul.f32 %v5770, %v5746
  %v5775 = vld [vmem:[%s18] sm:$0xff]
  %v5776 = vld [vmem:[%s18 + $0x8] sm:$0xff]
  %v5777 = vld [vmem:[%s18 + $0x10] sm:$0xff]
  %v5778 = vld [vmem:[%s18 + $0x18] sm:$0xff]
  %v5779 = vadd.f32 %v5771, 1e-05
  %v5780 = vadd.f32 %v5772, 1e-05
  %v5781 = vadd.f32 %v5773, 1e-05
  %v5782 = vadd.f32 %v5774, 1e-05
  %v5783 = vrsqrt.pop %v5779
  %v5784 = vrsqrt.pop %v5780
  %v5785 = vrsqrt.pop %v5781
  %v5786 = vrsqrt.pop %v5782
  %v5787 = vmul.f32 %v5775, %v5783
  %v5788 = vmul.f32 %v5776, %v5784
  %v5789 = vmul.f32 %v5777, %v5785
  %v5790 = vmul.f32 %v5778, %v5786
  %v5791 = vld [vmem:[%s19] sm:$0xff]
  %v5792 = vld [vmem:[%s19 + $0x8] sm:$0xff]
  %v5793 = vld [vmem:[%s19 + $0x10] sm:$0xff]
  %v5794 = vld [vmem:[%s19 + $0x18] sm:$0xff]
  %v5795 = vmul.f32 %v5747, %v5787
  %v5796 = vmul.f32 %v5748, %v5788
  %v5797 = vmul.f32 %v5749, %v5789
  %v5798 = vmul.f32 %v5750, %v5790
  %v5799 = vsub.f32 %v5791, %v5795
  %v5800 = vsub.f32 %v5792, %v5796
  %v5801 = vsub.f32 %v5793, %v5797
  %v5802 = vsub.f32 %v5794, %v5798
  %5804 = vset.pattern.permute.xlu0 0
  %5805 = vperm.xlu0 %5804, %v5787
  %v5806 = vpop.permute.xlu0 %5805
  %5809 = vset.pattern.permute.xlu0 0
  %5810 = vperm.xlu0 %5809, %v5788
  %v5811 = vpop.permute.xlu0 %5810
  %5814 = vset.pattern.permute.xlu0 0
  %5815 = vperm.xlu0 %5814, %v5789
  %v5816 = vpop.permute.xlu0 %5815
  %5819 = vset.pattern.permute.xlu0 0
  %5820 = vperm.xlu0 %5819, %v5790
  %v5821 = vpop.permute.xlu0 %5820
  %v5823 = vmul.f32 %v5729, %v5806
  %v5824 = vmul.f32 %v5730, %v5811
  %v5825 = vmul.f32 %v5731, %v5816
  %v5826 = vmul.f32 %v5732, %v5821
  %5828 = vset.pattern.permute.xlu0 0
  %5829 = vperm.xlu0 %5828, %v5799
  %v5830 = vpop.permute.xlu0 %5829
  %5833 = vset.pattern.permute.xlu0 0
  %5834 = vperm.xlu0 %5833, %v5800
  %v5835 = vpop.permute.xlu0 %5834
  %5838 = vset.pattern.permute.xlu0 0
  %5839 = vperm.xlu0 %5838, %v5801
  %v5840 = vpop.permute.xlu0 %5839
  %5843 = vset.pattern.permute.xlu0 0
  %5844 = vperm.xlu0 %5843, %v5802
  %v5845 = vpop.permute.xlu0 %5844
  %v5847 = vadd.f32 %v5823, %v5830
  %v5848 = vadd.f32 %v5824, %v5835
  %v5849 = vadd.f32 %v5825, %v5840
  %v5850 = vadd.f32 %v5826, %v5845
  %5851 = vst.msk [vmem:[%s20] sm:$0xff] %vm5733, %v5847
  %5852 = vst.msk [vmem:[%s20 + $0x8] sm:$0xff] %vm5733, %v5848
  %5853 = vst.msk [vmem:[%s20 + $0x10] sm:$0xff] %vm5733, %v5849
  %5854 = vst.msk [vmem:[%s20 + $0x18] sm:$0xff] %vm5733, %v5850
  // Predicated region
  $region82: #{_lambda_.1} parent=0 // pred_check
    _
  $region83: #{_lambda_.1} parent=0 // pred_check_branch
    %5856 = sbr.rel (0) target = $region85
  $region84: #{_lambda_.1} parent=0 // pred_region
    _
  $region85: #{_lambda_.1} parent=0 // pred_fallthru
    _
  // Predicated region
  $region86: #{_lambda_.1} parent=0 // pred_check
    _
  $region87: #{_lambda_.1} parent=0 // pred_check_branch
    %5858 = sbr.rel (0) target = $region89
  $region88: #{_lambda_.1} parent=0 // pred_region
    _
  $region89: #{_lambda_.1} parent=0 // pred_fallthru
    _

</llo_original>
